<compile_context>
chip_gen: v5e
topology: v5e:2x2
jax: 0.10.0
libtpu: 0.0.40
codegen_flags: <defaults>
</compile_context>

<pallas_src>
import functools

import jax
import jax.numpy as jnp
from jax import lax
from jax.experimental import pallas as pl
from jax.experimental.pallas import tpu as pltpu


def _round_up(x, m):
    return ((x + m - 1) // m) * m


def _deepnet_kernel(x_ref, wih_ref, whh_ref, b_ref,
                    wp_ref, bp_ref, wc_ref, bc_ref,
                    out_ref, rep_ref,
                    h_ref, c_ref,
                    *, seq_len, t_tile, mask_time):
    """One (batch_block, time_block) grid step of the fused LSTM forward.

    x_ref   : (Bt, Tt, I)   batch-first input chunk (matmul dtype)
    wih_ref : (I,  4Hp)     input->gates weights (gate-major, zero-padded, pre-transposed)
    whh_ref : (Hp, 4Hp)     hidden->gates weights
    b_ref   : (1,  4Hp)     combined bias (b_ih + b_hh), f32
    wp_ref  : (Hp, Rp)      projection weights; bp_ref: (1, Rp)
    wc_ref  : (Rp, Cp)      classifier weights; bc_ref: (1, Cp)
    out_ref : (Bt, Cp)      logits   (written only on the last time block)
    rep_ref : (Bt, Rp)      rep      (written only on the last time block)
    h_ref/c_ref : (Bt, Hp)  f32 VMEM carries, persist across time blocks
    """
    t_blk = pl.program_id(1)
    hp = whh_ref.shape[0]

    @pl.when(t_blk == 0)
    def _init():
        h_ref[...] = jnp.zeros_like(h_ref)
        c_ref[...] = jnp.zeros_like(c_ref)

    # ---- hoisted input projection: one large MXU matmul per time chunk ----
    x_chunk = x_ref[...]                                     # (Bt, Tt, I)
    bt, tt_n, in_dim = x_chunk.shape
    gates_x = jnp.dot(x_chunk.reshape(bt * tt_n, in_dim), wih_ref[...],
                      preferred_element_type=jnp.float32)
    gates_x = gates_x + b_ref[...]                           # bias folded in once
    gates_x = gates_x.reshape(bt, tt_n, 4 * hp)

    # ---- recurrence: only h @ W_hh + elementwise remain on the critical path ----
    whh = whh_ref[...]                                       # loop-invariant, hoisted
    h = h_ref[...]
    c = c_ref[...]
    for tt in range(t_tile):                                 # fully unrolled
        gates = gates_x[:, tt, :] + jnp.dot(
            h.astype(whh.dtype), whh, preferred_element_type=jnp.float32)
        # PyTorch gate order: i, f, g, o   (lane-aligned Hp slices)
        i_g = jax.nn.sigmoid(gates[:, 0 * hp:1 * hp])
        f_g = jax.nn.sigmoid(gates[:, 1 * hp:2 * hp])
        g_g = jnp.tanh(gates[:, 2 * hp:3 * hp])
        o_g = jax.nn.sigmoid(gates[:, 3 * hp:4 * hp])
        c_new = f_g * c + i_g * g_g
        h_new = o_g * jnp.tanh(c_new)
        if mask_time:
            # Only the last time block can contain padded steps; scalar vsel is cheap.
            valid = (t_blk * t_tile + tt) < seq_len
            c = jnp.where(valid, c_new, c)
            h = jnp.where(valid, h_new, h)
        else:
            c, h = c_new, h_new
    h_ref[...] = h
    c_ref[...] = c

    # ---- head: projection + classifier, written once on the last time block ----
    @pl.when(t_blk == pl.num_programs(1) - 1)
    def _finish():
        rep = jnp.dot(h.astype(wp_ref.dtype), wp_ref[...],
                      preferred_element_type=jnp.float32) + bp_ref[...]
        rep_ref[...] = rep.astype(rep_ref.dtype)
        logits = jnp.dot(rep.astype(wc_ref.dtype), wc_ref[...],
                         preferred_element_type=jnp.float32) + bc_ref[...]
        out_ref[...] = logits.astype(out_ref.dtype)


def deepnet_forward(x, params, *, matmul_dtype=jnp.float32):
    """x: (B, T, input_size) float32 (batch_first, matching the PyTorch module)."""
    B, T, I = x.shape
    H = params["w_hh"].shape[1]
    R = params["w_proj"].shape[0]
    C = params["w_cls"].shape[0]

    LANE, SUB = 128, 8
    Hp = _round_up(H, LANE)
    Rp = _round_up(R, LANE)
    Cp = _round_up(C, LANE)

    # Batch padding / tiling (>= 8 sublanes; shard across cores if large).
    if B <= 128:
        Bp = _round_up(B, SUB)
        B_tile = Bp
    else:
        Bp = _round_up(B, 128)
        B_tile = 128

    # Time chunking (stream the sequence over the grid; 32 steps amortises the per-step
    # grid overhead while keeping the unrolled body's register/VMEM footprint modest).
    if T <= 32:
        T_tile, T_pad = T, T
    else:
        T_tile = 32
        T_pad = _round_up(T, T_tile)

    f32 = jnp.float32

    def pad_to(a, shape):
        return jnp.pad(a, [(0, s - d) for d, s in zip(a.shape, shape)])

    # Gate-major, zero-padded, pre-transposed weights (all matmuls are act @ (in,out)).
    w_ih = pad_to(params["w_ih"].reshape(4, H, I), (4, Hp, I)).reshape(4 * Hp, I)
    w_hh = pad_to(params["w_hh"].reshape(4, H, H), (4, Hp, Hp)).reshape(4 * Hp, Hp)
    bias = pad_to((params["b_ih"] + params["b_hh"]).reshape(4, H),
                  (4, Hp)).reshape(1, 4 * Hp).astype(f32)

    wih_t = w_ih.T.astype(matmul_dtype)                        # (I,  4Hp)
    whh_t = w_hh.T.astype(matmul_dtype)                        # (Hp, 4Hp)
    wp_t = pad_to(params["w_proj"], (Rp, Hp)).T.astype(matmul_dtype)   # (Hp, Rp)
    bp = pad_to(params["b_proj"], (Rp,)).reshape(1, Rp).astype(f32)
    wc_t = pad_to(params["w_cls"], (Cp, Rp)).T.astype(matmul_dtype)    # (Rp, Cp)
    bc = pad_to(params["b_cls"], (Cp,)).reshape(1, Cp).astype(f32)

    x_p = pad_to(x, (Bp, T_pad, I)).astype(matmul_dtype)       # stays batch-first

    grid = (Bp // B_tile, T_pad // T_tile)

    def resident(shape):
        nd = len(shape)
        return pl.BlockSpec(shape, lambda b, t, _nd=nd: (0,) * _nd)

    in_specs = [
        pl.BlockSpec((B_tile, T_tile, I), lambda b, t: (b, t, 0)),  # streamed x
        resident(wih_t.shape), resident(whh_t.shape), resident(bias.shape),
        resident(wp_t.shape), resident(bp.shape),
        resident(wc_t.shape), resident(bc.shape),
    ]
    out_specs = (
        pl.BlockSpec((B_tile, Cp), lambda b, t: (b, 0)),   # resident across the t axis
        pl.BlockSpec((B_tile, Rp), lambda b, t: (b, 0)),
    )
    out_shape = (
        jax.ShapeDtypeStruct((Bp, Cp), x.dtype),   # logits (lane-dense, padded)
        jax.ShapeDtypeStruct((Bp, Rp), x.dtype),   # rep
    )
    scratch_shapes = [
        pltpu.VMEM((B_tile, Hp), f32),   # h carry
        pltpu.VMEM((B_tile, Hp), f32),   # c carry
    ]

    m_item = jnp.dtype(matmul_dtype).itemsize
    vmem_bytes = (
        2 * B_tile * T_tile * I * m_item                 # double-buffered x blocks
        + (I + Hp) * 4 * Hp * m_item                     # resident gate weights
        + (Hp * Rp + Rp * Cp) * m_item                   # resident head weights
        + (4 * Hp + Rp + Cp) * 4                         # biases
        + 2 * B_tile * (Cp + Rp) * 4                     # output blocks
        + 2 * B_tile * Hp * 4                            # h / c carries
        + 4 * B_tile * T_tile * 4 * Hp * 4               # gates_x intermediate + slack
    )
    vmem_limit = int(min(max(2 * vmem_bytes, 16 << 20), 48 << 20))

    kernel = functools.partial(
        _deepnet_kernel, seq_len=T, t_tile=T_tile, mask_time=(T_pad != T))

    out_p, rep_p = pl.pallas_call(
        kernel,
        out_shape=out_shape,
        grid=grid,
        in_specs=in_specs,
        out_specs=out_specs,
        scratch_shapes=scratch_shapes,
        compiler_params=pltpu.CompilerParams(
            dimension_semantics=("parallel", "arbitrary"),
            vmem_limit_bytes=vmem_limit),
    )(x_p, wih_t, whh_t, bias, wp_t, bp, wc_t, bc)

    return out_p[:B, :C], rep_p[:B, :R]


def init_params(key, input_size, hidden, rep_size, num_classes):
    """Deterministic parameter init mirroring PyTorch's uniform(-1/sqrt(fan), 1/sqrt(fan))."""
    ks = jax.random.split(key, 8)
    u = lambda k, shape, bound: jax.random.uniform(
        k, shape, jnp.float32, minval=-bound, maxval=bound)
    bl = 1.0 / jnp.sqrt(hidden)
    return {
        "w_ih": u(ks[0], (4 * hidden, input_size), bl),
        "w_hh": u(ks[1], (4 * hidden, hidden), bl),
        "b_ih": u(ks[2], (4 * hidden,), bl),
        "b_hh": u(ks[3], (4 * hidden,), bl),
        "w_proj": u(ks[4], (rep_size, hidden), 1.0 / jnp.sqrt(hidden)),
        "b_proj": u(ks[5], (rep_size,), 1.0 / jnp.sqrt(hidden)),
        "w_cls": u(ks[6], (num_classes, rep_size), 1.0 / jnp.sqrt(rep_size)),
        "b_cls": u(ks[7], (num_classes,), 1.0 / jnp.sqrt(rep_size)),
    }


def deepnet_reference(x, params):
    """Pure-JAX reference of the same forward pass (for verification)."""
    B, T, I = x.shape
    H = params["w_hh"].shape[1]
    wih_t = params["w_ih"].T
    whh_t = params["w_hh"].T
    b = params["b_ih"] + params["b_hh"]

    def step(carry, xt):
        h, c = carry
        gates = xt @ wih_t + h @ whh_t + b
        i_g = jax.nn.sigmoid(gates[:, 0 * H:1 * H])
        f_g = jax.nn.sigmoid(gates[:, 1 * H:2 * H])
        g_g = jnp.tanh(gates[:, 2 * H:3 * H])
        o_g = jax.nn.sigmoid(gates[:, 3 * H:4 * H])
        c = f_g * c + i_g * g_g
        h = o_g * jnp.tanh(c)
        return (h, c), None

    h0 = jnp.zeros((B, H), jnp.float32)
    c0 = jnp.zeros((B, H), jnp.float32)
    (h_last, _), _ = lax.scan(step, (h0, c0), jnp.transpose(x, (1, 0, 2)))
    rep = h_last @ params["w_proj"].T + params["b_proj"]
    out = rep @ params["w_cls"].T + params["b_cls"]
    return out, rep


if __name__ == "__main__":
    # Small shapes consistent with the module (batch_first input).
    B, T = 2, 8
    input_size, lstm_hidden, rep_size, num_classes = 16, 32, 16, 4

    key = jax.random.PRNGKey(0)
    k_x, k_p = jax.random.split(key)
    x = jax.random.normal(k_x, (B, T, input_size), jnp.float32)
    params = init_params(k_p, input_size, lstm_hidden, rep_size, num_classes)

    # f32 matmul path (faithful to the reference up to f32 rounding).
    out, rep = deepnet_forward(x, params)
    out = jax.block_until_ready(out)
    rep = jax.block_until_ready(rep)

    out_ref, rep_ref = deepnet_reference(x, params)
    assert out.shape == (B, num_classes) and rep.shape == (B, rep_size)
    assert jnp.allclose(out, out_ref, atol=1e-4, rtol=1e-4)
    assert jnp.allclose(rep, rep_ref, atol=1e-4, rtol=1e-4)

    # bf16 matmul-input path (recommended on v6e/v7x; f32 accumulation + f32 carries).
    out_bf, rep_bf = deepnet_forward(x, params, matmul_dtype=jnp.bfloat16)
    out_bf = jax.block_until_ready(out_bf)
    rep_bf = jax.block_until_ready(rep_bf)
    assert out_bf.shape == (B, num_classes) and rep_bf.shape == (B, rep_size)
    assert jnp.allclose(out_bf, out_ref, atol=1e-1, rtol=1e-1)
    assert jnp.allclose(rep_bf, rep_ref, atol=1e-1, rtol=1e-1)

    print("KERNEL_OK")
</pallas_src>

<mosaic_0001>
module attributes {stable_mosaic.version = 11 : i64} {
  func.func @_deepnet_kernel(%arg0: i32, %arg1: i32, %arg2: memref<8x8x16xf32, #tpu.memory_space<vmem>>, %arg3: memref<16x512xf32, #tpu.memory_space<vmem>>, %arg4: memref<128x512xf32, #tpu.memory_space<vmem>>, %arg5: memref<1x512xf32, #tpu.memory_space<vmem>>, %arg6: memref<128x128xf32, #tpu.memory_space<vmem>>, %arg7: memref<1x128xf32, #tpu.memory_space<vmem>>, %arg8: memref<128x128xf32, #tpu.memory_space<vmem>>, %arg9: memref<1x128xf32, #tpu.memory_space<vmem>>, %arg10: memref<8x128xf32, #tpu.memory_space<vmem>>, %arg11: memref<8x128xf32, #tpu.memory_space<vmem>>, %arg12: memref<8x128xf32, #tpu.memory_space<vmem>>, %arg13: memref<8x128xf32, #tpu.memory_space<vmem>>) attributes {dimension_semantics = [#tpu.dimension_semantics<parallel>, #tpu.dimension_semantics<arbitrary>], iteration_bounds = array<i64: 1, 1>, scalar_prefetch = 0 : i64, scratch_operands = 2 : i64, tpu.core_type = #tpu.core_type<tc>, window_params = [{transform_indices = @transform_0, window_bounds = array<i64: 8, 8, 16>}, {pipeline_mode = #tpu.pipeline_mode<synchronous>, transform_indices = @transform_1, window_bounds = array<i64: 16, 512>}, {pipeline_mode = #tpu.pipeline_mode<synchronous>, transform_indices = @transform_2, window_bounds = array<i64: 128, 512>}, {pipeline_mode = #tpu.pipeline_mode<synchronous>, transform_indices = @transform_3, window_bounds = array<i64: 1, 512>}, {pipeline_mode = #tpu.pipeline_mode<synchronous>, transform_indices = @transform_4, window_bounds = array<i64: 128, 128>}, {pipeline_mode = #tpu.pipeline_mode<synchronous>, transform_indices = @transform_5, window_bounds = array<i64: 1, 128>}, {pipeline_mode = #tpu.pipeline_mode<synchronous>, transform_indices = @transform_6, window_bounds = array<i64: 128, 128>}, {pipeline_mode = #tpu.pipeline_mode<synchronous>, transform_indices = @transform_7, window_bounds = array<i64: 1, 128>}, {transform_indices = @transform_8, window_bounds = array<i64: 8, 128>}, {transform_indices = @transform_9, window_bounds = array<i64: 8, 128>}]} {
    %c0_i32 = arith.constant 0 : i32
    %0 = arith.cmpi eq, %arg1, %c0_i32 : i32
    %1 = arith.extui %0 : i1 to i32
    %c0_i32_0 = arith.constant 0 : i32
    %2 = arith.cmpi ne, %1, %c0_i32_0 : i32
    scf.if %2 {
      %cst_51 = arith.constant 0.000000e+00 : f32
      %251 = vector.broadcast %cst_51 : f32 to vector<8x128xf32>
      %c0_52 = arith.constant 0 : index
      %c0_53 = arith.constant 0 : index
      %252 = vector.load %arg12[%c0_52, %c0_53] : memref<8x128xf32, #tpu.memory_space<vmem>>, vector<8x128xf32>
      tpu.vector_store %arg12[%c0_52, %c0_53], %251 {strides = array<i32>} : memref<8x128xf32, #tpu.memory_space<vmem>>, vector<8x128xf32>,
      %cst_54 = arith.constant 0.000000e+00 : f32
      %253 = vector.broadcast %cst_54 : f32 to vector<8x128xf32>
      %c0_55 = arith.constant 0 : index
      %c0_56 = arith.constant 0 : index
      %254 = vector.load %arg13[%c0_55, %c0_56] : memref<8x128xf32, #tpu.memory_space<vmem>>, vector<8x128xf32>
      tpu.vector_store %arg13[%c0_55, %c0_56], %253 {strides = array<i32>} : memref<8x128xf32, #tpu.memory_space<vmem>>, vector<8x128xf32>,
    } else {
    }
    %c0 = arith.constant 0 : index
    %c0_1 = arith.constant 0 : index
    %c0_2 = arith.constant 0 : index
    %3 = vector.load %arg2[%c0, %c0_1, %c0_2] : memref<8x8x16xf32, #tpu.memory_space<vmem>>, vector<8x8x16xf32>
    %4 = vector.shape_cast %3 : vector<8x8x16xf32> to vector<64x16xf32>
    %c0_3 = arith.constant 0 : index
    %c0_4 = arith.constant 0 : index
    %5 = vector.load %arg3[%c0_3, %c0_4] : memref<16x512xf32, #tpu.memory_space<vmem>>, vector<16x512xf32>
    %cst = arith.constant dense<0.000000e+00> : vector<64x512xf32>
    %6 = tpu.matmul %4, %5, %cst {dimension_numbers = #tpu.dot_dimension_numbers<[1], [0], [0], [1], [0, 0, 1, 1], [], []>} : vector<64x16xf32>, vector<16x512xf32>, vector<64x512xf32> -> vector<64x512xf32>
    %c0_5 = arith.constant 0 : index
    %c0_6 = arith.constant 0 : index
    %7 = vector.load %arg5[%c0_5, %c0_6] : memref<1x512xf32, #tpu.memory_space<vmem>>, vector<1x512xf32>
    %8 = vector.broadcast %7 : vector<1x512xf32> to vector<64x512xf32>
    %9 = arith.addf %6, %8 : vector<64x512xf32>
    %10 = vector.shape_cast %9 : vector<64x512xf32> to vector<8x8x512xf32>
    %c0_7 = arith.constant 0 : index
    %c0_8 = arith.constant 0 : index
    %11 = vector.load %arg4[%c0_7, %c0_8] : memref<128x512xf32, #tpu.memory_space<vmem>>, vector<128x512xf32>
    %c0_9 = arith.constant 0 : index
    %c0_10 = arith.constant 0 : index
    %12 = vector.load %arg12[%c0_9, %c0_10] : memref<8x128xf32, #tpu.memory_space<vmem>>, vector<8x128xf32>
    %c0_11 = arith.constant 0 : index
    %c0_12 = arith.constant 0 : index
    %13 = vector.load %arg13[%c0_11, %c0_12] : memref<8x128xf32, #tpu.memory_space<vmem>>, vector<8x128xf32>
    %14 = vector.extract_strided_slice %10 {offsets = [0, 0, 0], sizes = [8, 1, 512], strides = [1, 1, 1]} : vector<8x8x512xf32> to vector<8x1x512xf32>
    %15 = vector.shape_cast %14 : vector<8x1x512xf32> to vector<8x512xf32>
    %cst_13 = arith.constant dense<0.000000e+00> : vector<8x512xf32>
    %16 = tpu.matmul %12, %11, %cst_13 {dimension_numbers = #tpu.dot_dimension_numbers<[1], [0], [0], [1], [0, 0, 1, 1], [], []>} : vector<8x128xf32>, vector<128x512xf32>, vector<8x512xf32> -> vector<8x512xf32>
    %17 = arith.addf %15, %16 : vector<8x512xf32>
    %18 = vector.extract_strided_slice %17 {offsets = [0, 0], sizes = [8, 128], strides = [1, 1]} : vector<8x512xf32> to vector<8x128xf32>
    %19 = arith.negf %18 : vector<8x128xf32>
    %20 = math.exp %19 : vector<8x128xf32>
    %cst_14 = arith.constant 1.000000e+00 : f32
    %21 = vector.broadcast %cst_14 : f32 to vector<8x128xf32>
    %22 = arith.addf %21, %20 : vector<8x128xf32>
    %23 = arith.divf %21, %22 : vector<8x128xf32>
    %24 = vector.extract_strided_slice %17 {offsets = [0, 128], sizes = [8, 128], strides = [1, 1]} : vector<8x512xf32> to vector<8x128xf32>
    %25 = arith.negf %24 : vector<8x128xf32>
    %26 = math.exp %25 : vector<8x128xf32>
    %cst_15 = arith.constant 1.000000e+00 : f32
    %27 = vector.broadcast %cst_15 : f32 to vector<8x128xf32>
    %28 = arith.addf %27, %26 : vector<8x128xf32>
    %29 = arith.divf %27, %28 : vector<8x128xf32>
    %30 = vector.extract_strided_slice %17 {offsets = [0, 256], sizes = [8, 128], strides = [1, 1]} : vector<8x512xf32> to vector<8x128xf32>
    %31 = math.tanh %30 : vector<8x128xf32>
    %32 = vector.extract_strided_slice %17 {offsets = [0, 384], sizes = [8, 128], strides = [1, 1]} : vector<8x512xf32> to vector<8x128xf32>
    %33 = arith.negf %32 : vector<8x128xf32>
    %34 = math.exp %33 : vector<8x128xf32>
    %cst_16 = arith.constant 1.000000e+00 : f32
    %35 = vector.broadcast %cst_16 : f32 to vector<8x128xf32>
    %36 = arith.addf %35, %34 : vector<8x128xf32>
    %37 = arith.divf %35, %36 : vector<8x128xf32>
    %38 = arith.mulf %29, %13 : vector<8x128xf32>
    %39 = arith.mulf %23, %31 : vector<8x128xf32>
    %40 = arith.addf %38, %39 : vector<8x128xf32>
    %41 = math.tanh %40 : vector<8x128xf32>
    %42 = arith.mulf %37, %41 : vector<8x128xf32>
    %43 = vector.extract_strided_slice %10 {offsets = [0, 1, 0], sizes = [8, 1, 512], strides = [1, 1, 1]} : vector<8x8x512xf32> to vector<8x1x512xf32>
    %44 = vector.shape_cast %43 : vector<8x1x512xf32> to vector<8x512xf32>
    %cst_17 = arith.constant dense<0.000000e+00> : vector<8x512xf32>
    %45 = tpu.matmul %42, %11, %cst_17 {dimension_numbers = #tpu.dot_dimension_numbers<[1], [0], [0], [1], [0, 0, 1, 1], [], []>} : vector<8x128xf32>, vector<128x512xf32>, vector<8x512xf32> -> vector<8x512xf32>
    %46 = arith.addf %44, %45 : vector<8x512xf32>
    %47 = vector.extract_strided_slice %46 {offsets = [0, 0], sizes = [8, 128], strides = [1, 1]} : vector<8x512xf32> to vector<8x128xf32>
    %48 = arith.negf %47 : vector<8x128xf32>
    %49 = math.exp %48 : vector<8x128xf32>
    %cst_18 = arith.constant 1.000000e+00 : f32
    %50 = vector.broadcast %cst_18 : f32 to vector<8x128xf32>
    %51 = arith.addf %50, %49 : vector<8x128xf32>
    %52 = arith.divf %50, %51 : vector<8x128xf32>
    %53 = vector.extract_strided_slice %46 {offsets = [0, 128], sizes = [8, 128], strides = [1, 1]} : vector<8x512xf32> to vector<8x128xf32>
    %54 = arith.negf %53 : vector<8x128xf32>
    %55 = math.exp %54 : vector<8x128xf32>
    %cst_19 = arith.constant 1.000000e+00 : f32
    %56 = vector.broadcast %cst_19 : f32 to vector<8x128xf32>
    %57 = arith.addf %56, %55 : vector<8x128xf32>
    %58 = arith.divf %56, %57 : vector<8x128xf32>
    %59 = vector.extract_strided_slice %46 {offsets = [0, 256], sizes = [8, 128], strides = [1, 1]} : vector<8x512xf32> to vector<8x128xf32>
    %60 = math.tanh %59 : vector<8x128xf32>
    %61 = vector.extract_strided_slice %46 {offsets = [0, 384], sizes = [8, 128], strides = [1, 1]} : vector<8x512xf32> to vector<8x128xf32>
    %62 = arith.negf %61 : vector<8x128xf32>
    %63 = math.exp %62 : vector<8x128xf32>
    %cst_20 = arith.constant 1.000000e+00 : f32
    %64 = vector.broadcast %cst_20 : f32 to vector<8x128xf32>
    %65 = arith.addf %64, %63 : vector<8x128xf32>
    %66 = arith.divf %64, %65 : vector<8x128xf32>
    %67 = arith.mulf %58, %40 : vector<8x128xf32>
    %68 = arith.mulf %52, %60 : vector<8x128xf32>
    %69 = arith.addf %67, %68 : vector<8x128xf32>
    %70 = math.tanh %69 : vector<8x128xf32>
    %71 = arith.mulf %66, %70 : vector<8x128xf32>
    %72 = vector.extract_strided_slice %10 {offsets = [0, 2, 0], sizes = [8, 1, 512], strides = [1, 1, 1]} : vector<8x8x512xf32> to vector<8x1x512xf32>
    %73 = vector.shape_cast %72 : vector<8x1x512xf32> to vector<8x512xf32>
    %cst_21 = arith.constant dense<0.000000e+00> : vector<8x512xf32>
    %74 = tpu.matmul %71, %11, %cst_21 {dimension_numbers = #tpu.dot_dimension_numbers<[1], [0], [0], [1], [0, 0, 1, 1], [], []>} : vector<8x128xf32>, vector<128x512xf32>, vector<8x512xf32> -> vector<8x512xf32>
    %75 = arith.addf %73, %74 : vector<8x512xf32>
    %76 = vector.extract_strided_slice %75 {offsets = [0, 0], sizes = [8, 128], strides = [1, 1]} : vector<8x512xf32> to vector<8x128xf32>
    %77 = arith.negf %76 : vector<8x128xf32>
    %78 = math.exp %77 : vector<8x128xf32>
    %cst_22 = arith.constant 1.000000e+00 : f32
    %79 = vector.broadcast %cst_22 : f32 to vector<8x128xf32>
    %80 = arith.addf %79, %78 : vector<8x128xf32>
    %81 = arith.divf %79, %80 : vector<8x128xf32>
    %82 = vector.extract_strided_slice %75 {offsets = [0, 128], sizes = [8, 128], strides = [1, 1]} : vector<8x512xf32> to vector<8x128xf32>
    %83 = arith.negf %82 : vector<8x128xf32>
    %84 = math.exp %83 : vector<8x128xf32>
    %cst_23 = arith.constant 1.000000e+00 : f32
    %85 = vector.broadcast %cst_23 : f32 to vector<8x128xf32>
    %86 = arith.addf %85, %84 : vector<8x128xf32>
    %87 = arith.divf %85, %86 : vector<8x128xf32>
    %88 = vector.extract_strided_slice %75 {offsets = [0, 256], sizes = [8, 128], strides = [1, 1]} : vector<8x512xf32> to vector<8x128xf32>
    %89 = math.tanh %88 : vector<8x128xf32>
    %90 = vector.extract_strided_slice %75 {offsets = [0, 384], sizes = [8, 128], strides = [1, 1]} : vector<8x512xf32> to vector<8x128xf32>
    %91 = arith.negf %90 : vector<8x128xf32>
    %92 = math.exp %91 : vector<8x128xf32>
    %cst_24 = arith.constant 1.000000e+00 : f32
    %93 = vector.broadcast %cst_24 : f32 to vector<8x128xf32>
    %94 = arith.addf %93, %92 : vector<8x128xf32>
    %95 = arith.divf %93, %94 : vector<8x128xf32>
    %96 = arith.mulf %87, %69 : vector<8x128xf32>
    %97 = arith.mulf %81, %89 : vector<8x128xf32>
    %98 = arith.addf %96, %97 : vector<8x128xf32>
    %99 = math.tanh %98 : vector<8x128xf32>
    %100 = arith.mulf %95, %99 : vector<8x128xf32>
    %101 = vector.extract_strided_slice %10 {offsets = [0, 3, 0], sizes = [8, 1, 512], strides = [1, 1, 1]} : vector<8x8x512xf32> to vector<8x1x512xf32>
    %102 = vector.shape_cast %101 : vector<8x1x512xf32> to vector<8x512xf32>
    %cst_25 = arith.constant dense<0.000000e+00> : vector<8x512xf32>
    %103 = tpu.matmul %100, %11, %cst_25 {dimension_numbers = #tpu.dot_dimension_numbers<[1], [0], [0], [1], [0, 0, 1, 1], [], []>} : vector<8x128xf32>, vector<128x512xf32>, vector<8x512xf32> -> vector<8x512xf32>
    %104 = arith.addf %102, %103 : vector<8x512xf32>
    %105 = vector.extract_strided_slice %104 {offsets = [0, 0], sizes = [8, 128], strides = [1, 1]} : vector<8x512xf32> to vector<8x128xf32>
    %106 = arith.negf %105 : vector<8x128xf32>
    %107 = math.exp %106 : vector<8x128xf32>
    %cst_26 = arith.constant 1.000000e+00 : f32
    %108 = vector.broadcast %cst_26 : f32 to vector<8x128xf32>
    %109 = arith.addf %108, %107 : vector<8x128xf32>
    %110 = arith.divf %108, %109 : vector<8x128xf32>
    %111 = vector.extract_strided_slice %104 {offsets = [0, 128], sizes = [8, 128], strides = [1, 1]} : vector<8x512xf32> to vector<8x128xf32>
    %112 = arith.negf %111 : vector<8x128xf32>
    %113 = math.exp %112 : vector<8x128xf32>
    %cst_27 = arith.constant 1.000000e+00 : f32
    %114 = vector.broadcast %cst_27 : f32 to vector<8x128xf32>
    %115 = arith.addf %114, %113 : vector<8x128xf32>
    %116 = arith.divf %114, %115 : vector<8x128xf32>
    %117 = vector.extract_strided_slice %104 {offsets = [0, 256], sizes = [8, 128], strides = [1, 1]} : vector<8x512xf32> to vector<8x128xf32>
    %118 = math.tanh %117 : vector<8x128xf32>
    %119 = vector.extract_strided_slice %104 {offsets = [0, 384], sizes = [8, 128], strides = [1, 1]} : vector<8x512xf32> to vector<8x128xf32>
    %120 = arith.negf %119 : vector<8x128xf32>
    %121 = math.exp %120 : vector<8x128xf32>
    %cst_28 = arith.constant 1.000000e+00 : f32
    %122 = vector.broadcast %cst_28 : f32 to vector<8x128xf32>
    %123 = arith.addf %122, %121 : vector<8x128xf32>
    %124 = arith.divf %122, %123 : vector<8x128xf32>
    %125 = arith.mulf %116, %98 : vector<8x128xf32>
    %126 = arith.mulf %110, %118 : vector<8x128xf32>
    %127 = arith.addf %125, %126 : vector<8x128xf32>
    %128 = math.tanh %127 : vector<8x128xf32>
    %129 = arith.mulf %124, %128 : vector<8x128xf32>
    %130 = vector.extract_strided_slice %10 {offsets = [0, 4, 0], sizes = [8, 1, 512], strides = [1, 1, 1]} : vector<8x8x512xf32> to vector<8x1x512xf32>
    %131 = vector.shape_cast %130 : vector<8x1x512xf32> to vector<8x512xf32>
    %cst_29 = arith.constant dense<0.000000e+00> : vector<8x512xf32>
    %132 = tpu.matmul %129, %11, %cst_29 {dimension_numbers = #tpu.dot_dimension_numbers<[1], [0], [0], [1], [0, 0, 1, 1], [], []>} : vector<8x128xf32>, vector<128x512xf32>, vector<8x512xf32> -> vector<8x512xf32>
    %133 = arith.addf %131, %132 : vector<8x512xf32>
    %134 = vector.extract_strided_slice %133 {offsets = [0, 0], sizes = [8, 128], strides = [1, 1]} : vector<8x512xf32> to vector<8x128xf32>
    %135 = arith.negf %134 : vector<8x128xf32>
    %136 = math.exp %135 : vector<8x128xf32>
    %cst_30 = arith.constant 1.000000e+00 : f32
    %137 = vector.broadcast %cst_30 : f32 to vector<8x128xf32>
    %138 = arith.addf %137, %136 : vector<8x128xf32>
    %139 = arith.divf %137, %138 : vector<8x128xf32>
    %140 = vector.extract_strided_slice %133 {offsets = [0, 128], sizes = [8, 128], strides = [1, 1]} : vector<8x512xf32> to vector<8x128xf32>
    %141 = arith.negf %140 : vector<8x128xf32>
    %142 = math.exp %141 : vector<8x128xf32>
    %cst_31 = arith.constant 1.000000e+00 : f32
    %143 = vector.broadcast %cst_31 : f32 to vector<8x128xf32>
    %144 = arith.addf %143, %142 : vector<8x128xf32>
    %145 = arith.divf %143, %144 : vector<8x128xf32>
    %146 = vector.extract_strided_slice %133 {offsets = [0, 256], sizes = [8, 128], strides = [1, 1]} : vector<8x512xf32> to vector<8x128xf32>
    %147 = math.tanh %146 : vector<8x128xf32>
    %148 = vector.extract_strided_slice %133 {offsets = [0, 384], sizes = [8, 128], strides = [1, 1]} : vector<8x512xf32> to vector<8x128xf32>
    %149 = arith.negf %148 : vector<8x128xf32>
    %150 = math.exp %149 : vector<8x128xf32>
    %cst_32 = arith.constant 1.000000e+00 : f32
    %151 = vector.broadcast %cst_32 : f32 to vector<8x128xf32>
    %152 = arith.addf %151, %150 : vector<8x128xf32>
    %153 = arith.divf %151, %152 : vector<8x128xf32>
    %154 = arith.mulf %145, %127 : vector<8x128xf32>
    %155 = arith.mulf %139, %147 : vector<8x128xf32>
    %156 = arith.addf %154, %155 : vector<8x128xf32>
    %157 = math.tanh %156 : vector<8x128xf32>
    %158 = arith.mulf %153, %157 : vector<8x128xf32>
    %159 = vector.extract_strided_slice %10 {offsets = [0, 5, 0], sizes = [8, 1, 512], strides = [1, 1, 1]} : vector<8x8x512xf32> to vector<8x1x512xf32>
    %160 = vector.shape_cast %159 : vector<8x1x512xf32> to vector<8x512xf32>
    %cst_33 = arith.constant dense<0.000000e+00> : vector<8x512xf32>
    %161 = tpu.matmul %158, %11, %cst_33 {dimension_numbers = #tpu.dot_dimension_numbers<[1], [0], [0], [1], [0, 0, 1, 1], [], []>} : vector<8x128xf32>, vector<128x512xf32>, vector<8x512xf32> -> vector<8x512xf32>
    %162 = arith.addf %160, %161 : vector<8x512xf32>
    %163 = vector.extract_strided_slice %162 {offsets = [0, 0], sizes = [8, 128], strides = [1, 1]} : vector<8x512xf32> to vector<8x128xf32>
    %164 = arith.negf %163 : vector<8x128xf32>
    %165 = math.exp %164 : vector<8x128xf32>
    %cst_34 = arith.constant 1.000000e+00 : f32
    %166 = vector.broadcast %cst_34 : f32 to vector<8x128xf32>
    %167 = arith.addf %166, %165 : vector<8x128xf32>
    %168 = arith.divf %166, %167 : vector<8x128xf32>
    %169 = vector.extract_strided_slice %162 {offsets = [0, 128], sizes = [8, 128], strides = [1, 1]} : vector<8x512xf32> to vector<8x128xf32>
    %170 = arith.negf %169 : vector<8x128xf32>
    %171 = math.exp %170 : vector<8x128xf32>
    %cst_35 = arith.constant 1.000000e+00 : f32
    %172 = vector.broadcast %cst_35 : f32 to vector<8x128xf32>
    %173 = arith.addf %172, %171 : vector<8x128xf32>
    %174 = arith.divf %172, %173 : vector<8x128xf32>
    %175 = vector.extract_strided_slice %162 {offsets = [0, 256], sizes = [8, 128], strides = [1, 1]} : vector<8x512xf32> to vector<8x128xf32>
    %176 = math.tanh %175 : vector<8x128xf32>
    %177 = vector.extract_strided_slice %162 {offsets = [0, 384], sizes = [8, 128], strides = [1, 1]} : vector<8x512xf32> to vector<8x128xf32>
    %178 = arith.negf %177 : vector<8x128xf32>
    %179 = math.exp %178 : vector<8x128xf32>
    %cst_36 = arith.constant 1.000000e+00 : f32
    %180 = vector.broadcast %cst_36 : f32 to vector<8x128xf32>
    %181 = arith.addf %180, %179 : vector<8x128xf32>
    %182 = arith.divf %180, %181 : vector<8x128xf32>
    %183 = arith.mulf %174, %156 : vector<8x128xf32>
    %184 = arith.mulf %168, %176 : vector<8x128xf32>
    %185 = arith.addf %183, %184 : vector<8x128xf32>
    %186 = math.tanh %185 : vector<8x128xf32>
    %187 = arith.mulf %182, %186 : vector<8x128xf32>
    %188 = vector.extract_strided_slice %10 {offsets = [0, 6, 0], sizes = [8, 1, 512], strides = [1, 1, 1]} : vector<8x8x512xf32> to vector<8x1x512xf32>
    %189 = vector.shape_cast %188 : vector<8x1x512xf32> to vector<8x512xf32>
    %cst_37 = arith.constant dense<0.000000e+00> : vector<8x512xf32>
    %190 = tpu.matmul %187, %11, %cst_37 {dimension_numbers = #tpu.dot_dimension_numbers<[1], [0], [0], [1], [0, 0, 1, 1], [], []>} : vector<8x128xf32>, vector<128x512xf32>, vector<8x512xf32> -> vector<8x512xf32>
    %191 = arith.addf %189, %190 : vector<8x512xf32>
    %192 = vector.extract_strided_slice %191 {offsets = [0, 0], sizes = [8, 128], strides = [1, 1]} : vector<8x512xf32> to vector<8x128xf32>
    %193 = arith.negf %192 : vector<8x128xf32>
    %194 = math.exp %193 : vector<8x128xf32>
    %cst_38 = arith.constant 1.000000e+00 : f32
    %195 = vector.broadcast %cst_38 : f32 to vector<8x128xf32>
    %196 = arith.addf %195, %194 : vector<8x128xf32>
    %197 = arith.divf %195, %196 : vector<8x128xf32>
    %198 = vector.extract_strided_slice %191 {offsets = [0, 128], sizes = [8, 128], strides = [1, 1]} : vector<8x512xf32> to vector<8x128xf32>
    %199 = arith.negf %198 : vector<8x128xf32>
    %200 = math.exp %199 : vector<8x128xf32>
    %cst_39 = arith.constant 1.000000e+00 : f32
    %201 = vector.broadcast %cst_39 : f32 to vector<8x128xf32>
    %202 = arith.addf %201, %200 : vector<8x128xf32>
    %203 = arith.divf %201, %202 : vector<8x128xf32>
    %204 = vector.extract_strided_slice %191 {offsets = [0, 256], sizes = [8, 128], strides = [1, 1]} : vector<8x512xf32> to vector<8x128xf32>
    %205 = math.tanh %204 : vector<8x128xf32>
    %206 = vector.extract_strided_slice %191 {offsets = [0, 384], sizes = [8, 128], strides = [1, 1]} : vector<8x512xf32> to vector<8x128xf32>
    %207 = arith.negf %206 : vector<8x128xf32>
    %208 = math.exp %207 : vector<8x128xf32>
    %cst_40 = arith.constant 1.000000e+00 : f32
    %209 = vector.broadcast %cst_40 : f32 to vector<8x128xf32>
    %210 = arith.addf %209, %208 : vector<8x128xf32>
    %211 = arith.divf %209, %210 : vector<8x128xf32>
    %212 = arith.mulf %203, %185 : vector<8x128xf32>
    %213 = arith.mulf %197, %205 : vector<8x128xf32>
    %214 = arith.addf %212, %213 : vector<8x128xf32>
    %215 = math.tanh %214 : vector<8x128xf32>
    %216 = arith.mulf %211, %215 : vector<8x128xf32>
    %217 = vector.extract_strided_slice %10 {offsets = [0, 7, 0], sizes = [8, 1, 512], strides = [1, 1, 1]} : vector<8x8x512xf32> to vector<8x1x512xf32>
    %218 = vector.shape_cast %217 : vector<8x1x512xf32> to vector<8x512xf32>
    %cst_41 = arith.constant dense<0.000000e+00> : vector<8x512xf32>
    %219 = tpu.matmul %216, %11, %cst_41 {dimension_numbers = #tpu.dot_dimension_numbers<[1], [0], [0], [1], [0, 0, 1, 1], [], []>} : vector<8x128xf32>, vector<128x512xf32>, vector<8x512xf32> -> vector<8x512xf32>
    %220 = arith.addf %218, %219 : vector<8x512xf32>
    %221 = vector.extract_strided_slice %220 {offsets = [0, 0], sizes = [8, 128], strides = [1, 1]} : vector<8x512xf32> to vector<8x128xf32>
    %222 = arith.negf %221 : vector<8x128xf32>
    %223 = math.exp %222 : vector<8x128xf32>
    %cst_42 = arith.constant 1.000000e+00 : f32
    %224 = vector.broadcast %cst_42 : f32 to vector<8x128xf32>
    %225 = arith.addf %224, %223 : vector<8x128xf32>
    %226 = arith.divf %224, %225 : vector<8x128xf32>
    %227 = vector.extract_strided_slice %220 {offsets = [0, 128], sizes = [8, 128], strides = [1, 1]} : vector<8x512xf32> to vector<8x128xf32>
    %228 = arith.negf %227 : vector<8x128xf32>
    %229 = math.exp %228 : vector<8x128xf32>
    %cst_43 = arith.constant 1.000000e+00 : f32
    %230 = vector.broadcast %cst_43 : f32 to vector<8x128xf32>
    %231 = arith.addf %230, %229 : vector<8x128xf32>
    %232 = arith.divf %230, %231 : vector<8x128xf32>
    %233 = vector.extract_strided_slice %220 {offsets = [0, 256], sizes = [8, 128], strides = [1, 1]} : vector<8x512xf32> to vector<8x128xf32>
    %234 = math.tanh %233 : vector<8x128xf32>
    %235 = vector.extract_strided_slice %220 {offsets = [0, 384], sizes = [8, 128], strides = [1, 1]} : vector<8x512xf32> to vector<8x128xf32>
    %236 = arith.negf %235 : vector<8x128xf32>
    %237 = math.exp %236 : vector<8x128xf32>
    %cst_44 = arith.constant 1.000000e+00 : f32
    %238 = vector.broadcast %cst_44 : f32 to vector<8x128xf32>
    %239 = arith.addf %238, %237 : vector<8x128xf32>
    %240 = arith.divf %238, %239 : vector<8x128xf32>
    %241 = arith.mulf %232, %214 : vector<8x128xf32>
    %242 = arith.mulf %226, %234 : vector<8x128xf32>
    %243 = arith.addf %241, %242 : vector<8x128xf32>
    %244 = math.tanh %243 : vector<8x128xf32>
    %245 = arith.mulf %240, %244 : vector<8x128xf32>
    %c0_45 = arith.constant 0 : index
    %c0_46 = arith.constant 0 : index
    %246 = vector.load %arg12[%c0_45, %c0_46] : memref<8x128xf32, #tpu.memory_space<vmem>>, vector<8x128xf32>
    tpu.vector_store %arg12[%c0_45, %c0_46], %245 {strides = array<i32>} : memref<8x128xf32, #tpu.memory_space<vmem>>, vector<8x128xf32>,
    %c0_47 = arith.constant 0 : index
    %c0_48 = arith.constant 0 : index
    %247 = vector.load %arg13[%c0_47, %c0_48] : memref<8x128xf32, #tpu.memory_space<vmem>>, vector<8x128xf32>
    tpu.vector_store %arg13[%c0_47, %c0_48], %243 {strides = array<i32>} : memref<8x128xf32, #tpu.memory_space<vmem>>, vector<8x128xf32>,
    %c0_i32_49 = arith.constant 0 : i32
    %248 = arith.cmpi eq, %arg1, %c0_i32_49 : i32
    %249 = arith.extui %248 : i1 to i32
    %c0_i32_50 = arith.constant 0 : i32
    %250 = arith.cmpi ne, %249, %c0_i32_50 : i32
    scf.if %250 {
      %c0_51 = arith.constant 0 : index
      %c0_52 = arith.constant 0 : index
      %251 = vector.load %arg6[%c0_51, %c0_52] : memref<128x128xf32, #tpu.memory_space<vmem>>, vector<128x128xf32>
      %cst_53 = arith.constant dense<0.000000e+00> : vector<8x128xf32>
      %252 = tpu.matmul %245, %251, %cst_53 {dimension_numbers = #tpu.dot_dimension_numbers<[1], [0], [0], [1], [0, 0, 1, 1], [], []>} : vector<8x128xf32>, vector<128x128xf32>, vector<8x128xf32> -> vector<8x128xf32>
      %c0_54 = arith.constant 0 : index
      %c0_55 = arith.constant 0 : index
      %253 = vector.load %arg7[%c0_54, %c0_55] : memref<1x128xf32, #tpu.memory_space<vmem>>, vector<1x128xf32>
      %254 = vector.broadcast %253 : vector<1x128xf32> to vector<8x128xf32>
      %255 = arith.addf %252, %254 : vector<8x128xf32>
      %c0_56 = arith.constant 0 : index
      %c0_57 = arith.constant 0 : index
      %256 = vector.load %arg11[%c0_56, %c0_57] : memref<8x128xf32, #tpu.memory_space<vmem>>, vector<8x128xf32>
      tpu.vector_store %arg11[%c0_56, %c0_57], %255 {strides = array<i32>} : memref<8x128xf32, #tpu.memory_space<vmem>>, vector<8x128xf32>,
      %c0_58 = arith.constant 0 : index
      %c0_59 = arith.constant 0 : index
      %257 = vector.load %arg8[%c0_58, %c0_59] : memref<128x128xf32, #tpu.memory_space<vmem>>, vector<128x128xf32>
      %cst_60 = arith.constant dense<0.000000e+00> : vector<8x128xf32>
      %258 = tpu.matmul %255, %257, %cst_60 {dimension_numbers = #tpu.dot_dimension_numbers<[1], [0], [0], [1], [0, 0, 1, 1], [], []>} : vector<8x128xf32>, vector<128x128xf32>, vector<8x128xf32> -> vector<8x128xf32>
      %c0_61 = arith.constant 0 : index
      %c0_62 = arith.constant 0 : index
      %259 = vector.load %arg9[%c0_61, %c0_62] : memref<1x128xf32, #tpu.memory_space<vmem>>, vector<1x128xf32>
      %260 = vector.broadcast %259 : vector<1x128xf32> to vector<8x128xf32>
      %261 = arith.addf %258, %260 : vector<8x128xf32>
      %c0_63 = arith.constant 0 : index
      %c0_64 = arith.constant 0 : index
      %262 = vector.load %arg10[%c0_63, %c0_64] : memref<8x128xf32, #tpu.memory_space<vmem>>, vector<8x128xf32>
      tpu.vector_store %arg10[%c0_63, %c0_64], %261 {strides = array<i32>} : memref<8x128xf32, #tpu.memory_space<vmem>>, vector<8x128xf32>,
    } else {
    }
    return
  }
  func.func @transform_0(%arg0: i32, %arg1: i32) -> (i32, i32, i32) {
    %c0_i32 = arith.constant 0 : i32
    %c0_i32_0 = arith.constant 0 : i32
    return %arg0, %arg1, %c0_i32 : i32, i32, i32
  }
  func.func @transform_1(%arg0: i32, %arg1: i32) -> (i32, i32) {
    %c0_i32 = arith.constant 0 : i32
    %c0_i32_0 = arith.constant 0 : i32
    %c0_i32_1 = arith.constant 0 : i32
    return %c0_i32, %c0_i32_0 : i32, i32
  }
  func.func @transform_2(%arg0: i32, %arg1: i32) -> (i32, i32) {
    %c0_i32 = arith.constant 0 : i32
    %c0_i32_0 = arith.constant 0 : i32
    %c0_i32_1 = arith.constant 0 : i32
    return %c0_i32, %c0_i32_0 : i32, i32
  }
  func.func @transform_3(%arg0: i32, %arg1: i32) -> (i32, i32) {
    %c0_i32 = arith.constant 0 : i32
    %c0_i32_0 = arith.constant 0 : i32
    %c0_i32_1 = arith.constant 0 : i32
    return %c0_i32, %c0_i32_0 : i32, i32
  }
  func.func @transform_4(%arg0: i32, %arg1: i32) -> (i32, i32) {
    %c0_i32 = arith.constant 0 : i32
    %c0_i32_0 = arith.constant 0 : i32
    %c0_i32_1 = arith.constant 0 : i32
    return %c0_i32, %c0_i32_0 : i32, i32
  }
  func.func @transform_5(%arg0: i32, %arg1: i32) -> (i32, i32) {
    %c0_i32 = arith.constant 0 : i32
    %c0_i32_0 = arith.constant 0 : i32
    %c0_i32_1 = arith.constant 0 : i32
    return %c0_i32, %c0_i32_0 : i32, i32
  }
  func.func @transform_6(%arg0: i32, %arg1: i32) -> (i32, i32) {
    %c0_i32 = arith.constant 0 : i32
    %c0_i32_0 = arith.constant 0 : i32
    %c0_i32_1 = arith.constant 0 : i32
    return %c0_i32, %c0_i32_0 : i32, i32
  }
  func.func @transform_7(%arg0: i32, %arg1: i32) -> (i32, i32) {
    %c0_i32 = arith.constant 0 : i32
    %c0_i32_0 = arith.constant 0 : i32
    %c0_i32_1 = arith.constant 0 : i32
    return %c0_i32, %c0_i32_0 : i32, i32
  }
  func.func @transform_8(%arg0: i32, %arg1: i32) -> (i32, i32) {
    %c0_i32 = arith.constant 0 : i32
    %c0_i32_0 = arith.constant 0 : i32
    return %arg0, %c0_i32 : i32, i32
  }
  func.func @transform_9(%arg0: i32, %arg1: i32) -> (i32, i32) {
    %c0_i32 = arith.constant 0 : i32
    %c0_i32_0 = arith.constant 0 : i32
    return %arg0, %c0_i32 : i32, i32
  }
}

</mosaic_0001>

<llo_original>
// kernel: tpu_custom_call.1
$region0: #{tpu_custom_call.1}
  #allocation0 [shape = 'u32[]', space=smem, size = 0x4, offset = 0x4, fixed_abs, tag = 'smem constant byte address 0x4 - core index']
  #allocation1 [shape = 'u32[72,128]{1,0:T(1,128)}', space=vmem, size = 0x9000, scoped, tag = 'internal scratch']
  #allocation2 [shape = 'f32[8,128]{1,0:T(8,128)}', space=vmem, size = 0x1000, scoped, tag = 'scratch operand']
  #allocation3 [shape = 'f32[8,128]{1,0:T(8,128)}', space=vmem, size = 0x1000, scoped, tag = 'scratch operand']
  %s0 = inlined_call_operand.hbm [shape: f32[8,8,16], index: 0, kind: input, shape index: {}]
  %s1 = inlined_call_operand.hbm [shape: f32[16,512], index: 1, kind: input, shape index: {}]
  %s2 = inlined_call_operand.hbm [shape: f32[128,512], index: 2, kind: input, shape index: {}]
  %s3 = inlined_call_operand.hbm [shape: f32[1,512], index: 3, kind: input, shape index: {}]
  %s4 = inlined_call_operand.hbm [shape: f32[128,128], index: 4, kind: input, shape index: {}]
  %s5 = inlined_call_operand.vmem [shape: f32[1,128], index: 5, kind: input, shape index: {}]
  %s6 = inlined_call_operand.hbm [shape: f32[128,128], index: 6, kind: input, shape index: {}]
  %s7 = inlined_call_operand.vmem [shape: f32[1,128], index: 7, kind: input, shape index: {}]
  %s8 = inlined_call_operand.hbm [shape: f32[8,128], index: 8, kind: output, shape index: {0}]
  %s9 = inlined_call_operand.hbm [shape: f32[8,128], index: 9, kind: output, shape index: {1}]
  %10 = xla_tuple %s8, %s9
  %s11 = sld [smem:[#allocation0]]
  $region82: #{tpu_custom_call.1} parent=0
    _
  %s13 = ssub.s32 1, %s11
  %s14 = scalar_select 0, %s13, %s11
  $region1: #{tpu_custom_call.1} parent=0
    #allocation4 [shape = 'u8[32768]{0}', space=vmem, size = 0x8000, scoped, tag = 'input window, operand 0, single buffered']
    #allocation5 [shape = 's32[1]{0}', space=sflag, size = 0x4, scoped, tag = 'scoped memory for tpu_custom_call.1']
    #allocation6 [shape = 's32[1]{0}', space=sflag, size = 0x4, scoped, tag = 'scoped memory for tpu_custom_call.1']
    #allocation7 [shape = 'u8[32768]{0}', space=vmem, size = 0x8000, scoped, tag = 'input window, operand 1, single buffered']
    #allocation8 [shape = 's32[1]{0}', space=sflag, size = 0x4, scoped, tag = 'scoped memory for tpu_custom_call.1']
    #allocation9 [shape = 'u8[262144]{0}', space=vmem, size = 0x40000, scoped, tag = 'input window, operand 2, single buffered']
    #allocation10 [shape = 'u8[2048]{0}', space=vmem, size = 0x800, scoped, tag = 'input window, operand 3, single buffered']
    #allocation11 [shape = 's32[1]{0}', space=sflag, size = 0x4, scoped, tag = 'scoped memory for tpu_custom_call.1']
    #allocation12 [shape = 'u8[65536]{0}', space=vmem, size = 0x10000, scoped, tag = 'input window, operand 4, single buffered']
    #allocation13 [shape = 'u8[65536]{0}', space=vmem, size = 0x10000, scoped, tag = 'input window, operand 6, single buffered']
    #allocation14 [shape = 's32[1]{0}', space=sflag, size = 0x4, scoped, tag = 'scoped memory for tpu_custom_call.1']
    #allocation15 [shape = 'u8[4096]{0}', space=vmem, size = 0x1000, scoped, tag = 'output window, operand 0, single buffered']
    #allocation16 [shape = 'u8[4096]{0}', space=vmem, size = 0x1000, scoped, tag = 'output window, operand 1, single buffered']
    #allocation17 [shape = 's32[1]{0}', space=sflag, size = 0x4, scoped, tag = 'scoped memory for tpu_custom_call.1']
    %15 = vsyncpa [#allocation5], 0
    %16 = vsyncpa [#allocation8], 0
    %17 = vsyncpa [#allocation11], 0
    %18 = vsyncpa [#allocation14], 0
    %19 = vsyncpa [#allocation6], 0
    %20 = vsyncpa [#allocation17], 0
    // Predicated region
    $region2: #{tpu_custom_call.1} parent=1 // pred_check
      _
    $region3: #{tpu_custom_call.1} parent=1 // pred_check_branch
      %22 = sbr.rel (0) target = $region5
    $region4: #{tpu_custom_call.1} parent=1 // pred_region
      %24 = vsyncadd [#allocation5], 0
      %s25 = sshll.u32 %s0, 4
      %s26 = int_to_ptr.hbm [resolvable:$true] %s25
      %s27 = sshll.u32 [#allocation4], 4
      %s28 = int_to_ptr.vmem [resolvable:$true] %s27
      %33 = dma.hbm_to_vmem [thread:$0]  %s26, 1024, %s28, [#allocation5], 128, 128, 8
    $region5: #{tpu_custom_call.1} parent=1 // pred_fallthru
      _
    // Predicated region
    $region6: #{tpu_custom_call.1} parent=1 // pred_check
      _
    $region7: #{tpu_custom_call.1} parent=1 // pred_check_branch
      %35 = sbr.rel (0) target = $region9
    $region8: #{tpu_custom_call.1} parent=1 // pred_region
      %37 = vsyncadd [#allocation8], 0
      %s38 = sshll.u32 %s1, 4
      %s39 = int_to_ptr.hbm [resolvable:$true] %s38
      %s40 = sshll.u32 [#allocation7], 4
      %s41 = int_to_ptr.vmem [resolvable:$true] %s40
      %46 = dma.hbm_to_vmem [thread:$0]  %s39, 1024, %s41, [#allocation8], 512, 512, 32
    $region9: #{tpu_custom_call.1} parent=1 // pred_fallthru
      _
    // Predicated region
    $region10: #{tpu_custom_call.1} parent=1 // pred_check
      _
    $region11: #{tpu_custom_call.1} parent=1 // pred_check_branch
      %48 = sbr.rel (0) target = $region13
    $region12: #{tpu_custom_call.1} parent=1 // pred_region
      %50 = vsyncadd [#allocation8], 0
      %s51 = sshll.u32 %s2, 4
      %s52 = int_to_ptr.hbm [resolvable:$true] %s51
      %s53 = sshll.u32 [#allocation9], 4
      %s54 = int_to_ptr.vmem [resolvable:$true] %s53
      %59 = dma.hbm_to_vmem [thread:$0]  %s52, 8192, %s54, [#allocation8], 512, 512, 32
    $region13: #{tpu_custom_call.1} parent=1 // pred_fallthru
      _
    // Predicated region
    $region14: #{tpu_custom_call.1} parent=1 // pred_check
      _
    $region15: #{tpu_custom_call.1} parent=1 // pred_check_branch
      %61 = sbr.rel (0) target = $region17
    $region16: #{tpu_custom_call.1} parent=1 // pred_region
      %63 = vsyncadd [#allocation11], 0
      %s65 = sshll.u32 %s3, 4
      %s66 = int_to_ptr.hbm [resolvable:$true] %s65
      %s67 = sshll.u32 [#allocation10], 4
      %s68 = int_to_ptr.vmem [resolvable:$true] %s67
      %70 = dma.hbm_to_vmem [thread:$0]  %s66, 64, %s68, [#allocation11]
    $region17: #{tpu_custom_call.1} parent=1 // pred_fallthru
      _
    // Predicated region
    $region18: #{tpu_custom_call.1} parent=1 // pred_check
      _
    $region19: #{tpu_custom_call.1} parent=1 // pred_check_branch
      %72 = sbr.rel (0) target = $region21
    $region20: #{tpu_custom_call.1} parent=1 // pred_region
      %74 = vsyncadd [#allocation11], 0
      %s75 = sshll.u32 %s4, 4
      %s76 = int_to_ptr.hbm [resolvable:$true] %s75
      %s77 = sshll.u32 [#allocation12], 4
      %s78 = int_to_ptr.vmem [resolvable:$true] %s77
      %83 = dma.hbm_to_vmem [thread:$0]  %s76, 2048, %s78, [#allocation11], 128, 128, 8
    $region21: #{tpu_custom_call.1} parent=1 // pred_fallthru
      _
    // Predicated region
    $region22: #{tpu_custom_call.1} parent=1 // pred_check
      _
    $region23: #{tpu_custom_call.1} parent=1 // pred_check_branch
      %85 = sbr.rel (0) target = $region25
    $region24: #{tpu_custom_call.1} parent=1 // pred_region
      _
    $region25: #{tpu_custom_call.1} parent=1 // pred_fallthru
      _
    // Predicated region
    $region26: #{tpu_custom_call.1} parent=1 // pred_check
      _
    $region27: #{tpu_custom_call.1} parent=1 // pred_check_branch
      %87 = sbr.rel (0) target = $region29
    $region28: #{tpu_custom_call.1} parent=1 // pred_region
      %89 = vsyncadd [#allocation14], 0
      %s90 = sshll.u32 %s6, 4
      %s91 = int_to_ptr.hbm [resolvable:$true] %s90
      %s92 = sshll.u32 [#allocation13], 4
      %s93 = int_to_ptr.vmem [resolvable:$true] %s92
      %98 = dma.hbm_to_vmem [thread:$0]  %s91, 2048, %s93, [#allocation14], 128, 128, 8
    $region29: #{tpu_custom_call.1} parent=1 // pred_fallthru
      _
    // Predicated region
    $region30: #{tpu_custom_call.1} parent=1 // pred_check
      _
    $region31: #{tpu_custom_call.1} parent=1 // pred_check_branch
      %100 = sbr.rel (0) target = $region33
    $region32: #{tpu_custom_call.1} parent=1 // pred_region
      _
    $region33: #{tpu_custom_call.1} parent=1 // pred_fallthru
      _
    // Predicated region
    $region34: #{tpu_custom_call.1} parent=1 // pred_check
      _
    $region35: #{tpu_custom_call.1} parent=1 // pred_check_branch
      %102 = sbr.rel (0) target = $region37
    $region36: #{tpu_custom_call.1} parent=1 // pred_region
      %104 = dma.done [#allocation5], 1024
    $region37: #{tpu_custom_call.1} parent=1 // pred_fallthru
      _
    // Predicated region
    $region38: #{tpu_custom_call.1} parent=1 // pred_check
      _
    $region39: #{tpu_custom_call.1} parent=1 // pred_check_branch
      %106 = sbr.rel (0) target = $region41
    $region40: #{tpu_custom_call.1} parent=1 // pred_region
      %108 = dma.done [#allocation8], 1024
    $region41: #{tpu_custom_call.1} parent=1 // pred_fallthru
      _
    // Predicated region
    $region42: #{tpu_custom_call.1} parent=1 // pred_check
      _
    $region43: #{tpu_custom_call.1} parent=1 // pred_check_branch
      %110 = sbr.rel (0) target = $region45
    $region44: #{tpu_custom_call.1} parent=1 // pred_region
      %112 = dma.done [#allocation8], 8192
    $region45: #{tpu_custom_call.1} parent=1 // pred_fallthru
      _
    // Predicated region
    $region46: #{tpu_custom_call.1} parent=1 // pred_check
      _
    $region47: #{tpu_custom_call.1} parent=1 // pred_check_branch
      %114 = sbr.rel (0) target = $region49
    $region48: #{tpu_custom_call.1} parent=1 // pred_region
      %116 = dma.done [#allocation11], 64
    $region49: #{tpu_custom_call.1} parent=1 // pred_fallthru
      _
    // Predicated region
    $region50: #{tpu_custom_call.1} parent=1 // pred_check
      _
    $region51: #{tpu_custom_call.1} parent=1 // pred_check_branch
      %118 = sbr.rel (0) target = $region53
    $region52: #{tpu_custom_call.1} parent=1 // pred_region
      %120 = dma.done [#allocation11], 2048
    $region53: #{tpu_custom_call.1} parent=1 // pred_fallthru
      _
    // Predicated region
    $region54: #{tpu_custom_call.1} parent=1 // pred_check
      _
    $region55: #{tpu_custom_call.1} parent=1 // pred_check_branch
      %122 = sbr.rel (0) target = $region57
    $region56: #{tpu_custom_call.1} parent=1 // pred_region
      %124 = dma.done [#allocation14], 2048
    $region57: #{tpu_custom_call.1} parent=1 // pred_fallthru
      _
    %p125 = scmp.eq.s32.totalorder 0, 0
    // Predicated region
    $region58: #{tpu_custom_call.1} parent=1 // pred_check
      %p126 = pneg %p125
    $region59: #{tpu_custom_call.1} parent=1 // pred_check_branch
      %128 = sbr.rel (%p126) target = $region61
    $region60: #{tpu_custom_call.1} parent=1 // pred_region
      %129 = vst [vmem:[#allocation2] sm:$0xff] 0.0
      %130 = vst [vmem:[#allocation3] sm:$0xff] 0.0
    $region61: #{tpu_custom_call.1} parent=1 // pred_fallthru
      _
    %v131 = vld [vmem:[#allocation4] sm:$0xff]
    %v132 = vld [vmem:[#allocation4 + $0x8] sm:$0xff]
    %v133 = vld [vmem:[#allocation4 + $0x10] sm:$0xff]
    %v134 = vld [vmem:[#allocation4 + $0x18] sm:$0xff]
    %v135 = vld [vmem:[#allocation4 + $0x20] sm:$0xff]
    %v136 = vld [vmem:[#allocation4 + $0x28] sm:$0xff]
    %v137 = vld [vmem:[#allocation4 + $0x30] sm:$0xff]
    %v138 = vld [vmem:[#allocation4 + $0x38] sm:$0xff]
    %v139 = vld [vmem:[#allocation7] sm:$0xff]
    %v140 = vld [vmem:[#allocation7 + $0x8] sm:$0xff]
    %v141 = vld [vmem:[#allocation7 + $0x10] sm:$0xff]
    %v142 = vld [vmem:[#allocation7 + $0x18] sm:$0xff]
    %v143 = vld [vmem:[#allocation7 + $0x20] sm:$0xff]
    %v144 = vld [vmem:[#allocation7 + $0x28] sm:$0xff]
    %v145 = vld [vmem:[#allocation7 + $0x30] sm:$0xff]
    %v146 = vld [vmem:[#allocation7 + $0x38] sm:$0xff]
    %v147 = vld [vmem:[#allocation10] sm:$0xf]
    %v149 = vperm.slane %v147, 0
    %v150 = vperm.slane %v147, 1
    %v151 = vperm.slane %v147, 2
    %v152 = vperm.slane %v147, 3
    %vm157 = vcmask 130048
    %v159 = vsel %vm157, %v131, 0
    %v162 = vsel %vm157, %v132, 0
    %v165 = vsel %vm157, %v133, 0
    %v168 = vsel %vm157, %v134, 0
    %v171 = vsel %vm157, %v135, 0
    %v174 = vsel %vm157, %v136, 0
    %v177 = vsel %vm157, %v137, 0
    %v180 = vsel %vm157, %v138, 0
    %182 = vmatpush.msra.mxu0 0.0
    %183 = vmatpush.msra.mxu0 0.0
    %184 = vmatpush.msra.mxu0 0.0
    %185 = vmatpush.msra.mxu0 0.0
    %186 = vmatpush.msra.mxu0 0.0
    %187 = vmatpush.msra.mxu0 0.0
    %188 = vmatpush.msra.mxu0 0.0
    %189 = vmatpush.msra.mxu0 0.0
    %190 = vmatpush.msra.mxu0 0.0
    %191 = vmatpush.msra.mxu0 0.0
    %192 = vmatpush.msra.mxu0 0.0
    %193 = vmatpush.msra.mxu0 0.0
    %194 = vmatpush.msra.mxu0 0.0
    %195 = vmatpush.msra.mxu0 0.0
    %196 = vmatpush.msra.mxu0 %v143
    %197 = vmatpush.msra.mxu0 %v139
    %198 = vmatmul.f32.gmra.mxu0 %v159
    %v199 = vpop.f32.mrf.mxu0
    %v200 = vadd.f32 %v149, %v199
    %201 = vmatmul.f32.gmra.mxu0 %v162
    %v202 = vpop.f32.mrf.mxu0
    %v203 = vadd.f32 %v149, %v202
    %204 = vmatmul.f32.gmra.mxu0 %v165
    %v205 = vpop.f32.mrf.mxu0
    %v206 = vadd.f32 %v149, %v205
    %207 = vmatmul.f32.gmra.mxu0 %v168
    %v208 = vpop.f32.mrf.mxu0
    %v209 = vadd.f32 %v149, %v208
    %210 = vmatmul.f32.gmra.mxu0 %v171
    %v211 = vpop.f32.mrf.mxu0
    %v212 = vadd.f32 %v149, %v211
    %213 = vmatmul.f32.gmra.mxu0 %v174
    %v214 = vpop.f32.mrf.mxu0
    %v215 = vadd.f32 %v149, %v214
    %216 = vmatmul.f32.gmra.mxu0 %v177
    %v217 = vpop.f32.mrf.mxu0
    %v218 = vadd.f32 %v149, %v217
    %219 = vmatmul.f32.gmra.mxu0 %v180
    %v220 = vpop.f32.mrf.mxu0
    %v221 = vadd.f32 %v149, %v220
    %222 = vdwg.mxu0
    %223 = vmatpush.msra.mxu0 0.0
    %224 = vmatpush.msra.mxu0 0.0
    %225 = vmatpush.msra.mxu0 0.0
    %226 = vmatpush.msra.mxu0 0.0
    %227 = vmatpush.msra.mxu0 0.0
    %228 = vmatpush.msra.mxu0 0.0
    %229 = vmatpush.msra.mxu0 0.0
    %230 = vmatpush.msra.mxu0 0.0
    %231 = vmatpush.msra.mxu0 0.0
    %232 = vmatpush.msra.mxu0 0.0
    %233 = vmatpush.msra.mxu0 0.0
    %234 = vmatpush.msra.mxu0 0.0
    %235 = vmatpush.msra.mxu0 0.0
    %236 = vmatpush.msra.mxu0 0.0
    %237 = vmatpush.msra.mxu0 %v144
    %238 = vmatpush.msra.mxu0 %v140
    %239 = vmatmul.f32.gmra.mxu0 %v159
    %v240 = vpop.f32.mrf.mxu0
    %v241 = vadd.f32 %v150, %v240
    %242 = vmatmul.f32.gmra.mxu0 %v162
    %v243 = vpop.f32.mrf.mxu0
    %v244 = vadd.f32 %v150, %v243
    %245 = vmatmul.f32.gmra.mxu0 %v165
    %v246 = vpop.f32.mrf.mxu0
    %v247 = vadd.f32 %v150, %v246
    %248 = vmatmul.f32.gmra.mxu0 %v168
    %v249 = vpop.f32.mrf.mxu0
    %v250 = vadd.f32 %v150, %v249
    %251 = vmatmul.f32.gmra.mxu0 %v171
    %v252 = vpop.f32.mrf.mxu0
    %v253 = vadd.f32 %v150, %v252
    %254 = vmatmul.f32.gmra.mxu0 %v174
    %v255 = vpop.f32.mrf.mxu0
    %v256 = vadd.f32 %v150, %v255
    %257 = vmatmul.f32.gmra.mxu0 %v177
    %v258 = vpop.f32.mrf.mxu0
    %v259 = vadd.f32 %v150, %v258
    %260 = vmatmul.f32.gmra.mxu0 %v180
    %v261 = vpop.f32.mrf.mxu0
    %v262 = vadd.f32 %v150, %v261
    %263 = vdwg.mxu0
    %264 = vmatpush.msra.mxu0 0.0
    %265 = vmatpush.msra.mxu0 0.0
    %266 = vmatpush.msra.mxu0 0.0
    %267 = vmatpush.msra.mxu0 0.0
    %268 = vmatpush.msra.mxu0 0.0
    %269 = vmatpush.msra.mxu0 0.0
    %270 = vmatpush.msra.mxu0 0.0
    %271 = vmatpush.msra.mxu0 0.0
    %272 = vmatpush.msra.mxu0 0.0
    %273 = vmatpush.msra.mxu0 0.0
    %274 = vmatpush.msra.mxu0 0.0
    %275 = vmatpush.msra.mxu0 0.0
    %276 = vmatpush.msra.mxu0 0.0
    %277 = vmatpush.msra.mxu0 0.0
    %278 = vmatpush.msra.mxu0 %v145
    %279 = vmatpush.msra.mxu0 %v141
    %280 = vmatmul.f32.gmra.mxu0 %v159
    %v281 = vpop.f32.mrf.mxu0
    %v282 = vadd.f32 %v151, %v281
    %283 = vmatmul.f32.gmra.mxu0 %v162
    %v284 = vpop.f32.mrf.mxu0
    %v285 = vadd.f32 %v151, %v284
    %286 = vmatmul.f32.gmra.mxu0 %v165
    %v287 = vpop.f32.mrf.mxu0
    %v288 = vadd.f32 %v151, %v287
    %289 = vmatmul.f32.gmra.mxu0 %v168
    %v290 = vpop.f32.mrf.mxu0
    %v291 = vadd.f32 %v151, %v290
    %292 = vmatmul.f32.gmra.mxu0 %v171
    %v293 = vpop.f32.mrf.mxu0
    %v294 = vadd.f32 %v151, %v293
    %295 = vmatmul.f32.gmra.mxu0 %v174
    %v296 = vpop.f32.mrf.mxu0
    %v297 = vadd.f32 %v151, %v296
    %298 = vmatmul.f32.gmra.mxu0 %v177
    %v299 = vpop.f32.mrf.mxu0
    %v300 = vadd.f32 %v151, %v299
    %301 = vmatmul.f32.gmra.mxu0 %v180
    %v302 = vpop.f32.mrf.mxu0
    %v303 = vadd.f32 %v151, %v302
    %304 = vdwg.mxu0
    %305 = vmatpush.msra.mxu0 0.0
    %306 = vmatpush.msra.mxu0 0.0
    %307 = vmatpush.msra.mxu0 0.0
    %308 = vmatpush.msra.mxu0 0.0
    %309 = vmatpush.msra.mxu0 0.0
    %310 = vmatpush.msra.mxu0 0.0
    %311 = vmatpush.msra.mxu0 0.0
    %312 = vmatpush.msra.mxu0 0.0
    %313 = vmatpush.msra.mxu0 0.0
    %314 = vmatpush.msra.mxu0 0.0
    %315 = vmatpush.msra.mxu0 0.0
    %316 = vmatpush.msra.mxu0 0.0
    %317 = vmatpush.msra.mxu0 0.0
    %318 = vmatpush.msra.mxu0 0.0
    %319 = vmatpush.msra.mxu0 %v146
    %320 = vmatpush.msra.mxu0 %v142
    %321 = vmatmul.f32.gmra.mxu0 %v159
    %v322 = vpop.f32.mrf.mxu0
    %v323 = vadd.f32 %v152, %v322
    %324 = vmatmul.f32.gmra.mxu0 %v162
    %v325 = vpop.f32.mrf.mxu0
    %v326 = vadd.f32 %v152, %v325
    %327 = vmatmul.f32.gmra.mxu0 %v165
    %v328 = vpop.f32.mrf.mxu0
    %v329 = vadd.f32 %v152, %v328
    %330 = vmatmul.f32.gmra.mxu0 %v168
    %v331 = vpop.f32.mrf.mxu0
    %v332 = vadd.f32 %v152, %v331
    %333 = vmatmul.f32.gmra.mxu0 %v171
    %v334 = vpop.f32.mrf.mxu0
    %v335 = vadd.f32 %v152, %v334
    %336 = vmatmul.f32.gmra.mxu0 %v174
    %v337 = vpop.f32.mrf.mxu0
    %v338 = vadd.f32 %v152, %v337
    %339 = vmatmul.f32.gmra.mxu0 %v177
    %v340 = vpop.f32.mrf.mxu0
    %v341 = vadd.f32 %v152, %v340
    %342 = vmatmul.f32.gmra.mxu0 %v180
    %v343 = vpop.f32.mrf.mxu0
    %v344 = vadd.f32 %v152, %v343
    %345 = vdwg.mxu0
    %v346 = vld [vmem:[#allocation9] sm:$0xff]
    %v347 = vld [vmem:[#allocation9 + $0x8] sm:$0xff]
    %v348 = vld [vmem:[#allocation9 + $0x10] sm:$0xff]
    %v349 = vld [vmem:[#allocation9 + $0x18] sm:$0xff]
    %v350 = vld [vmem:[#allocation9 + $0x20] sm:$0xff]
    %v351 = vld [vmem:[#allocation9 + $0x28] sm:$0xff]
    %v352 = vld [vmem:[#allocation9 + $0x30] sm:$0xff]
    %v353 = vld [vmem:[#allocation9 + $0x38] sm:$0xff]
    %v354 = vld [vmem:[#allocation9 + $0x40] sm:$0xff]
    %v355 = vld [vmem:[#allocation9 + $0x48] sm:$0xff]
    %v356 = vld [vmem:[#allocation9 + $0x50] sm:$0xff]
    %v357 = vld [vmem:[#allocation9 + $0x58] sm:$0xff]
    %v358 = vld [vmem:[#allocation9 + $0x60] sm:$0xff]
    %v359 = vld [vmem:[#allocation9 + $0x68] sm:$0xff]
    %v360 = vld [vmem:[#allocation9 + $0x70] sm:$0xff]
    %v361 = vld [vmem:[#allocation9 + $0x78] sm:$0xff]
    %v362 = vld [vmem:[#allocation9 + $0x80] sm:$0xff]
    %v363 = vld [vmem:[#allocation9 + $0x88] sm:$0xff]
    %v364 = vld [vmem:[#allocation9 + $0x90] sm:$0xff]
    %v365 = vld [vmem:[#allocation9 + $0x98] sm:$0xff]
    %v366 = vld [vmem:[#allocation9 + $0xa0] sm:$0xff]
    %v367 = vld [vmem:[#allocation9 + $0xa8] sm:$0xff]
    %v368 = vld [vmem:[#allocation9 + $0xb0] sm:$0xff]
    %v369 = vld [vmem:[#allocation9 + $0xb8] sm:$0xff]
    %v370 = vld [vmem:[#allocation9 + $0xc0] sm:$0xff]
    %v371 = vld [vmem:[#allocation9 + $0xc8] sm:$0xff]
    %v372 = vld [vmem:[#allocation9 + $0xd0] sm:$0xff]
    %v373 = vld [vmem:[#allocation9 + $0xd8] sm:$0xff]
    %v374 = vld [vmem:[#allocation9 + $0xe0] sm:$0xff]
    %v375 = vld [vmem:[#allocation9 + $0xe8] sm:$0xff]
    %v376 = vld [vmem:[#allocation9 + $0xf0] sm:$0xff]
    %v377 = vld [vmem:[#allocation9 + $0xf8] sm:$0xff]
    %v378 = vld [vmem:[#allocation9 + $0x100] sm:$0xff]
    %v379 = vld [vmem:[#allocation9 + $0x108] sm:$0xff]
    %v380 = vld [vmem:[#allocation9 + $0x110] sm:$0xff]
    %v381 = vld [vmem:[#allocation9 + $0x118] sm:$0xff]
    %v382 = vld [vmem:[#allocation9 + $0x120] sm:$0xff]
    %v383 = vld [vmem:[#allocation9 + $0x128] sm:$0xff]
    %v384 = vld [vmem:[#allocation9 + $0x130] sm:$0xff]
    %v385 = vld [vmem:[#allocation9 + $0x138] sm:$0xff]
    %v386 = vld [vmem:[#allocation9 + $0x140] sm:$0xff]
    %v387 = vld [vmem:[#allocation9 + $0x148] sm:$0xff]
    %v388 = vld [vmem:[#allocation9 + $0x150] sm:$0xff]
    %v389 = vld [vmem:[#allocation9 + $0x158] sm:$0xff]
    %v390 = vld [vmem:[#allocation9 + $0x160] sm:$0xff]
    %v391 = vld [vmem:[#allocation9 + $0x168] sm:$0xff]
    %v392 = vld [vmem:[#allocation9 + $0x170] sm:$0xff]
    %v393 = vld [vmem:[#allocation9 + $0x178] sm:$0xff]
    %v394 = vld [vmem:[#allocation9 + $0x180] sm:$0xff]
    %v395 = vld [vmem:[#allocation9 + $0x188] sm:$0xff]
    %v396 = vld [vmem:[#allocation9 + $0x190] sm:$0xff]
    %v397 = vld [vmem:[#allocation9 + $0x198] sm:$0xff]
    %v398 = vld [vmem:[#allocation9 + $0x1a0] sm:$0xff]
    %v399 = vld [vmem:[#allocation9 + $0x1a8] sm:$0xff]
    %v400 = vld [vmem:[#allocation9 + $0x1b0] sm:$0xff]
    %v401 = vld [vmem:[#allocation9 + $0x1b8] sm:$0xff]
    %v402 = vld [vmem:[#allocation9 + $0x1c0] sm:$0xff]
    %v403 = vld [vmem:[#allocation9 + $0x1c8] sm:$0xff]
    %v404 = vld [vmem:[#allocation9 + $0x1d0] sm:$0xff]
    %v405 = vld [vmem:[#allocation9 + $0x1d8] sm:$0xff]
    %v406 = vld [vmem:[#allocation9 + $0x1e0] sm:$0xff]
    %v407 = vld [vmem:[#allocation9 + $0x1e8] sm:$0xff]
    %v408 = vld [vmem:[#allocation9 + $0x1f0] sm:$0xff]
    %v409 = vld [vmem:[#allocation9 + $0x1f8] sm:$0xff]
    %v410 = vld [vmem:[#allocation2] sm:$0xff]
    %v411 = vld [vmem:[#allocation3] sm:$0xff]
    %412 = vmatpush.msra.mxu0 %v406
    %413 = vmatpush.msra.mxu0 %v402
    %414 = vmatpush.msra.mxu0 %v398
    %415 = vmatpush.msra.mxu0 %v394
    %416 = vmatpush.msra.mxu0 %v390
    %417 = vmatpush.msra.mxu0 %v386
    %418 = vmatpush.msra.mxu0 %v382
    %419 = vmatpush.msra.mxu0 %v378
    %420 = vmatpush.msra.mxu0 %v374
    %421 = vmatpush.msra.mxu0 %v370
    %422 = vmatpush.msra.mxu0 %v366
    %423 = vmatpush.msra.mxu0 %v362
    %424 = vmatpush.msra.mxu0 %v358
    %425 = vmatpush.msra.mxu0 %v354
    %426 = vmatpush.msra.mxu0 %v350
    %427 = vmatpush.msra.mxu0 %v346
    %428 = vmatmul.f32.gmra.mxu0 %v410
    %v429 = vpop.f32.mrf.mxu0
    %v430 = vadd.f32 0.0, %v429
    %431 = vdwg.mxu0
    %432 = vmatpush.msra.mxu0 %v407
    %433 = vmatpush.msra.mxu0 %v403
    %434 = vmatpush.msra.mxu0 %v399
    %435 = vmatpush.msra.mxu0 %v395
    %436 = vmatpush.msra.mxu0 %v391
    %437 = vmatpush.msra.mxu0 %v387
    %438 = vmatpush.msra.mxu0 %v383
    %439 = vmatpush.msra.mxu0 %v379
    %440 = vmatpush.msra.mxu0 %v375
    %441 = vmatpush.msra.mxu0 %v371
    %442 = vmatpush.msra.mxu0 %v367
    %443 = vmatpush.msra.mxu0 %v363
    %444 = vmatpush.msra.mxu0 %v359
    %445 = vmatpush.msra.mxu0 %v355
    %446 = vmatpush.msra.mxu0 %v351
    %447 = vmatpush.msra.mxu0 %v347
    %448 = vmatmul.f32.gmra.mxu0 %v410
    %v449 = vpop.f32.mrf.mxu0
    %v450 = vadd.f32 0.0, %v449
    %451 = vdwg.mxu0
    %452 = vmatpush.msra.mxu0 %v408
    %453 = vmatpush.msra.mxu0 %v404
    %454 = vmatpush.msra.mxu0 %v400
    %455 = vmatpush.msra.mxu0 %v396
    %456 = vmatpush.msra.mxu0 %v392
    %457 = vmatpush.msra.mxu0 %v388
    %458 = vmatpush.msra.mxu0 %v384
    %459 = vmatpush.msra.mxu0 %v380
    %460 = vmatpush.msra.mxu0 %v376
    %461 = vmatpush.msra.mxu0 %v372
    %462 = vmatpush.msra.mxu0 %v368
    %463 = vmatpush.msra.mxu0 %v364
    %464 = vmatpush.msra.mxu0 %v360
    %465 = vmatpush.msra.mxu0 %v356
    %466 = vmatpush.msra.mxu0 %v352
    %467 = vmatpush.msra.mxu0 %v348
    %468 = vmatmul.f32.gmra.mxu0 %v410
    %v469 = vpop.f32.mrf.mxu0
    %v470 = vadd.f32 0.0, %v469
    %471 = vdwg.mxu0
    %472 = vmatpush.msra.mxu0 %v409
    %473 = vmatpush.msra.mxu0 %v405
    %474 = vmatpush.msra.mxu0 %v401
    %475 = vmatpush.msra.mxu0 %v397
    %476 = vmatpush.msra.mxu0 %v393
    %477 = vmatpush.msra.mxu0 %v389
    %478 = vmatpush.msra.mxu0 %v385
    %479 = vmatpush.msra.mxu0 %v381
    %480 = vmatpush.msra.mxu0 %v377
    %481 = vmatpush.msra.mxu0 %v373
    %482 = vmatpush.msra.mxu0 %v369
    %483 = vmatpush.msra.mxu0 %v365
    %484 = vmatpush.msra.mxu0 %v361
    %485 = vmatpush.msra.mxu0 %v357
    %486 = vmatpush.msra.mxu0 %v353
    %487 = vmatpush.msra.mxu0 %v349
    %488 = vmatmul.f32.gmra.mxu0 %v410
    %v489 = vpop.f32.mrf.mxu0
    %v490 = vadd.f32 0.0, %v489
    %491 = vdwg.mxu0
    %v496 = vrot.slane %v430, 1
    %v497 = vrot.slane %v450, 1
    %v498 = vrot.slane %v470, 1
    %v499 = vrot.slane %v490, 1
    %v500 = vrot.slane %v430, 2
    %v501 = vrot.slane %v450, 2
    %v502 = vrot.slane %v470, 2
    %v503 = vrot.slane %v490, 2
    %v504 = vrot.slane %v430, 3
    %v505 = vrot.slane %v450, 3
    %v506 = vrot.slane %v470, 3
    %v507 = vrot.slane %v490, 3
    %v508 = vrot.slane %v430, 4
    %v509 = vrot.slane %v450, 4
    %v510 = vrot.slane %v470, 4
    %v511 = vrot.slane %v490, 4
    %v512 = vrot.slane %v430, 5
    %v513 = vrot.slane %v450, 5
    %v514 = vrot.slane %v470, 5
    %v515 = vrot.slane %v490, 5
    %v516 = vrot.slane %v430, 6
    %v517 = vrot.slane %v450, 6
    %v518 = vrot.slane %v470, 6
    %v519 = vrot.slane %v490, 6
    %v520 = vrot.slane %v430, 7
    %v521 = vrot.slane %v450, 7
    %v522 = vrot.slane %v470, 7
    %v523 = vrot.slane %v490, 7
    %v556 = vadd.f32 %v200, %v430
    %v557 = vadd.f32 %v241, %v450
    %v558 = vadd.f32 %v282, %v470
    %v559 = vadd.f32 %v323, %v490
    %v560 = vadd.f32 %v203, %v496
    %v561 = vadd.f32 %v244, %v497
    %v562 = vadd.f32 %v285, %v498
    %v563 = vadd.f32 %v326, %v499
    %v564 = vadd.f32 %v206, %v500
    %v565 = vadd.f32 %v247, %v501
    %v566 = vadd.f32 %v288, %v502
    %v567 = vadd.f32 %v329, %v503
    %v568 = vadd.f32 %v209, %v504
    %v569 = vadd.f32 %v250, %v505
    %v570 = vadd.f32 %v291, %v506
    %v571 = vadd.f32 %v332, %v507
    %v572 = vadd.f32 %v212, %v508
    %v573 = vadd.f32 %v253, %v509
    %v574 = vadd.f32 %v294, %v510
    %v575 = vadd.f32 %v335, %v511
    %v576 = vadd.f32 %v215, %v512
    %v577 = vadd.f32 %v256, %v513
    %v578 = vadd.f32 %v297, %v514
    %v579 = vadd.f32 %v338, %v515
    %v580 = vadd.f32 %v218, %v516
    %v581 = vadd.f32 %v259, %v517
    %v582 = vadd.f32 %v300, %v518
    %v583 = vadd.f32 %v341, %v519
    %v584 = vadd.f32 %v221, %v520
    %v585 = vadd.f32 %v262, %v521
    %v586 = vadd.f32 %v303, %v522
    %v587 = vadd.f32 %v344, %v523
    %v588 = vxor.u32 %v556, 2147483648
    %v589 = vxor.u32 %v560, 2147483648
    %v590 = vxor.u32 %v564, 2147483648
    %v591 = vxor.u32 %v568, 2147483648
    %v592 = vxor.u32 %v572, 2147483648
    %v593 = vxor.u32 %v576, 2147483648
    %v594 = vxor.u32 %v580, 2147483648
    %v595 = vxor.u32 %v584, 2147483648
    %v596 = vmul.f32 %v588, 1.442695
    %v597 = vpow.pop %v596
    %v598 = vmul.f32 %v589, 1.442695
    %v599 = vpow.pop %v598
    %v600 = vmul.f32 %v590, 1.442695
    %v601 = vpow.pop %v600
    %v602 = vmul.f32 %v591, 1.442695
    %v603 = vpow.pop %v602
    %v604 = vmul.f32 %v592, 1.442695
    %v605 = vpow.pop %v604
    %v606 = vmul.f32 %v593, 1.442695
    %v607 = vpow.pop %v606
    %v608 = vmul.f32 %v594, 1.442695
    %v609 = vpow.pop %v608
    %v610 = vmul.f32 %v595, 1.442695
    %v611 = vpow.pop %v610
    %v612 = vadd.f32 %v597, 1.0
    %v613 = vadd.f32 %v599, 1.0
    %v614 = vadd.f32 %v601, 1.0
    %v615 = vadd.f32 %v603, 1.0
    %v616 = vadd.f32 %v605, 1.0
    %v617 = vadd.f32 %v607, 1.0
    %v618 = vadd.f32 %v609, 1.0
    %v619 = vadd.f32 %v611, 1.0
    %v620 = vrcp.pop %v612
    %v621 = vmul.f32 %v612, %v620
    %v622 = vsub.f32 1.0, %v621
    %v623 = vmul.f32 %v620, %v622
    %v624 = vadd.f32 %v620, %v623
    %vm625 = vweird.f32 %v612
    %vm626 = vweird.f32 %v620
    %vm627 = vmor %vm625, %vm626
    %v628 = vsel %vm627, %v620, %v624
    %v629 = vand.u32 2147483647, %v612
    %vm630 = vcmp.eq.f32.partialorder %v629, 8.507059e+37
    %v631 = vand.u32 %v612, 2147483648
    %v632 = vor.u32 1.1754944e-38, %v631
    %v633 = vsel %vm630, %v632, %v628
    %v634 = vmul.f32 1.0, %v633
    %v635 = vrcp.pop %v613
    %v636 = vmul.f32 %v613, %v635
    %v637 = vsub.f32 1.0, %v636
    %v638 = vmul.f32 %v635, %v637
    %v639 = vadd.f32 %v635, %v638
    %vm640 = vweird.f32 %v613
    %vm641 = vweird.f32 %v635
    %vm642 = vmor %vm640, %vm641
    %v643 = vsel %vm642, %v635, %v639
    %v644 = vand.u32 2147483647, %v613
    %vm645 = vcmp.eq.f32.partialorder %v644, 8.507059e+37
    %v646 = vand.u32 %v613, 2147483648
    %v647 = vor.u32 1.1754944e-38, %v646
    %v648 = vsel %vm645, %v647, %v643
    %v649 = vmul.f32 1.0, %v648
    %v650 = vrcp.pop %v614
    %v651 = vmul.f32 %v614, %v650
    %v652 = vsub.f32 1.0, %v651
    %v653 = vmul.f32 %v650, %v652
    %v654 = vadd.f32 %v650, %v653
    %vm655 = vweird.f32 %v614
    %vm656 = vweird.f32 %v650
    %vm657 = vmor %vm655, %vm656
    %v658 = vsel %vm657, %v650, %v654
    %v659 = vand.u32 2147483647, %v614
    %vm660 = vcmp.eq.f32.partialorder %v659, 8.507059e+37
    %v661 = vand.u32 %v614, 2147483648
    %v662 = vor.u32 1.1754944e-38, %v661
    %v663 = vsel %vm660, %v662, %v658
    %v664 = vmul.f32 1.0, %v663
    %v665 = vrcp.pop %v615
    %v666 = vmul.f32 %v615, %v665
    %v667 = vsub.f32 1.0, %v666
    %v668 = vmul.f32 %v665, %v667
    %v669 = vadd.f32 %v665, %v668
    %vm670 = vweird.f32 %v615
    %vm671 = vweird.f32 %v665
    %vm672 = vmor %vm670, %vm671
    %v673 = vsel %vm672, %v665, %v669
    %v674 = vand.u32 2147483647, %v615
    %vm675 = vcmp.eq.f32.partialorder %v674, 8.507059e+37
    %v676 = vand.u32 %v615, 2147483648
    %v677 = vor.u32 1.1754944e-38, %v676
    %v678 = vsel %vm675, %v677, %v673
    %v679 = vmul.f32 1.0, %v678
    %v680 = vrcp.pop %v616
    %v681 = vmul.f32 %v616, %v680
    %v682 = vsub.f32 1.0, %v681
    %v683 = vmul.f32 %v680, %v682
    %v684 = vadd.f32 %v680, %v683
    %vm685 = vweird.f32 %v616
    %vm686 = vweird.f32 %v680
    %vm687 = vmor %vm685, %vm686
    %v688 = vsel %vm687, %v680, %v684
    %v689 = vand.u32 2147483647, %v616
    %vm690 = vcmp.eq.f32.partialorder %v689, 8.507059e+37
    %v691 = vand.u32 %v616, 2147483648
    %v692 = vor.u32 1.1754944e-38, %v691
    %v693 = vsel %vm690, %v692, %v688
    %v694 = vmul.f32 1.0, %v693
    %v695 = vrcp.pop %v617
    %v696 = vmul.f32 %v617, %v695
    %v697 = vsub.f32 1.0, %v696
    %v698 = vmul.f32 %v695, %v697
    %v699 = vadd.f32 %v695, %v698
    %vm700 = vweird.f32 %v617
    %vm701 = vweird.f32 %v695
    %vm702 = vmor %vm700, %vm701
    %v703 = vsel %vm702, %v695, %v699
    %v704 = vand.u32 2147483647, %v617
    %vm705 = vcmp.eq.f32.partialorder %v704, 8.507059e+37
    %v706 = vand.u32 %v617, 2147483648
    %v707 = vor.u32 1.1754944e-38, %v706
    %v708 = vsel %vm705, %v707, %v703
    %v709 = vmul.f32 1.0, %v708
    %v710 = vrcp.pop %v618
    %v711 = vmul.f32 %v618, %v710
    %v712 = vsub.f32 1.0, %v711
    %v713 = vmul.f32 %v710, %v712
    %v714 = vadd.f32 %v710, %v713
    %vm715 = vweird.f32 %v618
    %vm716 = vweird.f32 %v710
    %vm717 = vmor %vm715, %vm716
    %v718 = vsel %vm717, %v710, %v714
    %v719 = vand.u32 2147483647, %v618
    %vm720 = vcmp.eq.f32.partialorder %v719, 8.507059e+37
    %v721 = vand.u32 %v618, 2147483648
    %v722 = vor.u32 1.1754944e-38, %v721
    %v723 = vsel %vm720, %v722, %v718
    %v724 = vmul.f32 1.0, %v723
    %v725 = vrcp.pop %v619
    %v726 = vmul.f32 %v619, %v725
    %v727 = vsub.f32 1.0, %v726
    %v728 = vmul.f32 %v725, %v727
    %v729 = vadd.f32 %v725, %v728
    %vm730 = vweird.f32 %v619
    %vm731 = vweird.f32 %v725
    %vm732 = vmor %vm730, %vm731
    %v733 = vsel %vm732, %v725, %v729
    %v734 = vand.u32 2147483647, %v619
    %vm735 = vcmp.eq.f32.partialorder %v734, 8.507059e+37
    %v736 = vand.u32 %v619, 2147483648
    %v737 = vor.u32 1.1754944e-38, %v736
    %v738 = vsel %vm735, %v737, %v733
    %v739 = vmul.f32 1.0, %v738
    %v740 = vxor.u32 %v557, 2147483648
    %v741 = vxor.u32 %v561, 2147483648
    %v742 = vxor.u32 %v565, 2147483648
    %v743 = vxor.u32 %v569, 2147483648
    %v744 = vxor.u32 %v573, 2147483648
    %v745 = vxor.u32 %v577, 2147483648
    %v746 = vxor.u32 %v581, 2147483648
    %v747 = vxor.u32 %v585, 2147483648
    %v748 = vmul.f32 %v740, 1.442695
    %v749 = vpow.pop %v748
    %v750 = vmul.f32 %v741, 1.442695
    %v751 = vpow.pop %v750
    %v752 = vmul.f32 %v742, 1.442695
    %v753 = vpow.pop %v752
    %v754 = vmul.f32 %v743, 1.442695
    %v755 = vpow.pop %v754
    %v756 = vmul.f32 %v744, 1.442695
    %v757 = vpow.pop %v756
    %v758 = vmul.f32 %v745, 1.442695
    %v759 = vpow.pop %v758
    %v760 = vmul.f32 %v746, 1.442695
    %v761 = vpow.pop %v760
    %v762 = vmul.f32 %v747, 1.442695
    %v763 = vpow.pop %v762
    %v764 = vadd.f32 %v749, 1.0
    %v765 = vadd.f32 %v751, 1.0
    %v766 = vadd.f32 %v753, 1.0
    %v767 = vadd.f32 %v755, 1.0
    %v768 = vadd.f32 %v757, 1.0
    %v769 = vadd.f32 %v759, 1.0
    %v770 = vadd.f32 %v761, 1.0
    %v771 = vadd.f32 %v763, 1.0
    %v772 = vrcp.pop %v764
    %v773 = vmul.f32 %v764, %v772
    %v774 = vsub.f32 1.0, %v773
    %v775 = vmul.f32 %v772, %v774
    %v776 = vadd.f32 %v772, %v775
    %vm777 = vweird.f32 %v764
    %vm778 = vweird.f32 %v772
    %vm779 = vmor %vm777, %vm778
    %v780 = vsel %vm779, %v772, %v776
    %v781 = vand.u32 2147483647, %v764
    %vm782 = vcmp.eq.f32.partialorder %v781, 8.507059e+37
    %v783 = vand.u32 %v764, 2147483648
    %v784 = vor.u32 1.1754944e-38, %v783
    %v785 = vsel %vm782, %v784, %v780
    %v786 = vmul.f32 1.0, %v785
    %v787 = vrcp.pop %v765
    %v788 = vmul.f32 %v765, %v787
    %v789 = vsub.f32 1.0, %v788
    %v790 = vmul.f32 %v787, %v789
    %v791 = vadd.f32 %v787, %v790
    %vm792 = vweird.f32 %v765
    %vm793 = vweird.f32 %v787
    %vm794 = vmor %vm792, %vm793
    %v795 = vsel %vm794, %v787, %v791
    %v796 = vand.u32 2147483647, %v765
    %vm797 = vcmp.eq.f32.partialorder %v796, 8.507059e+37
    %v798 = vand.u32 %v765, 2147483648
    %v799 = vor.u32 1.1754944e-38, %v798
    %v800 = vsel %vm797, %v799, %v795
    %v801 = vmul.f32 1.0, %v800
    %v802 = vrcp.pop %v766
    %v803 = vmul.f32 %v766, %v802
    %v804 = vsub.f32 1.0, %v803
    %v805 = vmul.f32 %v802, %v804
    %v806 = vadd.f32 %v802, %v805
    %vm807 = vweird.f32 %v766
    %vm808 = vweird.f32 %v802
    %vm809 = vmor %vm807, %vm808
    %v810 = vsel %vm809, %v802, %v806
    %v811 = vand.u32 2147483647, %v766
    %vm812 = vcmp.eq.f32.partialorder %v811, 8.507059e+37
    %v813 = vand.u32 %v766, 2147483648
    %v814 = vor.u32 1.1754944e-38, %v813
    %v815 = vsel %vm812, %v814, %v810
    %v816 = vmul.f32 1.0, %v815
    %v817 = vrcp.pop %v767
    %v818 = vmul.f32 %v767, %v817
    %v819 = vsub.f32 1.0, %v818
    %v820 = vmul.f32 %v817, %v819
    %v821 = vadd.f32 %v817, %v820
    %vm822 = vweird.f32 %v767
    %vm823 = vweird.f32 %v817
    %vm824 = vmor %vm822, %vm823
    %v825 = vsel %vm824, %v817, %v821
    %v826 = vand.u32 2147483647, %v767
    %vm827 = vcmp.eq.f32.partialorder %v826, 8.507059e+37
    %v828 = vand.u32 %v767, 2147483648
    %v829 = vor.u32 1.1754944e-38, %v828
    %v830 = vsel %vm827, %v829, %v825
    %v831 = vmul.f32 1.0, %v830
    %v832 = vrcp.pop %v768
    %v833 = vmul.f32 %v768, %v832
    %v834 = vsub.f32 1.0, %v833
    %v835 = vmul.f32 %v832, %v834
    %v836 = vadd.f32 %v832, %v835
    %vm837 = vweird.f32 %v768
    %vm838 = vweird.f32 %v832
    %vm839 = vmor %vm837, %vm838
    %v840 = vsel %vm839, %v832, %v836
    %v841 = vand.u32 2147483647, %v768
    %vm842 = vcmp.eq.f32.partialorder %v841, 8.507059e+37
    %v843 = vand.u32 %v768, 2147483648
    %v844 = vor.u32 1.1754944e-38, %v843
    %v845 = vsel %vm842, %v844, %v840
    %v846 = vmul.f32 1.0, %v845
    %v847 = vrcp.pop %v769
    %v848 = vmul.f32 %v769, %v847
    %v849 = vsub.f32 1.0, %v848
    %v850 = vmul.f32 %v847, %v849
    %v851 = vadd.f32 %v847, %v850
    %vm852 = vweird.f32 %v769
    %vm853 = vweird.f32 %v847
    %vm854 = vmor %vm852, %vm853
    %v855 = vsel %vm854, %v847, %v851
    %v856 = vand.u32 2147483647, %v769
    %vm857 = vcmp.eq.f32.partialorder %v856, 8.507059e+37
    %v858 = vand.u32 %v769, 2147483648
    %v859 = vor.u32 1.1754944e-38, %v858
    %v860 = vsel %vm857, %v859, %v855
    %v861 = vmul.f32 1.0, %v860
    %v862 = vrcp.pop %v770
    %v863 = vmul.f32 %v770, %v862
    %v864 = vsub.f32 1.0, %v863
    %v865 = vmul.f32 %v862, %v864
    %v866 = vadd.f32 %v862, %v865
    %vm867 = vweird.f32 %v770
    %vm868 = vweird.f32 %v862
    %vm869 = vmor %vm867, %vm868
    %v870 = vsel %vm869, %v862, %v866
    %v871 = vand.u32 2147483647, %v770
    %vm872 = vcmp.eq.f32.partialorder %v871, 8.507059e+37
    %v873 = vand.u32 %v770, 2147483648
    %v874 = vor.u32 1.1754944e-38, %v873
    %v875 = vsel %vm872, %v874, %v870
    %v876 = vmul.f32 1.0, %v875
    %v877 = vrcp.pop %v771
    %v878 = vmul.f32 %v771, %v877
    %v879 = vsub.f32 1.0, %v878
    %v880 = vmul.f32 %v877, %v879
    %v881 = vadd.f32 %v877, %v880
    %vm882 = vweird.f32 %v771
    %vm883 = vweird.f32 %v877
    %vm884 = vmor %vm882, %vm883
    %v885 = vsel %vm884, %v877, %v881
    %v886 = vand.u32 2147483647, %v771
    %vm887 = vcmp.eq.f32.partialorder %v886, 8.507059e+37
    %v888 = vand.u32 %v771, 2147483648
    %v889 = vor.u32 1.1754944e-38, %v888
    %v890 = vsel %vm887, %v889, %v885
    %v891 = vmul.f32 1.0, %v890
    %v892 = vtanh.pop %v558
    %v893 = vtanh.pop %v562
    %v894 = vtanh.pop %v566
    %v895 = vtanh.pop %v570
    %v896 = vtanh.pop %v574
    %v897 = vtanh.pop %v578
    %v898 = vtanh.pop %v582
    %v899 = vtanh.pop %v586
    %v900 = vxor.u32 %v559, 2147483648
    %v901 = vxor.u32 %v563, 2147483648
    %v902 = vxor.u32 %v567, 2147483648
    %v903 = vxor.u32 %v571, 2147483648
    %v904 = vxor.u32 %v575, 2147483648
    %v905 = vxor.u32 %v579, 2147483648
    %v906 = vxor.u32 %v583, 2147483648
    %v907 = vxor.u32 %v587, 2147483648
    %v908 = vmul.f32 %v900, 1.442695
    %v909 = vpow.pop %v908
    %v910 = vmul.f32 %v901, 1.442695
    %v911 = vpow.pop %v910
    %v912 = vmul.f32 %v902, 1.442695
    %v913 = vpow.pop %v912
    %v914 = vmul.f32 %v903, 1.442695
    %v915 = vpow.pop %v914
    %v916 = vmul.f32 %v904, 1.442695
    %v917 = vpow.pop %v916
    %v918 = vmul.f32 %v905, 1.442695
    %v919 = vpow.pop %v918
    %v920 = vmul.f32 %v906, 1.442695
    %v921 = vpow.pop %v920
    %v922 = vmul.f32 %v907, 1.442695
    %v923 = vpow.pop %v922
    %v924 = vadd.f32 %v909, 1.0
    %v925 = vadd.f32 %v911, 1.0
    %v926 = vadd.f32 %v913, 1.0
    %v927 = vadd.f32 %v915, 1.0
    %v928 = vadd.f32 %v917, 1.0
    %v929 = vadd.f32 %v919, 1.0
    %v930 = vadd.f32 %v921, 1.0
    %v931 = vadd.f32 %v923, 1.0
    %v932 = vrcp.pop %v924
    %v933 = vmul.f32 %v924, %v932
    %v934 = vsub.f32 1.0, %v933
    %v935 = vmul.f32 %v932, %v934
    %v936 = vadd.f32 %v932, %v935
    %vm937 = vweird.f32 %v924
    %vm938 = vweird.f32 %v932
    %vm939 = vmor %vm937, %vm938
    %v940 = vsel %vm939, %v932, %v936
    %v941 = vand.u32 2147483647, %v924
    %vm942 = vcmp.eq.f32.partialorder %v941, 8.507059e+37
    %v943 = vand.u32 %v924, 2147483648
    %v944 = vor.u32 1.1754944e-38, %v943
    %v945 = vsel %vm942, %v944, %v940
    %v946 = vmul.f32 1.0, %v945
    %v947 = vrcp.pop %v925
    %v948 = vmul.f32 %v925, %v947
    %v949 = vsub.f32 1.0, %v948
    %v950 = vmul.f32 %v947, %v949
    %v951 = vadd.f32 %v947, %v950
    %vm952 = vweird.f32 %v925
    %vm953 = vweird.f32 %v947
    %vm954 = vmor %vm952, %vm953
    %v955 = vsel %vm954, %v947, %v951
    %v956 = vand.u32 2147483647, %v925
    %vm957 = vcmp.eq.f32.partialorder %v956, 8.507059e+37
    %v958 = vand.u32 %v925, 2147483648
    %v959 = vor.u32 1.1754944e-38, %v958
    %v960 = vsel %vm957, %v959, %v955
    %v961 = vmul.f32 1.0, %v960
    %v962 = vrcp.pop %v926
    %v963 = vmul.f32 %v926, %v962
    %v964 = vsub.f32 1.0, %v963
    %v965 = vmul.f32 %v962, %v964
    %v966 = vadd.f32 %v962, %v965
    %vm967 = vweird.f32 %v926
    %vm968 = vweird.f32 %v962
    %vm969 = vmor %vm967, %vm968
    %v970 = vsel %vm969, %v962, %v966
    %v971 = vand.u32 2147483647, %v926
    %vm972 = vcmp.eq.f32.partialorder %v971, 8.507059e+37
    %v973 = vand.u32 %v926, 2147483648
    %v974 = vor.u32 1.1754944e-38, %v973
    %v975 = vsel %vm972, %v974, %v970
    %v976 = vmul.f32 1.0, %v975
    %v977 = vrcp.pop %v927
    %v978 = vmul.f32 %v927, %v977
    %v979 = vsub.f32 1.0, %v978
    %v980 = vmul.f32 %v977, %v979
    %v981 = vadd.f32 %v977, %v980
    %vm982 = vweird.f32 %v927
    %vm983 = vweird.f32 %v977
    %vm984 = vmor %vm982, %vm983
    %v985 = vsel %vm984, %v977, %v981
    %v986 = vand.u32 2147483647, %v927
    %vm987 = vcmp.eq.f32.partialorder %v986, 8.507059e+37
    %v988 = vand.u32 %v927, 2147483648
    %v989 = vor.u32 1.1754944e-38, %v988
    %v990 = vsel %vm987, %v989, %v985
    %v991 = vmul.f32 1.0, %v990
    %v992 = vrcp.pop %v928
    %v993 = vmul.f32 %v928, %v992
    %v994 = vsub.f32 1.0, %v993
    %v995 = vmul.f32 %v992, %v994
    %v996 = vadd.f32 %v992, %v995
    %vm997 = vweird.f32 %v928
    %vm998 = vweird.f32 %v992
    %vm999 = vmor %vm997, %vm998
    %v1000 = vsel %vm999, %v992, %v996
    %v1001 = vand.u32 2147483647, %v928
    %vm1002 = vcmp.eq.f32.partialorder %v1001, 8.507059e+37
    %v1003 = vand.u32 %v928, 2147483648
    %v1004 = vor.u32 1.1754944e-38, %v1003
    %v1005 = vsel %vm1002, %v1004, %v1000
    %v1006 = vmul.f32 1.0, %v1005
    %v1007 = vrcp.pop %v929
    %v1008 = vmul.f32 %v929, %v1007
    %v1009 = vsub.f32 1.0, %v1008
    %v1010 = vmul.f32 %v1007, %v1009
    %v1011 = vadd.f32 %v1007, %v1010
    %vm1012 = vweird.f32 %v929
    %vm1013 = vweird.f32 %v1007
    %vm1014 = vmor %vm1012, %vm1013
    %v1015 = vsel %vm1014, %v1007, %v1011
    %v1016 = vand.u32 2147483647, %v929
    %vm1017 = vcmp.eq.f32.partialorder %v1016, 8.507059e+37
    %v1018 = vand.u32 %v929, 2147483648
    %v1019 = vor.u32 1.1754944e-38, %v1018
    %v1020 = vsel %vm1017, %v1019, %v1015
    %v1021 = vmul.f32 1.0, %v1020
    %v1022 = vrcp.pop %v930
    %v1023 = vmul.f32 %v930, %v1022
    %v1024 = vsub.f32 1.0, %v1023
    %v1025 = vmul.f32 %v1022, %v1024
    %v1026 = vadd.f32 %v1022, %v1025
    %vm1027 = vweird.f32 %v930
    %vm1028 = vweird.f32 %v1022
    %vm1029 = vmor %vm1027, %vm1028
    %v1030 = vsel %vm1029, %v1022, %v1026
    %v1031 = vand.u32 2147483647, %v930
    %vm1032 = vcmp.eq.f32.partialorder %v1031, 8.507059e+37
    %v1033 = vand.u32 %v930, 2147483648
    %v1034 = vor.u32 1.1754944e-38, %v1033
    %v1035 = vsel %vm1032, %v1034, %v1030
    %v1036 = vmul.f32 1.0, %v1035
    %v1037 = vrcp.pop %v931
    %v1038 = vmul.f32 %v931, %v1037
    %v1039 = vsub.f32 1.0, %v1038
    %v1040 = vmul.f32 %v1037, %v1039
    %v1041 = vadd.f32 %v1037, %v1040
    %vm1042 = vweird.f32 %v931
    %vm1043 = vweird.f32 %v1037
    %vm1044 = vmor %vm1042, %vm1043
    %v1045 = vsel %vm1044, %v1037, %v1041
    %v1046 = vand.u32 2147483647, %v931
    %vm1047 = vcmp.eq.f32.partialorder %v1046, 8.507059e+37
    %v1048 = vand.u32 %v931, 2147483648
    %v1049 = vor.u32 1.1754944e-38, %v1048
    %v1050 = vsel %vm1047, %v1049, %v1045
    %v1051 = vmul.f32 1.0, %v1050
    %v1053 = vrot.slane %v411, 1
    %v1054 = vrot.slane %v411, 2
    %v1055 = vrot.slane %v411, 3
    %v1056 = vrot.slane %v411, 4
    %v1057 = vrot.slane %v411, 5
    %v1058 = vrot.slane %v411, 6
    %v1059 = vrot.slane %v411, 7
    %v1068 = vmul.f32 %v786, %v411
    %v1069 = vmul.f32 %v801, %v1053
    %v1070 = vmul.f32 %v816, %v1054
    %v1071 = vmul.f32 %v831, %v1055
    %v1072 = vmul.f32 %v846, %v1056
    %v1073 = vmul.f32 %v861, %v1057
    %v1074 = vmul.f32 %v876, %v1058
    %v1075 = vmul.f32 %v891, %v1059
    %v1076 = vmul.f32 %v634, %v892
    %v1077 = vmul.f32 %v649, %v893
    %v1078 = vmul.f32 %v664, %v894
    %v1079 = vmul.f32 %v679, %v895
    %v1080 = vmul.f32 %v694, %v896
    %v1081 = vmul.f32 %v709, %v897
    %v1082 = vmul.f32 %v724, %v898
    %v1083 = vmul.f32 %v739, %v899
    %v1084 = vadd.f32 %v1068, %v1076
    %v1085 = vadd.f32 %v1069, %v1077
    %v1086 = vadd.f32 %v1070, %v1078
    %v1087 = vadd.f32 %v1071, %v1079
    %v1088 = vadd.f32 %v1072, %v1080
    %v1089 = vadd.f32 %v1073, %v1081
    %v1090 = vadd.f32 %v1074, %v1082
    %v1091 = vadd.f32 %v1075, %v1083
    %v1092 = vtanh.pop %v1084
    %v1093 = vtanh.pop %v1085
    %v1094 = vtanh.pop %v1086
    %v1095 = vtanh.pop %v1087
    %v1096 = vtanh.pop %v1088
    %v1097 = vtanh.pop %v1089
    %v1098 = vtanh.pop %v1090
    %v1099 = vtanh.pop %v1091
    %v1100 = vmul.f32 %v946, %v1092
    %v1101 = vmul.f32 %v961, %v1093
    %v1102 = vmul.f32 %v976, %v1094
    %v1103 = vmul.f32 %v991, %v1095
    %v1104 = vmul.f32 %v1006, %v1096
    %v1105 = vmul.f32 %v1021, %v1097
    %v1106 = vmul.f32 %v1036, %v1098
    %v1107 = vmul.f32 %v1051, %v1099
    %v1116 = vrot.slane %v1101, 7
    %vm1117 = vcmask 1041409
    %v1118 = vsel %vm1117, %v1116, %v1100
    %v1119 = vrot.slane %v1102, 6
    %vm1120 = vcmask 1042434
    %v1121 = vsel %vm1120, %v1119, %v1118
    %v1122 = vrot.slane %v1103, 5
    %vm1123 = vcmask 1043459
    %v1124 = vsel %vm1123, %v1122, %v1121
    %v1125 = vrot.slane %v1104, 4
    %vm1126 = vcmask 1044484
    %v1127 = vsel %vm1126, %v1125, %v1124
    %v1128 = vrot.slane %v1105, 3
    %vm1129 = vcmask 1045509
    %v1130 = vsel %vm1129, %v1128, %v1127
    %v1131 = vrot.slane %v1106, 2
    %vm1132 = vcmask 1046534
    %v1133 = vsel %vm1132, %v1131, %v1130
    %v1134 = vrot.slane %v1107, 1
    %vm1135 = vcmask 1047559
    %v1136 = vsel %vm1135, %v1134, %v1133
    %1138 = vmatpush.msra.mxu0 %v406
    %1139 = vmatpush.msra.mxu0 %v402
    %1140 = vmatpush.msra.mxu0 %v398
    %1141 = vmatpush.msra.mxu0 %v394
    %1142 = vmatpush.msra.mxu0 %v390
    %1143 = vmatpush.msra.mxu0 %v386
    %1144 = vmatpush.msra.mxu0 %v382
    %1145 = vmatpush.msra.mxu0 %v378
    %1146 = vmatpush.msra.mxu0 %v374
    %1147 = vmatpush.msra.mxu0 %v370
    %1148 = vmatpush.msra.mxu0 %v366
    %1149 = vmatpush.msra.mxu0 %v362
    %1150 = vmatpush.msra.mxu0 %v358
    %1151 = vmatpush.msra.mxu0 %v354
    %1152 = vmatpush.msra.mxu0 %v350
    %1153 = vmatpush.msra.mxu0 %v346
    %1154 = vmatmul.f32.gmra.mxu0 %v1136
    %v1155 = vpop.f32.mrf.mxu0
    %v1156 = vadd.f32 0.0, %v1155
    %1157 = vdwg.mxu0
    %1158 = vmatpush.msra.mxu0 %v407
    %1159 = vmatpush.msra.mxu0 %v403
    %1160 = vmatpush.msra.mxu0 %v399
    %1161 = vmatpush.msra.mxu0 %v395
    %1162 = vmatpush.msra.mxu0 %v391
    %1163 = vmatpush.msra.mxu0 %v387
    %1164 = vmatpush.msra.mxu0 %v383
    %1165 = vmatpush.msra.mxu0 %v379
    %1166 = vmatpush.msra.mxu0 %v375
    %1167 = vmatpush.msra.mxu0 %v371
    %1168 = vmatpush.msra.mxu0 %v367
    %1169 = vmatpush.msra.mxu0 %v363
    %1170 = vmatpush.msra.mxu0 %v359
    %1171 = vmatpush.msra.mxu0 %v355
    %1172 = vmatpush.msra.mxu0 %v351
    %1173 = vmatpush.msra.mxu0 %v347
    %1174 = vmatmul.f32.gmra.mxu0 %v1136
    %v1175 = vpop.f32.mrf.mxu0
    %v1176 = vadd.f32 0.0, %v1175
    %1177 = vdwg.mxu0
    %1178 = vmatpush.msra.mxu0 %v408
    %1179 = vmatpush.msra.mxu0 %v404
    %1180 = vmatpush.msra.mxu0 %v400
    %1181 = vmatpush.msra.mxu0 %v396
    %1182 = vmatpush.msra.mxu0 %v392
    %1183 = vmatpush.msra.mxu0 %v388
    %1184 = vmatpush.msra.mxu0 %v384
    %1185 = vmatpush.msra.mxu0 %v380
    %1186 = vmatpush.msra.mxu0 %v376
    %1187 = vmatpush.msra.mxu0 %v372
    %1188 = vmatpush.msra.mxu0 %v368
    %1189 = vmatpush.msra.mxu0 %v364
    %1190 = vmatpush.msra.mxu0 %v360
    %1191 = vmatpush.msra.mxu0 %v356
    %1192 = vmatpush.msra.mxu0 %v352
    %1193 = vmatpush.msra.mxu0 %v348
    %1194 = vmatmul.f32.gmra.mxu0 %v1136
    %v1195 = vpop.f32.mrf.mxu0
    %v1196 = vadd.f32 0.0, %v1195
    %1197 = vdwg.mxu0
    %1198 = vmatpush.msra.mxu0 %v409
    %1199 = vmatpush.msra.mxu0 %v405
    %1200 = vmatpush.msra.mxu0 %v401
    %1201 = vmatpush.msra.mxu0 %v397
    %1202 = vmatpush.msra.mxu0 %v393
    %1203 = vmatpush.msra.mxu0 %v389
    %1204 = vmatpush.msra.mxu0 %v385
    %1205 = vmatpush.msra.mxu0 %v381
    %1206 = vmatpush.msra.mxu0 %v377
    %1207 = vmatpush.msra.mxu0 %v373
    %1208 = vmatpush.msra.mxu0 %v369
    %1209 = vmatpush.msra.mxu0 %v365
    %1210 = vmatpush.msra.mxu0 %v361
    %1211 = vmatpush.msra.mxu0 %v357
    %1212 = vmatpush.msra.mxu0 %v353
    %1213 = vmatpush.msra.mxu0 %v349
    %1214 = vmatmul.f32.gmra.mxu0 %v1136
    %v1215 = vpop.f32.mrf.mxu0
    %v1216 = vadd.f32 0.0, %v1215
    %1217 = vdwg.mxu0
    %v1222 = vrot.slane %v1156, 7
    %v1223 = vrot.slane %v1176, 7
    %v1224 = vrot.slane %v1196, 7
    %v1225 = vrot.slane %v1216, 7
    %v1226 = vrot.slane %v1156, 1
    %v1227 = vrot.slane %v1176, 1
    %v1228 = vrot.slane %v1196, 1
    %v1229 = vrot.slane %v1216, 1
    %v1230 = vrot.slane %v1156, 2
    %v1231 = vrot.slane %v1176, 2
    %v1232 = vrot.slane %v1196, 2
    %v1233 = vrot.slane %v1216, 2
    %v1234 = vrot.slane %v1156, 3
    %v1235 = vrot.slane %v1176, 3
    %v1236 = vrot.slane %v1196, 3
    %v1237 = vrot.slane %v1216, 3
    %v1238 = vrot.slane %v1156, 4
    %v1239 = vrot.slane %v1176, 4
    %v1240 = vrot.slane %v1196, 4
    %v1241 = vrot.slane %v1216, 4
    %v1242 = vrot.slane %v1156, 5
    %v1243 = vrot.slane %v1176, 5
    %v1244 = vrot.slane %v1196, 5
    %v1245 = vrot.slane %v1216, 5
    %v1246 = vrot.slane %v1156, 6
    %v1247 = vrot.slane %v1176, 6
    %v1248 = vrot.slane %v1196, 6
    %v1249 = vrot.slane %v1216, 6
    %v1282 = vadd.f32 %v200, %v1222
    %v1283 = vadd.f32 %v241, %v1223
    %v1284 = vadd.f32 %v282, %v1224
    %v1285 = vadd.f32 %v323, %v1225
    %v1286 = vadd.f32 %v203, %v1156
    %v1287 = vadd.f32 %v244, %v1176
    %v1288 = vadd.f32 %v285, %v1196
    %v1289 = vadd.f32 %v326, %v1216
    %v1290 = vadd.f32 %v206, %v1226
    %v1291 = vadd.f32 %v247, %v1227
    %v1292 = vadd.f32 %v288, %v1228
    %v1293 = vadd.f32 %v329, %v1229
    %v1294 = vadd.f32 %v209, %v1230
    %v1295 = vadd.f32 %v250, %v1231
    %v1296 = vadd.f32 %v291, %v1232
    %v1297 = vadd.f32 %v332, %v1233
    %v1298 = vadd.f32 %v212, %v1234
    %v1299 = vadd.f32 %v253, %v1235
    %v1300 = vadd.f32 %v294, %v1236
    %v1301 = vadd.f32 %v335, %v1237
    %v1302 = vadd.f32 %v215, %v1238
    %v1303 = vadd.f32 %v256, %v1239
    %v1304 = vadd.f32 %v297, %v1240
    %v1305 = vadd.f32 %v338, %v1241
    %v1306 = vadd.f32 %v218, %v1242
    %v1307 = vadd.f32 %v259, %v1243
    %v1308 = vadd.f32 %v300, %v1244
    %v1309 = vadd.f32 %v341, %v1245
    %v1310 = vadd.f32 %v221, %v1246
    %v1311 = vadd.f32 %v262, %v1247
    %v1312 = vadd.f32 %v303, %v1248
    %v1313 = vadd.f32 %v344, %v1249
    %v1314 = vxor.u32 %v1282, 2147483648
    %v1315 = vxor.u32 %v1286, 2147483648
    %v1316 = vxor.u32 %v1290, 2147483648
    %v1317 = vxor.u32 %v1294, 2147483648
    %v1318 = vxor.u32 %v1298, 2147483648
    %v1319 = vxor.u32 %v1302, 2147483648
    %v1320 = vxor.u32 %v1306, 2147483648
    %v1321 = vxor.u32 %v1310, 2147483648
    %v1322 = vmul.f32 %v1314, 1.442695
    %v1323 = vpow.pop %v1322
    %v1324 = vmul.f32 %v1315, 1.442695
    %v1325 = vpow.pop %v1324
    %v1326 = vmul.f32 %v1316, 1.442695
    %v1327 = vpow.pop %v1326
    %v1328 = vmul.f32 %v1317, 1.442695
    %v1329 = vpow.pop %v1328
    %v1330 = vmul.f32 %v1318, 1.442695
    %v1331 = vpow.pop %v1330
    %v1332 = vmul.f32 %v1319, 1.442695
    %v1333 = vpow.pop %v1332
    %v1334 = vmul.f32 %v1320, 1.442695
    %v1335 = vpow.pop %v1334
    %v1336 = vmul.f32 %v1321, 1.442695
    %v1337 = vpow.pop %v1336
    %v1338 = vadd.f32 %v1323, 1.0
    %v1339 = vadd.f32 %v1325, 1.0
    %v1340 = vadd.f32 %v1327, 1.0
    %v1341 = vadd.f32 %v1329, 1.0
    %v1342 = vadd.f32 %v1331, 1.0
    %v1343 = vadd.f32 %v1333, 1.0
    %v1344 = vadd.f32 %v1335, 1.0
    %v1345 = vadd.f32 %v1337, 1.0
    %v1346 = vrcp.pop %v1338
    %v1347 = vmul.f32 %v1338, %v1346
    %v1348 = vsub.f32 1.0, %v1347
    %v1349 = vmul.f32 %v1346, %v1348
    %v1350 = vadd.f32 %v1346, %v1349
    %vm1351 = vweird.f32 %v1338
    %vm1352 = vweird.f32 %v1346
    %vm1353 = vmor %vm1351, %vm1352
    %v1354 = vsel %vm1353, %v1346, %v1350
    %v1355 = vand.u32 2147483647, %v1338
    %vm1356 = vcmp.eq.f32.partialorder %v1355, 8.507059e+37
    %v1357 = vand.u32 %v1338, 2147483648
    %v1358 = vor.u32 1.1754944e-38, %v1357
    %v1359 = vsel %vm1356, %v1358, %v1354
    %v1360 = vmul.f32 1.0, %v1359
    %v1361 = vrcp.pop %v1339
    %v1362 = vmul.f32 %v1339, %v1361
    %v1363 = vsub.f32 1.0, %v1362
    %v1364 = vmul.f32 %v1361, %v1363
    %v1365 = vadd.f32 %v1361, %v1364
    %vm1366 = vweird.f32 %v1339
    %vm1367 = vweird.f32 %v1361
    %vm1368 = vmor %vm1366, %vm1367
    %v1369 = vsel %vm1368, %v1361, %v1365
    %v1370 = vand.u32 2147483647, %v1339
    %vm1371 = vcmp.eq.f32.partialorder %v1370, 8.507059e+37
    %v1372 = vand.u32 %v1339, 2147483648
    %v1373 = vor.u32 1.1754944e-38, %v1372
    %v1374 = vsel %vm1371, %v1373, %v1369
    %v1375 = vmul.f32 1.0, %v1374
    %v1376 = vrcp.pop %v1340
    %v1377 = vmul.f32 %v1340, %v1376
    %v1378 = vsub.f32 1.0, %v1377
    %v1379 = vmul.f32 %v1376, %v1378
    %v1380 = vadd.f32 %v1376, %v1379
    %vm1381 = vweird.f32 %v1340
    %vm1382 = vweird.f32 %v1376
    %vm1383 = vmor %vm1381, %vm1382
    %v1384 = vsel %vm1383, %v1376, %v1380
    %v1385 = vand.u32 2147483647, %v1340
    %vm1386 = vcmp.eq.f32.partialorder %v1385, 8.507059e+37
    %v1387 = vand.u32 %v1340, 2147483648
    %v1388 = vor.u32 1.1754944e-38, %v1387
    %v1389 = vsel %vm1386, %v1388, %v1384
    %v1390 = vmul.f32 1.0, %v1389
    %v1391 = vrcp.pop %v1341
    %v1392 = vmul.f32 %v1341, %v1391
    %v1393 = vsub.f32 1.0, %v1392
    %v1394 = vmul.f32 %v1391, %v1393
    %v1395 = vadd.f32 %v1391, %v1394
    %vm1396 = vweird.f32 %v1341
    %vm1397 = vweird.f32 %v1391
    %vm1398 = vmor %vm1396, %vm1397
    %v1399 = vsel %vm1398, %v1391, %v1395
    %v1400 = vand.u32 2147483647, %v1341
    %vm1401 = vcmp.eq.f32.partialorder %v1400, 8.507059e+37
    %v1402 = vand.u32 %v1341, 2147483648
    %v1403 = vor.u32 1.1754944e-38, %v1402
    %v1404 = vsel %vm1401, %v1403, %v1399
    %v1405 = vmul.f32 1.0, %v1404
    %v1406 = vrcp.pop %v1342
    %v1407 = vmul.f32 %v1342, %v1406
    %v1408 = vsub.f32 1.0, %v1407
    %v1409 = vmul.f32 %v1406, %v1408
    %v1410 = vadd.f32 %v1406, %v1409
    %vm1411 = vweird.f32 %v1342
    %vm1412 = vweird.f32 %v1406
    %vm1413 = vmor %vm1411, %vm1412
    %v1414 = vsel %vm1413, %v1406, %v1410
    %v1415 = vand.u32 2147483647, %v1342
    %vm1416 = vcmp.eq.f32.partialorder %v1415, 8.507059e+37
    %v1417 = vand.u32 %v1342, 2147483648
    %v1418 = vor.u32 1.1754944e-38, %v1417
    %v1419 = vsel %vm1416, %v1418, %v1414
    %v1420 = vmul.f32 1.0, %v1419
    %v1421 = vrcp.pop %v1343
    %v1422 = vmul.f32 %v1343, %v1421
    %v1423 = vsub.f32 1.0, %v1422
    %v1424 = vmul.f32 %v1421, %v1423
    %v1425 = vadd.f32 %v1421, %v1424
    %vm1426 = vweird.f32 %v1343
    %vm1427 = vweird.f32 %v1421
    %vm1428 = vmor %vm1426, %vm1427
    %v1429 = vsel %vm1428, %v1421, %v1425
    %v1430 = vand.u32 2147483647, %v1343
    %vm1431 = vcmp.eq.f32.partialorder %v1430, 8.507059e+37
    %v1432 = vand.u32 %v1343, 2147483648
    %v1433 = vor.u32 1.1754944e-38, %v1432
    %v1434 = vsel %vm1431, %v1433, %v1429
    %v1435 = vmul.f32 1.0, %v1434
    %v1436 = vrcp.pop %v1344
    %v1437 = vmul.f32 %v1344, %v1436
    %v1438 = vsub.f32 1.0, %v1437
    %v1439 = vmul.f32 %v1436, %v1438
    %v1440 = vadd.f32 %v1436, %v1439
    %vm1441 = vweird.f32 %v1344
    %vm1442 = vweird.f32 %v1436
    %vm1443 = vmor %vm1441, %vm1442
    %v1444 = vsel %vm1443, %v1436, %v1440
    %v1445 = vand.u32 2147483647, %v1344
    %vm1446 = vcmp.eq.f32.partialorder %v1445, 8.507059e+37
    %v1447 = vand.u32 %v1344, 2147483648
    %v1448 = vor.u32 1.1754944e-38, %v1447
    %v1449 = vsel %vm1446, %v1448, %v1444
    %v1450 = vmul.f32 1.0, %v1449
    %v1451 = vrcp.pop %v1345
    %v1452 = vmul.f32 %v1345, %v1451
    %v1453 = vsub.f32 1.0, %v1452
    %v1454 = vmul.f32 %v1451, %v1453
    %v1455 = vadd.f32 %v1451, %v1454
    %vm1456 = vweird.f32 %v1345
    %vm1457 = vweird.f32 %v1451
    %vm1458 = vmor %vm1456, %vm1457
    %v1459 = vsel %vm1458, %v1451, %v1455
    %v1460 = vand.u32 2147483647, %v1345
    %vm1461 = vcmp.eq.f32.partialorder %v1460, 8.507059e+37
    %v1462 = vand.u32 %v1345, 2147483648
    %v1463 = vor.u32 1.1754944e-38, %v1462
    %v1464 = vsel %vm1461, %v1463, %v1459
    %v1465 = vmul.f32 1.0, %v1464
    %v1466 = vxor.u32 %v1283, 2147483648
    %v1467 = vxor.u32 %v1287, 2147483648
    %v1468 = vxor.u32 %v1291, 2147483648
    %v1469 = vxor.u32 %v1295, 2147483648
    %v1470 = vxor.u32 %v1299, 2147483648
    %v1471 = vxor.u32 %v1303, 2147483648
    %v1472 = vxor.u32 %v1307, 2147483648
    %v1473 = vxor.u32 %v1311, 2147483648
    %v1474 = vmul.f32 %v1466, 1.442695
    %v1475 = vpow.pop %v1474
    %v1476 = vmul.f32 %v1467, 1.442695
    %v1477 = vpow.pop %v1476
    %v1478 = vmul.f32 %v1468, 1.442695
    %v1479 = vpow.pop %v1478
    %v1480 = vmul.f32 %v1469, 1.442695
    %v1481 = vpow.pop %v1480
    %v1482 = vmul.f32 %v1470, 1.442695
    %v1483 = vpow.pop %v1482
    %v1484 = vmul.f32 %v1471, 1.442695
    %v1485 = vpow.pop %v1484
    %v1486 = vmul.f32 %v1472, 1.442695
    %v1487 = vpow.pop %v1486
    %v1488 = vmul.f32 %v1473, 1.442695
    %v1489 = vpow.pop %v1488
    %v1490 = vadd.f32 %v1475, 1.0
    %v1491 = vadd.f32 %v1477, 1.0
    %v1492 = vadd.f32 %v1479, 1.0
    %v1493 = vadd.f32 %v1481, 1.0
    %v1494 = vadd.f32 %v1483, 1.0
    %v1495 = vadd.f32 %v1485, 1.0
    %v1496 = vadd.f32 %v1487, 1.0
    %v1497 = vadd.f32 %v1489, 1.0
    %v1498 = vrcp.pop %v1490
    %v1499 = vmul.f32 %v1490, %v1498
    %v1500 = vsub.f32 1.0, %v1499
    %v1501 = vmul.f32 %v1498, %v1500
    %v1502 = vadd.f32 %v1498, %v1501
    %vm1503 = vweird.f32 %v1490
    %vm1504 = vweird.f32 %v1498
    %vm1505 = vmor %vm1503, %vm1504
    %v1506 = vsel %vm1505, %v1498, %v1502
    %v1507 = vand.u32 2147483647, %v1490
    %vm1508 = vcmp.eq.f32.partialorder %v1507, 8.507059e+37
    %v1509 = vand.u32 %v1490, 2147483648
    %v1510 = vor.u32 1.1754944e-38, %v1509
    %v1511 = vsel %vm1508, %v1510, %v1506
    %v1512 = vmul.f32 1.0, %v1511
    %v1513 = vrcp.pop %v1491
    %v1514 = vmul.f32 %v1491, %v1513
    %v1515 = vsub.f32 1.0, %v1514
    %v1516 = vmul.f32 %v1513, %v1515
    %v1517 = vadd.f32 %v1513, %v1516
    %vm1518 = vweird.f32 %v1491
    %vm1519 = vweird.f32 %v1513
    %vm1520 = vmor %vm1518, %vm1519
    %v1521 = vsel %vm1520, %v1513, %v1517
    %v1522 = vand.u32 2147483647, %v1491
    %vm1523 = vcmp.eq.f32.partialorder %v1522, 8.507059e+37
    %v1524 = vand.u32 %v1491, 2147483648
    %v1525 = vor.u32 1.1754944e-38, %v1524
    %v1526 = vsel %vm1523, %v1525, %v1521
    %v1527 = vmul.f32 1.0, %v1526
    %v1528 = vrcp.pop %v1492
    %v1529 = vmul.f32 %v1492, %v1528
    %v1530 = vsub.f32 1.0, %v1529
    %v1531 = vmul.f32 %v1528, %v1530
    %v1532 = vadd.f32 %v1528, %v1531
    %vm1533 = vweird.f32 %v1492
    %vm1534 = vweird.f32 %v1528
    %vm1535 = vmor %vm1533, %vm1534
    %v1536 = vsel %vm1535, %v1528, %v1532
    %v1537 = vand.u32 2147483647, %v1492
    %vm1538 = vcmp.eq.f32.partialorder %v1537, 8.507059e+37
    %v1539 = vand.u32 %v1492, 2147483648
    %v1540 = vor.u32 1.1754944e-38, %v1539
    %v1541 = vsel %vm1538, %v1540, %v1536
    %v1542 = vmul.f32 1.0, %v1541
    %v1543 = vrcp.pop %v1493
    %v1544 = vmul.f32 %v1493, %v1543
    %v1545 = vsub.f32 1.0, %v1544
    %v1546 = vmul.f32 %v1543, %v1545
    %v1547 = vadd.f32 %v1543, %v1546
    %vm1548 = vweird.f32 %v1493
    %vm1549 = vweird.f32 %v1543
    %vm1550 = vmor %vm1548, %vm1549
    %v1551 = vsel %vm1550, %v1543, %v1547
    %v1552 = vand.u32 2147483647, %v1493
    %vm1553 = vcmp.eq.f32.partialorder %v1552, 8.507059e+37
    %v1554 = vand.u32 %v1493, 2147483648
    %v1555 = vor.u32 1.1754944e-38, %v1554
    %v1556 = vsel %vm1553, %v1555, %v1551
    %v1557 = vmul.f32 1.0, %v1556
    %v1558 = vrcp.pop %v1494
    %v1559 = vmul.f32 %v1494, %v1558
    %v1560 = vsub.f32 1.0, %v1559
    %v1561 = vmul.f32 %v1558, %v1560
    %v1562 = vadd.f32 %v1558, %v1561
    %vm1563 = vweird.f32 %v1494
    %vm1564 = vweird.f32 %v1558
    %vm1565 = vmor %vm1563, %vm1564
    %v1566 = vsel %vm1565, %v1558, %v1562
    %v1567 = vand.u32 2147483647, %v1494
    %vm1568 = vcmp.eq.f32.partialorder %v1567, 8.507059e+37
    %v1569 = vand.u32 %v1494, 2147483648
    %v1570 = vor.u32 1.1754944e-38, %v1569
    %v1571 = vsel %vm1568, %v1570, %v1566
    %v1572 = vmul.f32 1.0, %v1571
    %v1573 = vrcp.pop %v1495
    %v1574 = vmul.f32 %v1495, %v1573
    %v1575 = vsub.f32 1.0, %v1574
    %v1576 = vmul.f32 %v1573, %v1575
    %v1577 = vadd.f32 %v1573, %v1576
    %vm1578 = vweird.f32 %v1495
    %vm1579 = vweird.f32 %v1573
    %vm1580 = vmor %vm1578, %vm1579
    %v1581 = vsel %vm1580, %v1573, %v1577
    %v1582 = vand.u32 2147483647, %v1495
    %vm1583 = vcmp.eq.f32.partialorder %v1582, 8.507059e+37
    %v1584 = vand.u32 %v1495, 2147483648
    %v1585 = vor.u32 1.1754944e-38, %v1584
    %v1586 = vsel %vm1583, %v1585, %v1581
    %v1587 = vmul.f32 1.0, %v1586
    %v1588 = vrcp.pop %v1496
    %v1589 = vmul.f32 %v1496, %v1588
    %v1590 = vsub.f32 1.0, %v1589
    %v1591 = vmul.f32 %v1588, %v1590
    %v1592 = vadd.f32 %v1588, %v1591
    %vm1593 = vweird.f32 %v1496
    %vm1594 = vweird.f32 %v1588
    %vm1595 = vmor %vm1593, %vm1594
    %v1596 = vsel %vm1595, %v1588, %v1592
    %v1597 = vand.u32 2147483647, %v1496
    %vm1598 = vcmp.eq.f32.partialorder %v1597, 8.507059e+37
    %v1599 = vand.u32 %v1496, 2147483648
    %v1600 = vor.u32 1.1754944e-38, %v1599
    %v1601 = vsel %vm1598, %v1600, %v1596
    %v1602 = vmul.f32 1.0, %v1601
    %v1603 = vrcp.pop %v1497
    %v1604 = vmul.f32 %v1497, %v1603
    %v1605 = vsub.f32 1.0, %v1604
    %v1606 = vmul.f32 %v1603, %v1605
    %v1607 = vadd.f32 %v1603, %v1606
    %vm1608 = vweird.f32 %v1497
    %vm1609 = vweird.f32 %v1603
    %vm1610 = vmor %vm1608, %vm1609
    %v1611 = vsel %vm1610, %v1603, %v1607
    %v1612 = vand.u32 2147483647, %v1497
    %vm1613 = vcmp.eq.f32.partialorder %v1612, 8.507059e+37
    %v1614 = vand.u32 %v1497, 2147483648
    %v1615 = vor.u32 1.1754944e-38, %v1614
    %v1616 = vsel %vm1613, %v1615, %v1611
    %v1617 = vmul.f32 1.0, %v1616
    %v1618 = vtanh.pop %v1284
    %v1619 = vtanh.pop %v1288
    %v1620 = vtanh.pop %v1292
    %v1621 = vtanh.pop %v1296
    %v1622 = vtanh.pop %v1300
    %v1623 = vtanh.pop %v1304
    %v1624 = vtanh.pop %v1308
    %v1625 = vtanh.pop %v1312
    %v1626 = vxor.u32 %v1285, 2147483648
    %v1627 = vxor.u32 %v1289, 2147483648
    %v1628 = vxor.u32 %v1293, 2147483648
    %v1629 = vxor.u32 %v1297, 2147483648
    %v1630 = vxor.u32 %v1301, 2147483648
    %v1631 = vxor.u32 %v1305, 2147483648
    %v1632 = vxor.u32 %v1309, 2147483648
    %v1633 = vxor.u32 %v1313, 2147483648
    %v1634 = vmul.f32 %v1626, 1.442695
    %v1635 = vpow.pop %v1634
    %v1636 = vmul.f32 %v1627, 1.442695
    %v1637 = vpow.pop %v1636
    %v1638 = vmul.f32 %v1628, 1.442695
    %v1639 = vpow.pop %v1638
    %v1640 = vmul.f32 %v1629, 1.442695
    %v1641 = vpow.pop %v1640
    %v1642 = vmul.f32 %v1630, 1.442695
    %v1643 = vpow.pop %v1642
    %v1644 = vmul.f32 %v1631, 1.442695
    %v1645 = vpow.pop %v1644
    %v1646 = vmul.f32 %v1632, 1.442695
    %v1647 = vpow.pop %v1646
    %v1648 = vmul.f32 %v1633, 1.442695
    %v1649 = vpow.pop %v1648
    %v1650 = vadd.f32 %v1635, 1.0
    %v1651 = vadd.f32 %v1637, 1.0
    %v1652 = vadd.f32 %v1639, 1.0
    %v1653 = vadd.f32 %v1641, 1.0
    %v1654 = vadd.f32 %v1643, 1.0
    %v1655 = vadd.f32 %v1645, 1.0
    %v1656 = vadd.f32 %v1647, 1.0
    %v1657 = vadd.f32 %v1649, 1.0
    %v1658 = vrcp.pop %v1650
    %v1659 = vmul.f32 %v1650, %v1658
    %v1660 = vsub.f32 1.0, %v1659
    %v1661 = vmul.f32 %v1658, %v1660
    %v1662 = vadd.f32 %v1658, %v1661
    %vm1663 = vweird.f32 %v1650
    %vm1664 = vweird.f32 %v1658
    %vm1665 = vmor %vm1663, %vm1664
    %v1666 = vsel %vm1665, %v1658, %v1662
    %v1667 = vand.u32 2147483647, %v1650
    %vm1668 = vcmp.eq.f32.partialorder %v1667, 8.507059e+37
    %v1669 = vand.u32 %v1650, 2147483648
    %v1670 = vor.u32 1.1754944e-38, %v1669
    %v1671 = vsel %vm1668, %v1670, %v1666
    %v1672 = vmul.f32 1.0, %v1671
    %v1673 = vrcp.pop %v1651
    %v1674 = vmul.f32 %v1651, %v1673
    %v1675 = vsub.f32 1.0, %v1674
    %v1676 = vmul.f32 %v1673, %v1675
    %v1677 = vadd.f32 %v1673, %v1676
    %vm1678 = vweird.f32 %v1651
    %vm1679 = vweird.f32 %v1673
    %vm1680 = vmor %vm1678, %vm1679
    %v1681 = vsel %vm1680, %v1673, %v1677
    %v1682 = vand.u32 2147483647, %v1651
    %vm1683 = vcmp.eq.f32.partialorder %v1682, 8.507059e+37
    %v1684 = vand.u32 %v1651, 2147483648
    %v1685 = vor.u32 1.1754944e-38, %v1684
    %v1686 = vsel %vm1683, %v1685, %v1681
    %v1687 = vmul.f32 1.0, %v1686
    %v1688 = vrcp.pop %v1652
    %v1689 = vmul.f32 %v1652, %v1688
    %v1690 = vsub.f32 1.0, %v1689
    %v1691 = vmul.f32 %v1688, %v1690
    %v1692 = vadd.f32 %v1688, %v1691
    %vm1693 = vweird.f32 %v1652
    %vm1694 = vweird.f32 %v1688
    %vm1695 = vmor %vm1693, %vm1694
    %v1696 = vsel %vm1695, %v1688, %v1692
    %v1697 = vand.u32 2147483647, %v1652
    %vm1698 = vcmp.eq.f32.partialorder %v1697, 8.507059e+37
    %v1699 = vand.u32 %v1652, 2147483648
    %v1700 = vor.u32 1.1754944e-38, %v1699
    %v1701 = vsel %vm1698, %v1700, %v1696
    %v1702 = vmul.f32 1.0, %v1701
    %v1703 = vrcp.pop %v1653
    %v1704 = vmul.f32 %v1653, %v1703
    %v1705 = vsub.f32 1.0, %v1704
    %v1706 = vmul.f32 %v1703, %v1705
    %v1707 = vadd.f32 %v1703, %v1706
    %vm1708 = vweird.f32 %v1653
    %vm1709 = vweird.f32 %v1703
    %vm1710 = vmor %vm1708, %vm1709
    %v1711 = vsel %vm1710, %v1703, %v1707
    %v1712 = vand.u32 2147483647, %v1653
    %vm1713 = vcmp.eq.f32.partialorder %v1712, 8.507059e+37
    %v1714 = vand.u32 %v1653, 2147483648
    %v1715 = vor.u32 1.1754944e-38, %v1714
    %v1716 = vsel %vm1713, %v1715, %v1711
    %v1717 = vmul.f32 1.0, %v1716
    %v1718 = vrcp.pop %v1654
    %v1719 = vmul.f32 %v1654, %v1718
    %v1720 = vsub.f32 1.0, %v1719
    %v1721 = vmul.f32 %v1718, %v1720
    %v1722 = vadd.f32 %v1718, %v1721
    %vm1723 = vweird.f32 %v1654
    %vm1724 = vweird.f32 %v1718
    %vm1725 = vmor %vm1723, %vm1724
    %v1726 = vsel %vm1725, %v1718, %v1722
    %v1727 = vand.u32 2147483647, %v1654
    %vm1728 = vcmp.eq.f32.partialorder %v1727, 8.507059e+37
    %v1729 = vand.u32 %v1654, 2147483648
    %v1730 = vor.u32 1.1754944e-38, %v1729
    %v1731 = vsel %vm1728, %v1730, %v1726
    %v1732 = vmul.f32 1.0, %v1731
    %v1733 = vrcp.pop %v1655
    %v1734 = vmul.f32 %v1655, %v1733
    %v1735 = vsub.f32 1.0, %v1734
    %v1736 = vmul.f32 %v1733, %v1735
    %v1737 = vadd.f32 %v1733, %v1736
    %vm1738 = vweird.f32 %v1655
    %vm1739 = vweird.f32 %v1733
    %vm1740 = vmor %vm1738, %vm1739
    %v1741 = vsel %vm1740, %v1733, %v1737
    %v1742 = vand.u32 2147483647, %v1655
    %vm1743 = vcmp.eq.f32.partialorder %v1742, 8.507059e+37
    %v1744 = vand.u32 %v1655, 2147483648
    %v1745 = vor.u32 1.1754944e-38, %v1744
    %v1746 = vsel %vm1743, %v1745, %v1741
    %v1747 = vmul.f32 1.0, %v1746
    %v1748 = vrcp.pop %v1656
    %v1749 = vmul.f32 %v1656, %v1748
    %v1750 = vsub.f32 1.0, %v1749
    %v1751 = vmul.f32 %v1748, %v1750
    %v1752 = vadd.f32 %v1748, %v1751
    %vm1753 = vweird.f32 %v1656
    %vm1754 = vweird.f32 %v1748
    %vm1755 = vmor %vm1753, %vm1754
    %v1756 = vsel %vm1755, %v1748, %v1752
    %v1757 = vand.u32 2147483647, %v1656
    %vm1758 = vcmp.eq.f32.partialorder %v1757, 8.507059e+37
    %v1759 = vand.u32 %v1656, 2147483648
    %v1760 = vor.u32 1.1754944e-38, %v1759
    %v1761 = vsel %vm1758, %v1760, %v1756
    %v1762 = vmul.f32 1.0, %v1761
    %v1763 = vrcp.pop %v1657
    %v1764 = vmul.f32 %v1657, %v1763
    %v1765 = vsub.f32 1.0, %v1764
    %v1766 = vmul.f32 %v1763, %v1765
    %v1767 = vadd.f32 %v1763, %v1766
    %vm1768 = vweird.f32 %v1657
    %vm1769 = vweird.f32 %v1763
    %vm1770 = vmor %vm1768, %vm1769
    %v1771 = vsel %vm1770, %v1763, %v1767
    %v1772 = vand.u32 2147483647, %v1657
    %vm1773 = vcmp.eq.f32.partialorder %v1772, 8.507059e+37
    %v1774 = vand.u32 %v1657, 2147483648
    %v1775 = vor.u32 1.1754944e-38, %v1774
    %v1776 = vsel %vm1773, %v1775, %v1771
    %v1777 = vmul.f32 1.0, %v1776
    %v1786 = vrot.slane %v1084, 7
    %v1787 = vrot.slane %v1085, 7
    %v1788 = vrot.slane %v1086, 7
    %v1789 = vrot.slane %v1087, 7
    %v1790 = vrot.slane %v1088, 7
    %v1791 = vrot.slane %v1089, 7
    %v1792 = vrot.slane %v1090, 7
    %v1793 = vrot.slane %v1091, 7
    %v1802 = vmul.f32 %v1512, %v1786
    %v1803 = vmul.f32 %v1527, %v1787
    %v1804 = vmul.f32 %v1542, %v1788
    %v1805 = vmul.f32 %v1557, %v1789
    %v1806 = vmul.f32 %v1572, %v1790
    %v1807 = vmul.f32 %v1587, %v1791
    %v1808 = vmul.f32 %v1602, %v1792
    %v1809 = vmul.f32 %v1617, %v1793
    %v1810 = vmul.f32 %v1360, %v1618
    %v1811 = vmul.f32 %v1375, %v1619
    %v1812 = vmul.f32 %v1390, %v1620
    %v1813 = vmul.f32 %v1405, %v1621
    %v1814 = vmul.f32 %v1420, %v1622
    %v1815 = vmul.f32 %v1435, %v1623
    %v1816 = vmul.f32 %v1450, %v1624
    %v1817 = vmul.f32 %v1465, %v1625
    %v1818 = vadd.f32 %v1802, %v1810
    %v1819 = vadd.f32 %v1803, %v1811
    %v1820 = vadd.f32 %v1804, %v1812
    %v1821 = vadd.f32 %v1805, %v1813
    %v1822 = vadd.f32 %v1806, %v1814
    %v1823 = vadd.f32 %v1807, %v1815
    %v1824 = vadd.f32 %v1808, %v1816
    %v1825 = vadd.f32 %v1809, %v1817
    %v1826 = vtanh.pop %v1818
    %v1827 = vtanh.pop %v1819
    %v1828 = vtanh.pop %v1820
    %v1829 = vtanh.pop %v1821
    %v1830 = vtanh.pop %v1822
    %v1831 = vtanh.pop %v1823
    %v1832 = vtanh.pop %v1824
    %v1833 = vtanh.pop %v1825
    %v1834 = vmul.f32 %v1672, %v1826
    %v1835 = vmul.f32 %v1687, %v1827
    %v1836 = vmul.f32 %v1702, %v1828
    %v1837 = vmul.f32 %v1717, %v1829
    %v1838 = vmul.f32 %v1732, %v1830
    %v1839 = vmul.f32 %v1747, %v1831
    %v1840 = vmul.f32 %v1762, %v1832
    %v1841 = vmul.f32 %v1777, %v1833
    %v1850 = vrot.slane %v1834, 1
    %v1851 = vsel %vm1117, %v1835, %v1850
    %v1852 = vrot.slane %v1836, 7
    %v1853 = vsel %vm1120, %v1852, %v1851
    %v1854 = vrot.slane %v1837, 6
    %v1855 = vsel %vm1123, %v1854, %v1853
    %v1856 = vrot.slane %v1838, 5
    %v1857 = vsel %vm1126, %v1856, %v1855
    %v1858 = vrot.slane %v1839, 4
    %v1859 = vsel %vm1129, %v1858, %v1857
    %v1860 = vrot.slane %v1840, 3
    %v1861 = vsel %vm1132, %v1860, %v1859
    %v1862 = vrot.slane %v1841, 2
    %v1863 = vsel %vm1135, %v1862, %v1861
    %1865 = vmatpush.msra.mxu0 %v406
    %1866 = vmatpush.msra.mxu0 %v402
    %1867 = vmatpush.msra.mxu0 %v398
    %1868 = vmatpush.msra.mxu0 %v394
    %1869 = vmatpush.msra.mxu0 %v390
    %1870 = vmatpush.msra.mxu0 %v386
    %1871 = vmatpush.msra.mxu0 %v382
    %1872 = vmatpush.msra.mxu0 %v378
    %1873 = vmatpush.msra.mxu0 %v374
    %1874 = vmatpush.msra.mxu0 %v370
    %1875 = vmatpush.msra.mxu0 %v366
    %1876 = vmatpush.msra.mxu0 %v362
    %1877 = vmatpush.msra.mxu0 %v358
    %1878 = vmatpush.msra.mxu0 %v354
    %1879 = vmatpush.msra.mxu0 %v350
    %1880 = vmatpush.msra.mxu0 %v346
    %1881 = vmatmul.f32.gmra.mxu0 %v1863
    %v1882 = vpop.f32.mrf.mxu0
    %v1883 = vadd.f32 0.0, %v1882
    %1884 = vdwg.mxu0
    %1885 = vmatpush.msra.mxu0 %v407
    %1886 = vmatpush.msra.mxu0 %v403
    %1887 = vmatpush.msra.mxu0 %v399
    %1888 = vmatpush.msra.mxu0 %v395
    %1889 = vmatpush.msra.mxu0 %v391
    %1890 = vmatpush.msra.mxu0 %v387
    %1891 = vmatpush.msra.mxu0 %v383
    %1892 = vmatpush.msra.mxu0 %v379
    %1893 = vmatpush.msra.mxu0 %v375
    %1894 = vmatpush.msra.mxu0 %v371
    %1895 = vmatpush.msra.mxu0 %v367
    %1896 = vmatpush.msra.mxu0 %v363
    %1897 = vmatpush.msra.mxu0 %v359
    %1898 = vmatpush.msra.mxu0 %v355
    %1899 = vmatpush.msra.mxu0 %v351
    %1900 = vmatpush.msra.mxu0 %v347
    %1901 = vmatmul.f32.gmra.mxu0 %v1863
    %v1902 = vpop.f32.mrf.mxu0
    %v1903 = vadd.f32 0.0, %v1902
    %1904 = vdwg.mxu0
    %1905 = vmatpush.msra.mxu0 %v408
    %1906 = vmatpush.msra.mxu0 %v404
    %1907 = vmatpush.msra.mxu0 %v400
    %1908 = vmatpush.msra.mxu0 %v396
    %1909 = vmatpush.msra.mxu0 %v392
    %1910 = vmatpush.msra.mxu0 %v388
    %1911 = vmatpush.msra.mxu0 %v384
    %1912 = vmatpush.msra.mxu0 %v380
    %1913 = vmatpush.msra.mxu0 %v376
    %1914 = vmatpush.msra.mxu0 %v372
    %1915 = vmatpush.msra.mxu0 %v368
    %1916 = vmatpush.msra.mxu0 %v364
    %1917 = vmatpush.msra.mxu0 %v360
    %1918 = vmatpush.msra.mxu0 %v356
    %1919 = vmatpush.msra.mxu0 %v352
    %1920 = vmatpush.msra.mxu0 %v348
    %1921 = vmatmul.f32.gmra.mxu0 %v1863
    %v1922 = vpop.f32.mrf.mxu0
    %v1923 = vadd.f32 0.0, %v1922
    %1924 = vdwg.mxu0
    %1925 = vmatpush.msra.mxu0 %v409
    %1926 = vmatpush.msra.mxu0 %v405
    %1927 = vmatpush.msra.mxu0 %v401
    %1928 = vmatpush.msra.mxu0 %v397
    %1929 = vmatpush.msra.mxu0 %v393
    %1930 = vmatpush.msra.mxu0 %v389
    %1931 = vmatpush.msra.mxu0 %v385
    %1932 = vmatpush.msra.mxu0 %v381
    %1933 = vmatpush.msra.mxu0 %v377
    %1934 = vmatpush.msra.mxu0 %v373
    %1935 = vmatpush.msra.mxu0 %v369
    %1936 = vmatpush.msra.mxu0 %v365
    %1937 = vmatpush.msra.mxu0 %v361
    %1938 = vmatpush.msra.mxu0 %v357
    %1939 = vmatpush.msra.mxu0 %v353
    %1940 = vmatpush.msra.mxu0 %v349
    %1941 = vmatmul.f32.gmra.mxu0 %v1863
    %v1942 = vpop.f32.mrf.mxu0
    %v1943 = vadd.f32 0.0, %v1942
    %1944 = vdwg.mxu0
    %v1949 = vrot.slane %v1883, 6
    %v1950 = vrot.slane %v1903, 6
    %v1951 = vrot.slane %v1923, 6
    %v1952 = vrot.slane %v1943, 6
    %v1953 = vrot.slane %v1883, 7
    %v1954 = vrot.slane %v1903, 7
    %v1955 = vrot.slane %v1923, 7
    %v1956 = vrot.slane %v1943, 7
    %v1957 = vrot.slane %v1883, 1
    %v1958 = vrot.slane %v1903, 1
    %v1959 = vrot.slane %v1923, 1
    %v1960 = vrot.slane %v1943, 1
    %v1961 = vrot.slane %v1883, 2
    %v1962 = vrot.slane %v1903, 2
    %v1963 = vrot.slane %v1923, 2
    %v1964 = vrot.slane %v1943, 2
    %v1965 = vrot.slane %v1883, 3
    %v1966 = vrot.slane %v1903, 3
    %v1967 = vrot.slane %v1923, 3
    %v1968 = vrot.slane %v1943, 3
    %v1969 = vrot.slane %v1883, 4
    %v1970 = vrot.slane %v1903, 4
    %v1971 = vrot.slane %v1923, 4
    %v1972 = vrot.slane %v1943, 4
    %v1973 = vrot.slane %v1883, 5
    %v1974 = vrot.slane %v1903, 5
    %v1975 = vrot.slane %v1923, 5
    %v1976 = vrot.slane %v1943, 5
    %v2009 = vadd.f32 %v200, %v1949
    %v2010 = vadd.f32 %v241, %v1950
    %v2011 = vadd.f32 %v282, %v1951
    %v2012 = vadd.f32 %v323, %v1952
    %v2013 = vadd.f32 %v203, %v1953
    %v2014 = vadd.f32 %v244, %v1954
    %v2015 = vadd.f32 %v285, %v1955
    %v2016 = vadd.f32 %v326, %v1956
    %v2017 = vadd.f32 %v206, %v1883
    %v2018 = vadd.f32 %v247, %v1903
    %v2019 = vadd.f32 %v288, %v1923
    %v2020 = vadd.f32 %v329, %v1943
    %v2021 = vadd.f32 %v209, %v1957
    %v2022 = vadd.f32 %v250, %v1958
    %v2023 = vadd.f32 %v291, %v1959
    %v2024 = vadd.f32 %v332, %v1960
    %v2025 = vadd.f32 %v212, %v1961
    %v2026 = vadd.f32 %v253, %v1962
    %v2027 = vadd.f32 %v294, %v1963
    %v2028 = vadd.f32 %v335, %v1964
    %v2029 = vadd.f32 %v215, %v1965
    %v2030 = vadd.f32 %v256, %v1966
    %v2031 = vadd.f32 %v297, %v1967
    %v2032 = vadd.f32 %v338, %v1968
    %v2033 = vadd.f32 %v218, %v1969
    %v2034 = vadd.f32 %v259, %v1970
    %v2035 = vadd.f32 %v300, %v1971
    %v2036 = vadd.f32 %v341, %v1972
    %v2037 = vadd.f32 %v221, %v1973
    %v2038 = vadd.f32 %v262, %v1974
    %v2039 = vadd.f32 %v303, %v1975
    %v2040 = vadd.f32 %v344, %v1976
    %v2041 = vxor.u32 %v2009, 2147483648
    %v2042 = vxor.u32 %v2013, 2147483648
    %v2043 = vxor.u32 %v2017, 2147483648
    %v2044 = vxor.u32 %v2021, 2147483648
    %v2045 = vxor.u32 %v2025, 2147483648
    %v2046 = vxor.u32 %v2029, 2147483648
    %v2047 = vxor.u32 %v2033, 2147483648
    %v2048 = vxor.u32 %v2037, 2147483648
    %v2049 = vmul.f32 %v2041, 1.442695
    %v2050 = vpow.pop %v2049
    %v2051 = vmul.f32 %v2042, 1.442695
    %v2052 = vpow.pop %v2051
    %v2053 = vmul.f32 %v2043, 1.442695
    %v2054 = vpow.pop %v2053
    %v2055 = vmul.f32 %v2044, 1.442695
    %v2056 = vpow.pop %v2055
    %v2057 = vmul.f32 %v2045, 1.442695
    %v2058 = vpow.pop %v2057
    %v2059 = vmul.f32 %v2046, 1.442695
    %v2060 = vpow.pop %v2059
    %v2061 = vmul.f32 %v2047, 1.442695
    %v2062 = vpow.pop %v2061
    %v2063 = vmul.f32 %v2048, 1.442695
    %v2064 = vpow.pop %v2063
    %v2065 = vadd.f32 %v2050, 1.0
    %v2066 = vadd.f32 %v2052, 1.0
    %v2067 = vadd.f32 %v2054, 1.0
    %v2068 = vadd.f32 %v2056, 1.0
    %v2069 = vadd.f32 %v2058, 1.0
    %v2070 = vadd.f32 %v2060, 1.0
    %v2071 = vadd.f32 %v2062, 1.0
    %v2072 = vadd.f32 %v2064, 1.0
    %v2073 = vrcp.pop %v2065
    %v2074 = vmul.f32 %v2065, %v2073
    %v2075 = vsub.f32 1.0, %v2074
    %v2076 = vmul.f32 %v2073, %v2075
    %v2077 = vadd.f32 %v2073, %v2076
    %vm2078 = vweird.f32 %v2065
    %vm2079 = vweird.f32 %v2073
    %vm2080 = vmor %vm2078, %vm2079
    %v2081 = vsel %vm2080, %v2073, %v2077
    %v2082 = vand.u32 2147483647, %v2065
    %vm2083 = vcmp.eq.f32.partialorder %v2082, 8.507059e+37
    %v2084 = vand.u32 %v2065, 2147483648
    %v2085 = vor.u32 1.1754944e-38, %v2084
    %v2086 = vsel %vm2083, %v2085, %v2081
    %v2087 = vmul.f32 1.0, %v2086
    %v2088 = vrcp.pop %v2066
    %v2089 = vmul.f32 %v2066, %v2088
    %v2090 = vsub.f32 1.0, %v2089
    %v2091 = vmul.f32 %v2088, %v2090
    %v2092 = vadd.f32 %v2088, %v2091
    %vm2093 = vweird.f32 %v2066
    %vm2094 = vweird.f32 %v2088
    %vm2095 = vmor %vm2093, %vm2094
    %v2096 = vsel %vm2095, %v2088, %v2092
    %v2097 = vand.u32 2147483647, %v2066
    %vm2098 = vcmp.eq.f32.partialorder %v2097, 8.507059e+37
    %v2099 = vand.u32 %v2066, 2147483648
    %v2100 = vor.u32 1.1754944e-38, %v2099
    %v2101 = vsel %vm2098, %v2100, %v2096
    %v2102 = vmul.f32 1.0, %v2101
    %v2103 = vrcp.pop %v2067
    %v2104 = vmul.f32 %v2067, %v2103
    %v2105 = vsub.f32 1.0, %v2104
    %v2106 = vmul.f32 %v2103, %v2105
    %v2107 = vadd.f32 %v2103, %v2106
    %vm2108 = vweird.f32 %v2067
    %vm2109 = vweird.f32 %v2103
    %vm2110 = vmor %vm2108, %vm2109
    %v2111 = vsel %vm2110, %v2103, %v2107
    %v2112 = vand.u32 2147483647, %v2067
    %vm2113 = vcmp.eq.f32.partialorder %v2112, 8.507059e+37
    %v2114 = vand.u32 %v2067, 2147483648
    %v2115 = vor.u32 1.1754944e-38, %v2114
    %v2116 = vsel %vm2113, %v2115, %v2111
    %v2117 = vmul.f32 1.0, %v2116
    %v2118 = vrcp.pop %v2068
    %v2119 = vmul.f32 %v2068, %v2118
    %v2120 = vsub.f32 1.0, %v2119
    %v2121 = vmul.f32 %v2118, %v2120
    %v2122 = vadd.f32 %v2118, %v2121
    %vm2123 = vweird.f32 %v2068
    %vm2124 = vweird.f32 %v2118
    %vm2125 = vmor %vm2123, %vm2124
    %v2126 = vsel %vm2125, %v2118, %v2122
    %v2127 = vand.u32 2147483647, %v2068
    %vm2128 = vcmp.eq.f32.partialorder %v2127, 8.507059e+37
    %v2129 = vand.u32 %v2068, 2147483648
    %v2130 = vor.u32 1.1754944e-38, %v2129
    %v2131 = vsel %vm2128, %v2130, %v2126
    %v2132 = vmul.f32 1.0, %v2131
    %v2133 = vrcp.pop %v2069
    %v2134 = vmul.f32 %v2069, %v2133
    %v2135 = vsub.f32 1.0, %v2134
    %v2136 = vmul.f32 %v2133, %v2135
    %v2137 = vadd.f32 %v2133, %v2136
    %vm2138 = vweird.f32 %v2069
    %vm2139 = vweird.f32 %v2133
    %vm2140 = vmor %vm2138, %vm2139
    %v2141 = vsel %vm2140, %v2133, %v2137
    %v2142 = vand.u32 2147483647, %v2069
    %vm2143 = vcmp.eq.f32.partialorder %v2142, 8.507059e+37
    %v2144 = vand.u32 %v2069, 2147483648
    %v2145 = vor.u32 1.1754944e-38, %v2144
    %v2146 = vsel %vm2143, %v2145, %v2141
    %v2147 = vmul.f32 1.0, %v2146
    %v2148 = vrcp.pop %v2070
    %v2149 = vmul.f32 %v2070, %v2148
    %v2150 = vsub.f32 1.0, %v2149
    %v2151 = vmul.f32 %v2148, %v2150
    %v2152 = vadd.f32 %v2148, %v2151
    %vm2153 = vweird.f32 %v2070
    %vm2154 = vweird.f32 %v2148
    %vm2155 = vmor %vm2153, %vm2154
    %v2156 = vsel %vm2155, %v2148, %v2152
    %v2157 = vand.u32 2147483647, %v2070
    %vm2158 = vcmp.eq.f32.partialorder %v2157, 8.507059e+37
    %v2159 = vand.u32 %v2070, 2147483648
    %v2160 = vor.u32 1.1754944e-38, %v2159
    %v2161 = vsel %vm2158, %v2160, %v2156
    %v2162 = vmul.f32 1.0, %v2161
    %v2163 = vrcp.pop %v2071
    %v2164 = vmul.f32 %v2071, %v2163
    %v2165 = vsub.f32 1.0, %v2164
    %v2166 = vmul.f32 %v2163, %v2165
    %v2167 = vadd.f32 %v2163, %v2166
    %vm2168 = vweird.f32 %v2071
    %vm2169 = vweird.f32 %v2163
    %vm2170 = vmor %vm2168, %vm2169
    %v2171 = vsel %vm2170, %v2163, %v2167
    %v2172 = vand.u32 2147483647, %v2071
    %vm2173 = vcmp.eq.f32.partialorder %v2172, 8.507059e+37
    %v2174 = vand.u32 %v2071, 2147483648
    %v2175 = vor.u32 1.1754944e-38, %v2174
    %v2176 = vsel %vm2173, %v2175, %v2171
    %v2177 = vmul.f32 1.0, %v2176
    %v2178 = vrcp.pop %v2072
    %v2179 = vmul.f32 %v2072, %v2178
    %v2180 = vsub.f32 1.0, %v2179
    %v2181 = vmul.f32 %v2178, %v2180
    %v2182 = vadd.f32 %v2178, %v2181
    %vm2183 = vweird.f32 %v2072
    %vm2184 = vweird.f32 %v2178
    %vm2185 = vmor %vm2183, %vm2184
    %v2186 = vsel %vm2185, %v2178, %v2182
    %v2187 = vand.u32 2147483647, %v2072
    %vm2188 = vcmp.eq.f32.partialorder %v2187, 8.507059e+37
    %v2189 = vand.u32 %v2072, 2147483648
    %v2190 = vor.u32 1.1754944e-38, %v2189
    %v2191 = vsel %vm2188, %v2190, %v2186
    %v2192 = vmul.f32 1.0, %v2191
    %v2193 = vxor.u32 %v2010, 2147483648
    %v2194 = vxor.u32 %v2014, 2147483648
    %v2195 = vxor.u32 %v2018, 2147483648
    %v2196 = vxor.u32 %v2022, 2147483648
    %v2197 = vxor.u32 %v2026, 2147483648
    %v2198 = vxor.u32 %v2030, 2147483648
    %v2199 = vxor.u32 %v2034, 2147483648
    %v2200 = vxor.u32 %v2038, 2147483648
    %v2201 = vmul.f32 %v2193, 1.442695
    %v2202 = vpow.pop %v2201
    %v2203 = vmul.f32 %v2194, 1.442695
    %v2204 = vpow.pop %v2203
    %v2205 = vmul.f32 %v2195, 1.442695
    %v2206 = vpow.pop %v2205
    %v2207 = vmul.f32 %v2196, 1.442695
    %v2208 = vpow.pop %v2207
    %v2209 = vmul.f32 %v2197, 1.442695
    %v2210 = vpow.pop %v2209
    %v2211 = vmul.f32 %v2198, 1.442695
    %v2212 = vpow.pop %v2211
    %v2213 = vmul.f32 %v2199, 1.442695
    %v2214 = vpow.pop %v2213
    %v2215 = vmul.f32 %v2200, 1.442695
    %v2216 = vpow.pop %v2215
    %v2217 = vadd.f32 %v2202, 1.0
    %v2218 = vadd.f32 %v2204, 1.0
    %v2219 = vadd.f32 %v2206, 1.0
    %v2220 = vadd.f32 %v2208, 1.0
    %v2221 = vadd.f32 %v2210, 1.0
    %v2222 = vadd.f32 %v2212, 1.0
    %v2223 = vadd.f32 %v2214, 1.0
    %v2224 = vadd.f32 %v2216, 1.0
    %v2225 = vrcp.pop %v2217
    %v2226 = vmul.f32 %v2217, %v2225
    %v2227 = vsub.f32 1.0, %v2226
    %v2228 = vmul.f32 %v2225, %v2227
    %v2229 = vadd.f32 %v2225, %v2228
    %vm2230 = vweird.f32 %v2217
    %vm2231 = vweird.f32 %v2225
    %vm2232 = vmor %vm2230, %vm2231
    %v2233 = vsel %vm2232, %v2225, %v2229
    %v2234 = vand.u32 2147483647, %v2217
    %vm2235 = vcmp.eq.f32.partialorder %v2234, 8.507059e+37
    %v2236 = vand.u32 %v2217, 2147483648
    %v2237 = vor.u32 1.1754944e-38, %v2236
    %v2238 = vsel %vm2235, %v2237, %v2233
    %v2239 = vmul.f32 1.0, %v2238
    %v2240 = vrcp.pop %v2218
    %v2241 = vmul.f32 %v2218, %v2240
    %v2242 = vsub.f32 1.0, %v2241
    %v2243 = vmul.f32 %v2240, %v2242
    %v2244 = vadd.f32 %v2240, %v2243
    %vm2245 = vweird.f32 %v2218
    %vm2246 = vweird.f32 %v2240
    %vm2247 = vmor %vm2245, %vm2246
    %v2248 = vsel %vm2247, %v2240, %v2244
    %v2249 = vand.u32 2147483647, %v2218
    %vm2250 = vcmp.eq.f32.partialorder %v2249, 8.507059e+37
    %v2251 = vand.u32 %v2218, 2147483648
    %v2252 = vor.u32 1.1754944e-38, %v2251
    %v2253 = vsel %vm2250, %v2252, %v2248
    %v2254 = vmul.f32 1.0, %v2253
    %v2255 = vrcp.pop %v2219
    %v2256 = vmul.f32 %v2219, %v2255
    %v2257 = vsub.f32 1.0, %v2256
    %v2258 = vmul.f32 %v2255, %v2257
    %v2259 = vadd.f32 %v2255, %v2258
    %vm2260 = vweird.f32 %v2219
    %vm2261 = vweird.f32 %v2255
    %vm2262 = vmor %vm2260, %vm2261
    %v2263 = vsel %vm2262, %v2255, %v2259
    %v2264 = vand.u32 2147483647, %v2219
    %vm2265 = vcmp.eq.f32.partialorder %v2264, 8.507059e+37
    %v2266 = vand.u32 %v2219, 2147483648
    %v2267 = vor.u32 1.1754944e-38, %v2266
    %v2268 = vsel %vm2265, %v2267, %v2263
    %v2269 = vmul.f32 1.0, %v2268
    %v2270 = vrcp.pop %v2220
    %v2271 = vmul.f32 %v2220, %v2270
    %v2272 = vsub.f32 1.0, %v2271
    %v2273 = vmul.f32 %v2270, %v2272
    %v2274 = vadd.f32 %v2270, %v2273
    %vm2275 = vweird.f32 %v2220
    %vm2276 = vweird.f32 %v2270
    %vm2277 = vmor %vm2275, %vm2276
    %v2278 = vsel %vm2277, %v2270, %v2274
    %v2279 = vand.u32 2147483647, %v2220
    %vm2280 = vcmp.eq.f32.partialorder %v2279, 8.507059e+37
    %v2281 = vand.u32 %v2220, 2147483648
    %v2282 = vor.u32 1.1754944e-38, %v2281
    %v2283 = vsel %vm2280, %v2282, %v2278
    %v2284 = vmul.f32 1.0, %v2283
    %v2285 = vrcp.pop %v2221
    %v2286 = vmul.f32 %v2221, %v2285
    %v2287 = vsub.f32 1.0, %v2286
    %v2288 = vmul.f32 %v2285, %v2287
    %v2289 = vadd.f32 %v2285, %v2288
    %vm2290 = vweird.f32 %v2221
    %vm2291 = vweird.f32 %v2285
    %vm2292 = vmor %vm2290, %vm2291
    %v2293 = vsel %vm2292, %v2285, %v2289
    %v2294 = vand.u32 2147483647, %v2221
    %vm2295 = vcmp.eq.f32.partialorder %v2294, 8.507059e+37
    %v2296 = vand.u32 %v2221, 2147483648
    %v2297 = vor.u32 1.1754944e-38, %v2296
    %v2298 = vsel %vm2295, %v2297, %v2293
    %v2299 = vmul.f32 1.0, %v2298
    %v2300 = vrcp.pop %v2222
    %v2301 = vmul.f32 %v2222, %v2300
    %v2302 = vsub.f32 1.0, %v2301
    %v2303 = vmul.f32 %v2300, %v2302
    %v2304 = vadd.f32 %v2300, %v2303
    %vm2305 = vweird.f32 %v2222
    %vm2306 = vweird.f32 %v2300
    %vm2307 = vmor %vm2305, %vm2306
    %v2308 = vsel %vm2307, %v2300, %v2304
    %v2309 = vand.u32 2147483647, %v2222
    %vm2310 = vcmp.eq.f32.partialorder %v2309, 8.507059e+37
    %v2311 = vand.u32 %v2222, 2147483648
    %v2312 = vor.u32 1.1754944e-38, %v2311
    %v2313 = vsel %vm2310, %v2312, %v2308
    %v2314 = vmul.f32 1.0, %v2313
    %v2315 = vrcp.pop %v2223
    %v2316 = vmul.f32 %v2223, %v2315
    %v2317 = vsub.f32 1.0, %v2316
    %v2318 = vmul.f32 %v2315, %v2317
    %v2319 = vadd.f32 %v2315, %v2318
    %vm2320 = vweird.f32 %v2223
    %vm2321 = vweird.f32 %v2315
    %vm2322 = vmor %vm2320, %vm2321
    %v2323 = vsel %vm2322, %v2315, %v2319
    %v2324 = vand.u32 2147483647, %v2223
    %vm2325 = vcmp.eq.f32.partialorder %v2324, 8.507059e+37
    %v2326 = vand.u32 %v2223, 2147483648
    %v2327 = vor.u32 1.1754944e-38, %v2326
    %v2328 = vsel %vm2325, %v2327, %v2323
    %v2329 = vmul.f32 1.0, %v2328
    %v2330 = vrcp.pop %v2224
    %v2331 = vmul.f32 %v2224, %v2330
    %v2332 = vsub.f32 1.0, %v2331
    %v2333 = vmul.f32 %v2330, %v2332
    %v2334 = vadd.f32 %v2330, %v2333
    %vm2335 = vweird.f32 %v2224
    %vm2336 = vweird.f32 %v2330
    %vm2337 = vmor %vm2335, %vm2336
    %v2338 = vsel %vm2337, %v2330, %v2334
    %v2339 = vand.u32 2147483647, %v2224
    %vm2340 = vcmp.eq.f32.partialorder %v2339, 8.507059e+37
    %v2341 = vand.u32 %v2224, 2147483648
    %v2342 = vor.u32 1.1754944e-38, %v2341
    %v2343 = vsel %vm2340, %v2342, %v2338
    %v2344 = vmul.f32 1.0, %v2343
    %v2345 = vtanh.pop %v2011
    %v2346 = vtanh.pop %v2015
    %v2347 = vtanh.pop %v2019
    %v2348 = vtanh.pop %v2023
    %v2349 = vtanh.pop %v2027
    %v2350 = vtanh.pop %v2031
    %v2351 = vtanh.pop %v2035
    %v2352 = vtanh.pop %v2039
    %v2353 = vxor.u32 %v2012, 2147483648
    %v2354 = vxor.u32 %v2016, 2147483648
    %v2355 = vxor.u32 %v2020, 2147483648
    %v2356 = vxor.u32 %v2024, 2147483648
    %v2357 = vxor.u32 %v2028, 2147483648
    %v2358 = vxor.u32 %v2032, 2147483648
    %v2359 = vxor.u32 %v2036, 2147483648
    %v2360 = vxor.u32 %v2040, 2147483648
    %v2361 = vmul.f32 %v2353, 1.442695
    %v2362 = vpow.pop %v2361
    %v2363 = vmul.f32 %v2354, 1.442695
    %v2364 = vpow.pop %v2363
    %v2365 = vmul.f32 %v2355, 1.442695
    %v2366 = vpow.pop %v2365
    %v2367 = vmul.f32 %v2356, 1.442695
    %v2368 = vpow.pop %v2367
    %v2369 = vmul.f32 %v2357, 1.442695
    %v2370 = vpow.pop %v2369
    %v2371 = vmul.f32 %v2358, 1.442695
    %v2372 = vpow.pop %v2371
    %v2373 = vmul.f32 %v2359, 1.442695
    %v2374 = vpow.pop %v2373
    %v2375 = vmul.f32 %v2360, 1.442695
    %v2376 = vpow.pop %v2375
    %v2377 = vadd.f32 %v2362, 1.0
    %v2378 = vadd.f32 %v2364, 1.0
    %v2379 = vadd.f32 %v2366, 1.0
    %v2380 = vadd.f32 %v2368, 1.0
    %v2381 = vadd.f32 %v2370, 1.0
    %v2382 = vadd.f32 %v2372, 1.0
    %v2383 = vadd.f32 %v2374, 1.0
    %v2384 = vadd.f32 %v2376, 1.0
    %v2385 = vrcp.pop %v2377
    %v2386 = vmul.f32 %v2377, %v2385
    %v2387 = vsub.f32 1.0, %v2386
    %v2388 = vmul.f32 %v2385, %v2387
    %v2389 = vadd.f32 %v2385, %v2388
    %vm2390 = vweird.f32 %v2377
    %vm2391 = vweird.f32 %v2385
    %vm2392 = vmor %vm2390, %vm2391
    %v2393 = vsel %vm2392, %v2385, %v2389
    %v2394 = vand.u32 2147483647, %v2377
    %vm2395 = vcmp.eq.f32.partialorder %v2394, 8.507059e+37
    %v2396 = vand.u32 %v2377, 2147483648
    %v2397 = vor.u32 1.1754944e-38, %v2396
    %v2398 = vsel %vm2395, %v2397, %v2393
    %v2399 = vmul.f32 1.0, %v2398
    %v2400 = vrcp.pop %v2378
    %v2401 = vmul.f32 %v2378, %v2400
    %v2402 = vsub.f32 1.0, %v2401
    %v2403 = vmul.f32 %v2400, %v2402
    %v2404 = vadd.f32 %v2400, %v2403
    %vm2405 = vweird.f32 %v2378
    %vm2406 = vweird.f32 %v2400
    %vm2407 = vmor %vm2405, %vm2406
    %v2408 = vsel %vm2407, %v2400, %v2404
    %v2409 = vand.u32 2147483647, %v2378
    %vm2410 = vcmp.eq.f32.partialorder %v2409, 8.507059e+37
    %v2411 = vand.u32 %v2378, 2147483648
    %v2412 = vor.u32 1.1754944e-38, %v2411
    %v2413 = vsel %vm2410, %v2412, %v2408
    %v2414 = vmul.f32 1.0, %v2413
    %v2415 = vrcp.pop %v2379
    %v2416 = vmul.f32 %v2379, %v2415
    %v2417 = vsub.f32 1.0, %v2416
    %v2418 = vmul.f32 %v2415, %v2417
    %v2419 = vadd.f32 %v2415, %v2418
    %vm2420 = vweird.f32 %v2379
    %vm2421 = vweird.f32 %v2415
    %vm2422 = vmor %vm2420, %vm2421
    %v2423 = vsel %vm2422, %v2415, %v2419
    %v2424 = vand.u32 2147483647, %v2379
    %vm2425 = vcmp.eq.f32.partialorder %v2424, 8.507059e+37
    %v2426 = vand.u32 %v2379, 2147483648
    %v2427 = vor.u32 1.1754944e-38, %v2426
    %v2428 = vsel %vm2425, %v2427, %v2423
    %v2429 = vmul.f32 1.0, %v2428
    %v2430 = vrcp.pop %v2380
    %v2431 = vmul.f32 %v2380, %v2430
    %v2432 = vsub.f32 1.0, %v2431
    %v2433 = vmul.f32 %v2430, %v2432
    %v2434 = vadd.f32 %v2430, %v2433
    %vm2435 = vweird.f32 %v2380
    %vm2436 = vweird.f32 %v2430
    %vm2437 = vmor %vm2435, %vm2436
    %v2438 = vsel %vm2437, %v2430, %v2434
    %v2439 = vand.u32 2147483647, %v2380
    %vm2440 = vcmp.eq.f32.partialorder %v2439, 8.507059e+37
    %v2441 = vand.u32 %v2380, 2147483648
    %v2442 = vor.u32 1.1754944e-38, %v2441
    %v2443 = vsel %vm2440, %v2442, %v2438
    %v2444 = vmul.f32 1.0, %v2443
    %v2445 = vrcp.pop %v2381
    %v2446 = vmul.f32 %v2381, %v2445
    %v2447 = vsub.f32 1.0, %v2446
    %v2448 = vmul.f32 %v2445, %v2447
    %v2449 = vadd.f32 %v2445, %v2448
    %vm2450 = vweird.f32 %v2381
    %vm2451 = vweird.f32 %v2445
    %vm2452 = vmor %vm2450, %vm2451
    %v2453 = vsel %vm2452, %v2445, %v2449
    %v2454 = vand.u32 2147483647, %v2381
    %vm2455 = vcmp.eq.f32.partialorder %v2454, 8.507059e+37
    %v2456 = vand.u32 %v2381, 2147483648
    %v2457 = vor.u32 1.1754944e-38, %v2456
    %v2458 = vsel %vm2455, %v2457, %v2453
    %v2459 = vmul.f32 1.0, %v2458
    %v2460 = vrcp.pop %v2382
    %v2461 = vmul.f32 %v2382, %v2460
    %v2462 = vsub.f32 1.0, %v2461
    %v2463 = vmul.f32 %v2460, %v2462
    %v2464 = vadd.f32 %v2460, %v2463
    %vm2465 = vweird.f32 %v2382
    %vm2466 = vweird.f32 %v2460
    %vm2467 = vmor %vm2465, %vm2466
    %v2468 = vsel %vm2467, %v2460, %v2464
    %v2469 = vand.u32 2147483647, %v2382
    %vm2470 = vcmp.eq.f32.partialorder %v2469, 8.507059e+37
    %v2471 = vand.u32 %v2382, 2147483648
    %v2472 = vor.u32 1.1754944e-38, %v2471
    %v2473 = vsel %vm2470, %v2472, %v2468
    %v2474 = vmul.f32 1.0, %v2473
    %v2475 = vrcp.pop %v2383
    %v2476 = vmul.f32 %v2383, %v2475
    %v2477 = vsub.f32 1.0, %v2476
    %v2478 = vmul.f32 %v2475, %v2477
    %v2479 = vadd.f32 %v2475, %v2478
    %vm2480 = vweird.f32 %v2383
    %vm2481 = vweird.f32 %v2475
    %vm2482 = vmor %vm2480, %vm2481
    %v2483 = vsel %vm2482, %v2475, %v2479
    %v2484 = vand.u32 2147483647, %v2383
    %vm2485 = vcmp.eq.f32.partialorder %v2484, 8.507059e+37
    %v2486 = vand.u32 %v2383, 2147483648
    %v2487 = vor.u32 1.1754944e-38, %v2486
    %v2488 = vsel %vm2485, %v2487, %v2483
    %v2489 = vmul.f32 1.0, %v2488
    %v2490 = vrcp.pop %v2384
    %v2491 = vmul.f32 %v2384, %v2490
    %v2492 = vsub.f32 1.0, %v2491
    %v2493 = vmul.f32 %v2490, %v2492
    %v2494 = vadd.f32 %v2490, %v2493
    %vm2495 = vweird.f32 %v2384
    %vm2496 = vweird.f32 %v2490
    %vm2497 = vmor %vm2495, %vm2496
    %v2498 = vsel %vm2497, %v2490, %v2494
    %v2499 = vand.u32 2147483647, %v2384
    %vm2500 = vcmp.eq.f32.partialorder %v2499, 8.507059e+37
    %v2501 = vand.u32 %v2384, 2147483648
    %v2502 = vor.u32 1.1754944e-38, %v2501
    %v2503 = vsel %vm2500, %v2502, %v2498
    %v2504 = vmul.f32 1.0, %v2503
    %v2513 = vrot.slane %v1818, 7
    %v2514 = vrot.slane %v1819, 7
    %v2515 = vrot.slane %v1820, 7
    %v2516 = vrot.slane %v1821, 7
    %v2517 = vrot.slane %v1822, 7
    %v2518 = vrot.slane %v1823, 7
    %v2519 = vrot.slane %v1824, 7
    %v2520 = vrot.slane %v1825, 7
    %v2529 = vmul.f32 %v2239, %v2513
    %v2530 = vmul.f32 %v2254, %v2514
    %v2531 = vmul.f32 %v2269, %v2515
    %v2532 = vmul.f32 %v2284, %v2516
    %v2533 = vmul.f32 %v2299, %v2517
    %v2534 = vmul.f32 %v2314, %v2518
    %v2535 = vmul.f32 %v2329, %v2519
    %v2536 = vmul.f32 %v2344, %v2520
    %v2537 = vmul.f32 %v2087, %v2345
    %v2538 = vmul.f32 %v2102, %v2346
    %v2539 = vmul.f32 %v2117, %v2347
    %v2540 = vmul.f32 %v2132, %v2348
    %v2541 = vmul.f32 %v2147, %v2349
    %v2542 = vmul.f32 %v2162, %v2350
    %v2543 = vmul.f32 %v2177, %v2351
    %v2544 = vmul.f32 %v2192, %v2352
    %v2545 = vadd.f32 %v2529, %v2537
    %v2546 = vadd.f32 %v2530, %v2538
    %v2547 = vadd.f32 %v2531, %v2539
    %v2548 = vadd.f32 %v2532, %v2540
    %v2549 = vadd.f32 %v2533, %v2541
    %v2550 = vadd.f32 %v2534, %v2542
    %v2551 = vadd.f32 %v2535, %v2543
    %v2552 = vadd.f32 %v2536, %v2544
    %v2553 = vtanh.pop %v2545
    %v2554 = vtanh.pop %v2546
    %v2555 = vtanh.pop %v2547
    %v2556 = vtanh.pop %v2548
    %v2557 = vtanh.pop %v2549
    %v2558 = vtanh.pop %v2550
    %v2559 = vtanh.pop %v2551
    %v2560 = vtanh.pop %v2552
    %v2561 = vmul.f32 %v2399, %v2553
    %v2562 = vmul.f32 %v2414, %v2554
    %v2563 = vmul.f32 %v2429, %v2555
    %v2564 = vmul.f32 %v2444, %v2556
    %v2565 = vmul.f32 %v2459, %v2557
    %v2566 = vmul.f32 %v2474, %v2558
    %v2567 = vmul.f32 %v2489, %v2559
    %v2568 = vmul.f32 %v2504, %v2560
    %v2577 = vrot.slane %v2561, 2
    %v2578 = vrot.slane %v2562, 1
    %v2579 = vsel %vm1117, %v2578, %v2577
    %v2580 = vsel %vm1120, %v2563, %v2579
    %v2581 = vrot.slane %v2564, 7
    %v2582 = vsel %vm1123, %v2581, %v2580
    %v2583 = vrot.slane %v2565, 6
    %v2584 = vsel %vm1126, %v2583, %v2582
    %v2585 = vrot.slane %v2566, 5
    %v2586 = vsel %vm1129, %v2585, %v2584
    %v2587 = vrot.slane %v2567, 4
    %v2588 = vsel %vm1132, %v2587, %v2586
    %v2589 = vrot.slane %v2568, 3
    %v2590 = vsel %vm1135, %v2589, %v2588
    %2592 = vmatpush.msra.mxu0 %v406
    %2593 = vmatpush.msra.mxu0 %v402
    %2594 = vmatpush.msra.mxu0 %v398
    %2595 = vmatpush.msra.mxu0 %v394
    %2596 = vmatpush.msra.mxu0 %v390
    %2597 = vmatpush.msra.mxu0 %v386
    %2598 = vmatpush.msra.mxu0 %v382
    %2599 = vmatpush.msra.mxu0 %v378
    %2600 = vmatpush.msra.mxu0 %v374
    %2601 = vmatpush.msra.mxu0 %v370
    %2602 = vmatpush.msra.mxu0 %v366
    %2603 = vmatpush.msra.mxu0 %v362
    %2604 = vmatpush.msra.mxu0 %v358
    %2605 = vmatpush.msra.mxu0 %v354
    %2606 = vmatpush.msra.mxu0 %v350
    %2607 = vmatpush.msra.mxu0 %v346
    %2608 = vmatmul.f32.gmra.mxu0 %v2590
    %v2609 = vpop.f32.mrf.mxu0
    %v2610 = vadd.f32 0.0, %v2609
    %2611 = vdwg.mxu0
    %2612 = vmatpush.msra.mxu0 %v407
    %2613 = vmatpush.msra.mxu0 %v403
    %2614 = vmatpush.msra.mxu0 %v399
    %2615 = vmatpush.msra.mxu0 %v395
    %2616 = vmatpush.msra.mxu0 %v391
    %2617 = vmatpush.msra.mxu0 %v387
    %2618 = vmatpush.msra.mxu0 %v383
    %2619 = vmatpush.msra.mxu0 %v379
    %2620 = vmatpush.msra.mxu0 %v375
    %2621 = vmatpush.msra.mxu0 %v371
    %2622 = vmatpush.msra.mxu0 %v367
    %2623 = vmatpush.msra.mxu0 %v363
    %2624 = vmatpush.msra.mxu0 %v359
    %2625 = vmatpush.msra.mxu0 %v355
    %2626 = vmatpush.msra.mxu0 %v351
    %2627 = vmatpush.msra.mxu0 %v347
    %2628 = vmatmul.f32.gmra.mxu0 %v2590
    %v2629 = vpop.f32.mrf.mxu0
    %v2630 = vadd.f32 0.0, %v2629
    %2631 = vdwg.mxu0
    %2632 = vmatpush.msra.mxu0 %v408
    %2633 = vmatpush.msra.mxu0 %v404
    %2634 = vmatpush.msra.mxu0 %v400
    %2635 = vmatpush.msra.mxu0 %v396
    %2636 = vmatpush.msra.mxu0 %v392
    %2637 = vmatpush.msra.mxu0 %v388
    %2638 = vmatpush.msra.mxu0 %v384
    %2639 = vmatpush.msra.mxu0 %v380
    %2640 = vmatpush.msra.mxu0 %v376
    %2641 = vmatpush.msra.mxu0 %v372
    %2642 = vmatpush.msra.mxu0 %v368
    %2643 = vmatpush.msra.mxu0 %v364
    %2644 = vmatpush.msra.mxu0 %v360
    %2645 = vmatpush.msra.mxu0 %v356
    %2646 = vmatpush.msra.mxu0 %v352
    %2647 = vmatpush.msra.mxu0 %v348
    %2648 = vmatmul.f32.gmra.mxu0 %v2590
    %v2649 = vpop.f32.mrf.mxu0
    %v2650 = vadd.f32 0.0, %v2649
    %2651 = vdwg.mxu0
    %2652 = vmatpush.msra.mxu0 %v409
    %2653 = vmatpush.msra.mxu0 %v405
    %2654 = vmatpush.msra.mxu0 %v401
    %2655 = vmatpush.msra.mxu0 %v397
    %2656 = vmatpush.msra.mxu0 %v393
    %2657 = vmatpush.msra.mxu0 %v389
    %2658 = vmatpush.msra.mxu0 %v385
    %2659 = vmatpush.msra.mxu0 %v381
    %2660 = vmatpush.msra.mxu0 %v377
    %2661 = vmatpush.msra.mxu0 %v373
    %2662 = vmatpush.msra.mxu0 %v369
    %2663 = vmatpush.msra.mxu0 %v365
    %2664 = vmatpush.msra.mxu0 %v361
    %2665 = vmatpush.msra.mxu0 %v357
    %2666 = vmatpush.msra.mxu0 %v353
    %2667 = vmatpush.msra.mxu0 %v349
    %2668 = vmatmul.f32.gmra.mxu0 %v2590
    %v2669 = vpop.f32.mrf.mxu0
    %v2670 = vadd.f32 0.0, %v2669
    %2671 = vdwg.mxu0
    %v2676 = vrot.slane %v2610, 5
    %v2677 = vrot.slane %v2630, 5
    %v2678 = vrot.slane %v2650, 5
    %v2679 = vrot.slane %v2670, 5
    %v2680 = vrot.slane %v2610, 6
    %v2681 = vrot.slane %v2630, 6
    %v2682 = vrot.slane %v2650, 6
    %v2683 = vrot.slane %v2670, 6
    %v2684 = vrot.slane %v2610, 7
    %v2685 = vrot.slane %v2630, 7
    %v2686 = vrot.slane %v2650, 7
    %v2687 = vrot.slane %v2670, 7
    %v2688 = vrot.slane %v2610, 1
    %v2689 = vrot.slane %v2630, 1
    %v2690 = vrot.slane %v2650, 1
    %v2691 = vrot.slane %v2670, 1
    %v2692 = vrot.slane %v2610, 2
    %v2693 = vrot.slane %v2630, 2
    %v2694 = vrot.slane %v2650, 2
    %v2695 = vrot.slane %v2670, 2
    %v2696 = vrot.slane %v2610, 3
    %v2697 = vrot.slane %v2630, 3
    %v2698 = vrot.slane %v2650, 3
    %v2699 = vrot.slane %v2670, 3
    %v2700 = vrot.slane %v2610, 4
    %v2701 = vrot.slane %v2630, 4
    %v2702 = vrot.slane %v2650, 4
    %v2703 = vrot.slane %v2670, 4
    %v2736 = vadd.f32 %v200, %v2676
    %v2737 = vadd.f32 %v241, %v2677
    %v2738 = vadd.f32 %v282, %v2678
    %v2739 = vadd.f32 %v323, %v2679
    %v2740 = vadd.f32 %v203, %v2680
    %v2741 = vadd.f32 %v244, %v2681
    %v2742 = vadd.f32 %v285, %v2682
    %v2743 = vadd.f32 %v326, %v2683
    %v2744 = vadd.f32 %v206, %v2684
    %v2745 = vadd.f32 %v247, %v2685
    %v2746 = vadd.f32 %v288, %v2686
    %v2747 = vadd.f32 %v329, %v2687
    %v2748 = vadd.f32 %v209, %v2610
    %v2749 = vadd.f32 %v250, %v2630
    %v2750 = vadd.f32 %v291, %v2650
    %v2751 = vadd.f32 %v332, %v2670
    %v2752 = vadd.f32 %v212, %v2688
    %v2753 = vadd.f32 %v253, %v2689
    %v2754 = vadd.f32 %v294, %v2690
    %v2755 = vadd.f32 %v335, %v2691
    %v2756 = vadd.f32 %v215, %v2692
    %v2757 = vadd.f32 %v256, %v2693
    %v2758 = vadd.f32 %v297, %v2694
    %v2759 = vadd.f32 %v338, %v2695
    %v2760 = vadd.f32 %v218, %v2696
    %v2761 = vadd.f32 %v259, %v2697
    %v2762 = vadd.f32 %v300, %v2698
    %v2763 = vadd.f32 %v341, %v2699
    %v2764 = vadd.f32 %v221, %v2700
    %v2765 = vadd.f32 %v262, %v2701
    %v2766 = vadd.f32 %v303, %v2702
    %v2767 = vadd.f32 %v344, %v2703
    %v2768 = vxor.u32 %v2736, 2147483648
    %v2769 = vxor.u32 %v2740, 2147483648
    %v2770 = vxor.u32 %v2744, 2147483648
    %v2771 = vxor.u32 %v2748, 2147483648
    %v2772 = vxor.u32 %v2752, 2147483648
    %v2773 = vxor.u32 %v2756, 2147483648
    %v2774 = vxor.u32 %v2760, 2147483648
    %v2775 = vxor.u32 %v2764, 2147483648
    %v2776 = vmul.f32 %v2768, 1.442695
    %v2777 = vpow.pop %v2776
    %v2778 = vmul.f32 %v2769, 1.442695
    %v2779 = vpow.pop %v2778
    %v2780 = vmul.f32 %v2770, 1.442695
    %v2781 = vpow.pop %v2780
    %v2782 = vmul.f32 %v2771, 1.442695
    %v2783 = vpow.pop %v2782
    %v2784 = vmul.f32 %v2772, 1.442695
    %v2785 = vpow.pop %v2784
    %v2786 = vmul.f32 %v2773, 1.442695
    %v2787 = vpow.pop %v2786
    %v2788 = vmul.f32 %v2774, 1.442695
    %v2789 = vpow.pop %v2788
    %v2790 = vmul.f32 %v2775, 1.442695
    %v2791 = vpow.pop %v2790
    %v2792 = vadd.f32 %v2777, 1.0
    %v2793 = vadd.f32 %v2779, 1.0
    %v2794 = vadd.f32 %v2781, 1.0
    %v2795 = vadd.f32 %v2783, 1.0
    %v2796 = vadd.f32 %v2785, 1.0
    %v2797 = vadd.f32 %v2787, 1.0
    %v2798 = vadd.f32 %v2789, 1.0
    %v2799 = vadd.f32 %v2791, 1.0
    %v2800 = vrcp.pop %v2792
    %v2801 = vmul.f32 %v2792, %v2800
    %v2802 = vsub.f32 1.0, %v2801
    %v2803 = vmul.f32 %v2800, %v2802
    %v2804 = vadd.f32 %v2800, %v2803
    %vm2805 = vweird.f32 %v2792
    %vm2806 = vweird.f32 %v2800
    %vm2807 = vmor %vm2805, %vm2806
    %v2808 = vsel %vm2807, %v2800, %v2804
    %v2809 = vand.u32 2147483647, %v2792
    %vm2810 = vcmp.eq.f32.partialorder %v2809, 8.507059e+37
    %v2811 = vand.u32 %v2792, 2147483648
    %v2812 = vor.u32 1.1754944e-38, %v2811
    %v2813 = vsel %vm2810, %v2812, %v2808
    %v2814 = vmul.f32 1.0, %v2813
    %v2815 = vrcp.pop %v2793
    %v2816 = vmul.f32 %v2793, %v2815
    %v2817 = vsub.f32 1.0, %v2816
    %v2818 = vmul.f32 %v2815, %v2817
    %v2819 = vadd.f32 %v2815, %v2818
    %vm2820 = vweird.f32 %v2793
    %vm2821 = vweird.f32 %v2815
    %vm2822 = vmor %vm2820, %vm2821
    %v2823 = vsel %vm2822, %v2815, %v2819
    %v2824 = vand.u32 2147483647, %v2793
    %vm2825 = vcmp.eq.f32.partialorder %v2824, 8.507059e+37
    %v2826 = vand.u32 %v2793, 2147483648
    %v2827 = vor.u32 1.1754944e-38, %v2826
    %v2828 = vsel %vm2825, %v2827, %v2823
    %v2829 = vmul.f32 1.0, %v2828
    %v2830 = vrcp.pop %v2794
    %v2831 = vmul.f32 %v2794, %v2830
    %v2832 = vsub.f32 1.0, %v2831
    %v2833 = vmul.f32 %v2830, %v2832
    %v2834 = vadd.f32 %v2830, %v2833
    %vm2835 = vweird.f32 %v2794
    %vm2836 = vweird.f32 %v2830
    %vm2837 = vmor %vm2835, %vm2836
    %v2838 = vsel %vm2837, %v2830, %v2834
    %v2839 = vand.u32 2147483647, %v2794
    %vm2840 = vcmp.eq.f32.partialorder %v2839, 8.507059e+37
    %v2841 = vand.u32 %v2794, 2147483648
    %v2842 = vor.u32 1.1754944e-38, %v2841
    %v2843 = vsel %vm2840, %v2842, %v2838
    %v2844 = vmul.f32 1.0, %v2843
    %v2845 = vrcp.pop %v2795
    %v2846 = vmul.f32 %v2795, %v2845
    %v2847 = vsub.f32 1.0, %v2846
    %v2848 = vmul.f32 %v2845, %v2847
    %v2849 = vadd.f32 %v2845, %v2848
    %vm2850 = vweird.f32 %v2795
    %vm2851 = vweird.f32 %v2845
    %vm2852 = vmor %vm2850, %vm2851
    %v2853 = vsel %vm2852, %v2845, %v2849
    %v2854 = vand.u32 2147483647, %v2795
    %vm2855 = vcmp.eq.f32.partialorder %v2854, 8.507059e+37
    %v2856 = vand.u32 %v2795, 2147483648
    %v2857 = vor.u32 1.1754944e-38, %v2856
    %v2858 = vsel %vm2855, %v2857, %v2853
    %v2859 = vmul.f32 1.0, %v2858
    %v2860 = vrcp.pop %v2796
    %v2861 = vmul.f32 %v2796, %v2860
    %v2862 = vsub.f32 1.0, %v2861
    %v2863 = vmul.f32 %v2860, %v2862
    %v2864 = vadd.f32 %v2860, %v2863
    %vm2865 = vweird.f32 %v2796
    %vm2866 = vweird.f32 %v2860
    %vm2867 = vmor %vm2865, %vm2866
    %v2868 = vsel %vm2867, %v2860, %v2864
    %v2869 = vand.u32 2147483647, %v2796
    %vm2870 = vcmp.eq.f32.partialorder %v2869, 8.507059e+37
    %v2871 = vand.u32 %v2796, 2147483648
    %v2872 = vor.u32 1.1754944e-38, %v2871
    %v2873 = vsel %vm2870, %v2872, %v2868
    %v2874 = vmul.f32 1.0, %v2873
    %v2875 = vrcp.pop %v2797
    %v2876 = vmul.f32 %v2797, %v2875
    %v2877 = vsub.f32 1.0, %v2876
    %v2878 = vmul.f32 %v2875, %v2877
    %v2879 = vadd.f32 %v2875, %v2878
    %vm2880 = vweird.f32 %v2797
    %vm2881 = vweird.f32 %v2875
    %vm2882 = vmor %vm2880, %vm2881
    %v2883 = vsel %vm2882, %v2875, %v2879
    %v2884 = vand.u32 2147483647, %v2797
    %vm2885 = vcmp.eq.f32.partialorder %v2884, 8.507059e+37
    %v2886 = vand.u32 %v2797, 2147483648
    %v2887 = vor.u32 1.1754944e-38, %v2886
    %v2888 = vsel %vm2885, %v2887, %v2883
    %v2889 = vmul.f32 1.0, %v2888
    %v2890 = vrcp.pop %v2798
    %v2891 = vmul.f32 %v2798, %v2890
    %v2892 = vsub.f32 1.0, %v2891
    %v2893 = vmul.f32 %v2890, %v2892
    %v2894 = vadd.f32 %v2890, %v2893
    %vm2895 = vweird.f32 %v2798
    %vm2896 = vweird.f32 %v2890
    %vm2897 = vmor %vm2895, %vm2896
    %v2898 = vsel %vm2897, %v2890, %v2894
    %v2899 = vand.u32 2147483647, %v2798
    %vm2900 = vcmp.eq.f32.partialorder %v2899, 8.507059e+37
    %v2901 = vand.u32 %v2798, 2147483648
    %v2902 = vor.u32 1.1754944e-38, %v2901
    %v2903 = vsel %vm2900, %v2902, %v2898
    %v2904 = vmul.f32 1.0, %v2903
    %v2905 = vrcp.pop %v2799
    %v2906 = vmul.f32 %v2799, %v2905
    %v2907 = vsub.f32 1.0, %v2906
    %v2908 = vmul.f32 %v2905, %v2907
    %v2909 = vadd.f32 %v2905, %v2908
    %vm2910 = vweird.f32 %v2799
    %vm2911 = vweird.f32 %v2905
    %vm2912 = vmor %vm2910, %vm2911
    %v2913 = vsel %vm2912, %v2905, %v2909
    %v2914 = vand.u32 2147483647, %v2799
    %vm2915 = vcmp.eq.f32.partialorder %v2914, 8.507059e+37
    %v2916 = vand.u32 %v2799, 2147483648
    %v2917 = vor.u32 1.1754944e-38, %v2916
    %v2918 = vsel %vm2915, %v2917, %v2913
    %v2919 = vmul.f32 1.0, %v2918
    %v2920 = vxor.u32 %v2737, 2147483648
    %v2921 = vxor.u32 %v2741, 2147483648
    %v2922 = vxor.u32 %v2745, 2147483648
    %v2923 = vxor.u32 %v2749, 2147483648
    %v2924 = vxor.u32 %v2753, 2147483648
    %v2925 = vxor.u32 %v2757, 2147483648
    %v2926 = vxor.u32 %v2761, 2147483648
    %v2927 = vxor.u32 %v2765, 2147483648
    %v2928 = vmul.f32 %v2920, 1.442695
    %v2929 = vpow.pop %v2928
    %v2930 = vmul.f32 %v2921, 1.442695
    %v2931 = vpow.pop %v2930
    %v2932 = vmul.f32 %v2922, 1.442695
    %v2933 = vpow.pop %v2932
    %v2934 = vmul.f32 %v2923, 1.442695
    %v2935 = vpow.pop %v2934
    %v2936 = vmul.f32 %v2924, 1.442695
    %v2937 = vpow.pop %v2936
    %v2938 = vmul.f32 %v2925, 1.442695
    %v2939 = vpow.pop %v2938
    %v2940 = vmul.f32 %v2926, 1.442695
    %v2941 = vpow.pop %v2940
    %v2942 = vmul.f32 %v2927, 1.442695
    %v2943 = vpow.pop %v2942
    %v2944 = vadd.f32 %v2929, 1.0
    %v2945 = vadd.f32 %v2931, 1.0
    %v2946 = vadd.f32 %v2933, 1.0
    %v2947 = vadd.f32 %v2935, 1.0
    %v2948 = vadd.f32 %v2937, 1.0
    %v2949 = vadd.f32 %v2939, 1.0
    %v2950 = vadd.f32 %v2941, 1.0
    %v2951 = vadd.f32 %v2943, 1.0
    %v2952 = vrcp.pop %v2944
    %v2953 = vmul.f32 %v2944, %v2952
    %v2954 = vsub.f32 1.0, %v2953
    %v2955 = vmul.f32 %v2952, %v2954
    %v2956 = vadd.f32 %v2952, %v2955
    %vm2957 = vweird.f32 %v2944
    %vm2958 = vweird.f32 %v2952
    %vm2959 = vmor %vm2957, %vm2958
    %v2960 = vsel %vm2959, %v2952, %v2956
    %v2961 = vand.u32 2147483647, %v2944
    %vm2962 = vcmp.eq.f32.partialorder %v2961, 8.507059e+37
    %v2963 = vand.u32 %v2944, 2147483648
    %v2964 = vor.u32 1.1754944e-38, %v2963
    %v2965 = vsel %vm2962, %v2964, %v2960
    %v2966 = vmul.f32 1.0, %v2965
    %v2967 = vrcp.pop %v2945
    %v2968 = vmul.f32 %v2945, %v2967
    %v2969 = vsub.f32 1.0, %v2968
    %v2970 = vmul.f32 %v2967, %v2969
    %v2971 = vadd.f32 %v2967, %v2970
    %vm2972 = vweird.f32 %v2945
    %vm2973 = vweird.f32 %v2967
    %vm2974 = vmor %vm2972, %vm2973
    %v2975 = vsel %vm2974, %v2967, %v2971
    %v2976 = vand.u32 2147483647, %v2945
    %vm2977 = vcmp.eq.f32.partialorder %v2976, 8.507059e+37
    %v2978 = vand.u32 %v2945, 2147483648
    %v2979 = vor.u32 1.1754944e-38, %v2978
    %v2980 = vsel %vm2977, %v2979, %v2975
    %v2981 = vmul.f32 1.0, %v2980
    %v2982 = vrcp.pop %v2946
    %v2983 = vmul.f32 %v2946, %v2982
    %v2984 = vsub.f32 1.0, %v2983
    %v2985 = vmul.f32 %v2982, %v2984
    %v2986 = vadd.f32 %v2982, %v2985
    %vm2987 = vweird.f32 %v2946
    %vm2988 = vweird.f32 %v2982
    %vm2989 = vmor %vm2987, %vm2988
    %v2990 = vsel %vm2989, %v2982, %v2986
    %v2991 = vand.u32 2147483647, %v2946
    %vm2992 = vcmp.eq.f32.partialorder %v2991, 8.507059e+37
    %v2993 = vand.u32 %v2946, 2147483648
    %v2994 = vor.u32 1.1754944e-38, %v2993
    %v2995 = vsel %vm2992, %v2994, %v2990
    %v2996 = vmul.f32 1.0, %v2995
    %v2997 = vrcp.pop %v2947
    %v2998 = vmul.f32 %v2947, %v2997
    %v2999 = vsub.f32 1.0, %v2998
    %v3000 = vmul.f32 %v2997, %v2999
    %v3001 = vadd.f32 %v2997, %v3000
    %vm3002 = vweird.f32 %v2947
    %vm3003 = vweird.f32 %v2997
    %vm3004 = vmor %vm3002, %vm3003
    %v3005 = vsel %vm3004, %v2997, %v3001
    %v3006 = vand.u32 2147483647, %v2947
    %vm3007 = vcmp.eq.f32.partialorder %v3006, 8.507059e+37
    %v3008 = vand.u32 %v2947, 2147483648
    %v3009 = vor.u32 1.1754944e-38, %v3008
    %v3010 = vsel %vm3007, %v3009, %v3005
    %v3011 = vmul.f32 1.0, %v3010
    %v3012 = vrcp.pop %v2948
    %v3013 = vmul.f32 %v2948, %v3012
    %v3014 = vsub.f32 1.0, %v3013
    %v3015 = vmul.f32 %v3012, %v3014
    %v3016 = vadd.f32 %v3012, %v3015
    %vm3017 = vweird.f32 %v2948
    %vm3018 = vweird.f32 %v3012
    %vm3019 = vmor %vm3017, %vm3018
    %v3020 = vsel %vm3019, %v3012, %v3016
    %v3021 = vand.u32 2147483647, %v2948
    %vm3022 = vcmp.eq.f32.partialorder %v3021, 8.507059e+37
    %v3023 = vand.u32 %v2948, 2147483648
    %v3024 = vor.u32 1.1754944e-38, %v3023
    %v3025 = vsel %vm3022, %v3024, %v3020
    %v3026 = vmul.f32 1.0, %v3025
    %v3027 = vrcp.pop %v2949
    %v3028 = vmul.f32 %v2949, %v3027
    %v3029 = vsub.f32 1.0, %v3028
    %v3030 = vmul.f32 %v3027, %v3029
    %v3031 = vadd.f32 %v3027, %v3030
    %vm3032 = vweird.f32 %v2949
    %vm3033 = vweird.f32 %v3027
    %vm3034 = vmor %vm3032, %vm3033
    %v3035 = vsel %vm3034, %v3027, %v3031
    %v3036 = vand.u32 2147483647, %v2949
    %vm3037 = vcmp.eq.f32.partialorder %v3036, 8.507059e+37
    %v3038 = vand.u32 %v2949, 2147483648
    %v3039 = vor.u32 1.1754944e-38, %v3038
    %v3040 = vsel %vm3037, %v3039, %v3035
    %v3041 = vmul.f32 1.0, %v3040
    %v3042 = vrcp.pop %v2950
    %v3043 = vmul.f32 %v2950, %v3042
    %v3044 = vsub.f32 1.0, %v3043
    %v3045 = vmul.f32 %v3042, %v3044
    %v3046 = vadd.f32 %v3042, %v3045
    %vm3047 = vweird.f32 %v2950
    %vm3048 = vweird.f32 %v3042
    %vm3049 = vmor %vm3047, %vm3048
    %v3050 = vsel %vm3049, %v3042, %v3046
    %v3051 = vand.u32 2147483647, %v2950
    %vm3052 = vcmp.eq.f32.partialorder %v3051, 8.507059e+37
    %v3053 = vand.u32 %v2950, 2147483648
    %v3054 = vor.u32 1.1754944e-38, %v3053
    %v3055 = vsel %vm3052, %v3054, %v3050
    %v3056 = vmul.f32 1.0, %v3055
    %v3057 = vrcp.pop %v2951
    %v3058 = vmul.f32 %v2951, %v3057
    %v3059 = vsub.f32 1.0, %v3058
    %v3060 = vmul.f32 %v3057, %v3059
    %v3061 = vadd.f32 %v3057, %v3060
    %vm3062 = vweird.f32 %v2951
    %vm3063 = vweird.f32 %v3057
    %vm3064 = vmor %vm3062, %vm3063
    %v3065 = vsel %vm3064, %v3057, %v3061
    %v3066 = vand.u32 2147483647, %v2951
    %vm3067 = vcmp.eq.f32.partialorder %v3066, 8.507059e+37
    %v3068 = vand.u32 %v2951, 2147483648
    %v3069 = vor.u32 1.1754944e-38, %v3068
    %v3070 = vsel %vm3067, %v3069, %v3065
    %v3071 = vmul.f32 1.0, %v3070
    %v3072 = vtanh.pop %v2738
    %v3073 = vtanh.pop %v2742
    %v3074 = vtanh.pop %v2746
    %v3075 = vtanh.pop %v2750
    %v3076 = vtanh.pop %v2754
    %v3077 = vtanh.pop %v2758
    %v3078 = vtanh.pop %v2762
    %v3079 = vtanh.pop %v2766
    %v3080 = vxor.u32 %v2739, 2147483648
    %v3081 = vxor.u32 %v2743, 2147483648
    %v3082 = vxor.u32 %v2747, 2147483648
    %v3083 = vxor.u32 %v2751, 2147483648
    %v3084 = vxor.u32 %v2755, 2147483648
    %v3085 = vxor.u32 %v2759, 2147483648
    %v3086 = vxor.u32 %v2763, 2147483648
    %v3087 = vxor.u32 %v2767, 2147483648
    %v3088 = vmul.f32 %v3080, 1.442695
    %v3089 = vpow.pop %v3088
    %v3090 = vmul.f32 %v3081, 1.442695
    %v3091 = vpow.pop %v3090
    %v3092 = vmul.f32 %v3082, 1.442695
    %v3093 = vpow.pop %v3092
    %v3094 = vmul.f32 %v3083, 1.442695
    %v3095 = vpow.pop %v3094
    %v3096 = vmul.f32 %v3084, 1.442695
    %v3097 = vpow.pop %v3096
    %v3098 = vmul.f32 %v3085, 1.442695
    %v3099 = vpow.pop %v3098
    %v3100 = vmul.f32 %v3086, 1.442695
    %v3101 = vpow.pop %v3100
    %v3102 = vmul.f32 %v3087, 1.442695
    %v3103 = vpow.pop %v3102
    %v3104 = vadd.f32 %v3089, 1.0
    %v3105 = vadd.f32 %v3091, 1.0
    %v3106 = vadd.f32 %v3093, 1.0
    %v3107 = vadd.f32 %v3095, 1.0
    %v3108 = vadd.f32 %v3097, 1.0
    %v3109 = vadd.f32 %v3099, 1.0
    %v3110 = vadd.f32 %v3101, 1.0
    %v3111 = vadd.f32 %v3103, 1.0
    %v3112 = vrcp.pop %v3104
    %v3113 = vmul.f32 %v3104, %v3112
    %v3114 = vsub.f32 1.0, %v3113
    %v3115 = vmul.f32 %v3112, %v3114
    %v3116 = vadd.f32 %v3112, %v3115
    %vm3117 = vweird.f32 %v3104
    %vm3118 = vweird.f32 %v3112
    %vm3119 = vmor %vm3117, %vm3118
    %v3120 = vsel %vm3119, %v3112, %v3116
    %v3121 = vand.u32 2147483647, %v3104
    %vm3122 = vcmp.eq.f32.partialorder %v3121, 8.507059e+37
    %v3123 = vand.u32 %v3104, 2147483648
    %v3124 = vor.u32 1.1754944e-38, %v3123
    %v3125 = vsel %vm3122, %v3124, %v3120
    %v3126 = vmul.f32 1.0, %v3125
    %v3127 = vrcp.pop %v3105
    %v3128 = vmul.f32 %v3105, %v3127
    %v3129 = vsub.f32 1.0, %v3128
    %v3130 = vmul.f32 %v3127, %v3129
    %v3131 = vadd.f32 %v3127, %v3130
    %vm3132 = vweird.f32 %v3105
    %vm3133 = vweird.f32 %v3127
    %vm3134 = vmor %vm3132, %vm3133
    %v3135 = vsel %vm3134, %v3127, %v3131
    %v3136 = vand.u32 2147483647, %v3105
    %vm3137 = vcmp.eq.f32.partialorder %v3136, 8.507059e+37
    %v3138 = vand.u32 %v3105, 2147483648
    %v3139 = vor.u32 1.1754944e-38, %v3138
    %v3140 = vsel %vm3137, %v3139, %v3135
    %v3141 = vmul.f32 1.0, %v3140
    %v3142 = vrcp.pop %v3106
    %v3143 = vmul.f32 %v3106, %v3142
    %v3144 = vsub.f32 1.0, %v3143
    %v3145 = vmul.f32 %v3142, %v3144
    %v3146 = vadd.f32 %v3142, %v3145
    %vm3147 = vweird.f32 %v3106
    %vm3148 = vweird.f32 %v3142
    %vm3149 = vmor %vm3147, %vm3148
    %v3150 = vsel %vm3149, %v3142, %v3146
    %v3151 = vand.u32 2147483647, %v3106
    %vm3152 = vcmp.eq.f32.partialorder %v3151, 8.507059e+37
    %v3153 = vand.u32 %v3106, 2147483648
    %v3154 = vor.u32 1.1754944e-38, %v3153
    %v3155 = vsel %vm3152, %v3154, %v3150
    %v3156 = vmul.f32 1.0, %v3155
    %v3157 = vrcp.pop %v3107
    %v3158 = vmul.f32 %v3107, %v3157
    %v3159 = vsub.f32 1.0, %v3158
    %v3160 = vmul.f32 %v3157, %v3159
    %v3161 = vadd.f32 %v3157, %v3160
    %vm3162 = vweird.f32 %v3107
    %vm3163 = vweird.f32 %v3157
    %vm3164 = vmor %vm3162, %vm3163
    %v3165 = vsel %vm3164, %v3157, %v3161
    %v3166 = vand.u32 2147483647, %v3107
    %vm3167 = vcmp.eq.f32.partialorder %v3166, 8.507059e+37
    %v3168 = vand.u32 %v3107, 2147483648
    %v3169 = vor.u32 1.1754944e-38, %v3168
    %v3170 = vsel %vm3167, %v3169, %v3165
    %v3171 = vmul.f32 1.0, %v3170
    %v3172 = vrcp.pop %v3108
    %v3173 = vmul.f32 %v3108, %v3172
    %v3174 = vsub.f32 1.0, %v3173
    %v3175 = vmul.f32 %v3172, %v3174
    %v3176 = vadd.f32 %v3172, %v3175
    %vm3177 = vweird.f32 %v3108
    %vm3178 = vweird.f32 %v3172
    %vm3179 = vmor %vm3177, %vm3178
    %v3180 = vsel %vm3179, %v3172, %v3176
    %v3181 = vand.u32 2147483647, %v3108
    %vm3182 = vcmp.eq.f32.partialorder %v3181, 8.507059e+37
    %v3183 = vand.u32 %v3108, 2147483648
    %v3184 = vor.u32 1.1754944e-38, %v3183
    %v3185 = vsel %vm3182, %v3184, %v3180
    %v3186 = vmul.f32 1.0, %v3185
    %v3187 = vrcp.pop %v3109
    %v3188 = vmul.f32 %v3109, %v3187
    %v3189 = vsub.f32 1.0, %v3188
    %v3190 = vmul.f32 %v3187, %v3189
    %v3191 = vadd.f32 %v3187, %v3190
    %vm3192 = vweird.f32 %v3109
    %vm3193 = vweird.f32 %v3187
    %vm3194 = vmor %vm3192, %vm3193
    %v3195 = vsel %vm3194, %v3187, %v3191
    %v3196 = vand.u32 2147483647, %v3109
    %vm3197 = vcmp.eq.f32.partialorder %v3196, 8.507059e+37
    %v3198 = vand.u32 %v3109, 2147483648
    %v3199 = vor.u32 1.1754944e-38, %v3198
    %v3200 = vsel %vm3197, %v3199, %v3195
    %v3201 = vmul.f32 1.0, %v3200
    %v3202 = vrcp.pop %v3110
    %v3203 = vmul.f32 %v3110, %v3202
    %v3204 = vsub.f32 1.0, %v3203
    %v3205 = vmul.f32 %v3202, %v3204
    %v3206 = vadd.f32 %v3202, %v3205
    %vm3207 = vweird.f32 %v3110
    %vm3208 = vweird.f32 %v3202
    %vm3209 = vmor %vm3207, %vm3208
    %v3210 = vsel %vm3209, %v3202, %v3206
    %v3211 = vand.u32 2147483647, %v3110
    %vm3212 = vcmp.eq.f32.partialorder %v3211, 8.507059e+37
    %v3213 = vand.u32 %v3110, 2147483648
    %v3214 = vor.u32 1.1754944e-38, %v3213
    %v3215 = vsel %vm3212, %v3214, %v3210
    %v3216 = vmul.f32 1.0, %v3215
    %v3217 = vrcp.pop %v3111
    %v3218 = vmul.f32 %v3111, %v3217
    %v3219 = vsub.f32 1.0, %v3218
    %v3220 = vmul.f32 %v3217, %v3219
    %v3221 = vadd.f32 %v3217, %v3220
    %vm3222 = vweird.f32 %v3111
    %vm3223 = vweird.f32 %v3217
    %vm3224 = vmor %vm3222, %vm3223
    %v3225 = vsel %vm3224, %v3217, %v3221
    %v3226 = vand.u32 2147483647, %v3111
    %vm3227 = vcmp.eq.f32.partialorder %v3226, 8.507059e+37
    %v3228 = vand.u32 %v3111, 2147483648
    %v3229 = vor.u32 1.1754944e-38, %v3228
    %v3230 = vsel %vm3227, %v3229, %v3225
    %v3231 = vmul.f32 1.0, %v3230
    %v3240 = vrot.slane %v2545, 7
    %v3241 = vrot.slane %v2546, 7
    %v3242 = vrot.slane %v2547, 7
    %v3243 = vrot.slane %v2548, 7
    %v3244 = vrot.slane %v2549, 7
    %v3245 = vrot.slane %v2550, 7
    %v3246 = vrot.slane %v2551, 7
    %v3247 = vrot.slane %v2552, 7
    %v3256 = vmul.f32 %v2966, %v3240
    %v3257 = vmul.f32 %v2981, %v3241
    %v3258 = vmul.f32 %v2996, %v3242
    %v3259 = vmul.f32 %v3011, %v3243
    %v3260 = vmul.f32 %v3026, %v3244
    %v3261 = vmul.f32 %v3041, %v3245
    %v3262 = vmul.f32 %v3056, %v3246
    %v3263 = vmul.f32 %v3071, %v3247
    %v3264 = vmul.f32 %v2814, %v3072
    %v3265 = vmul.f32 %v2829, %v3073
    %v3266 = vmul.f32 %v2844, %v3074
    %v3267 = vmul.f32 %v2859, %v3075
    %v3268 = vmul.f32 %v2874, %v3076
    %v3269 = vmul.f32 %v2889, %v3077
    %v3270 = vmul.f32 %v2904, %v3078
    %v3271 = vmul.f32 %v2919, %v3079
    %v3272 = vadd.f32 %v3256, %v3264
    %v3273 = vadd.f32 %v3257, %v3265
    %v3274 = vadd.f32 %v3258, %v3266
    %v3275 = vadd.f32 %v3259, %v3267
    %v3276 = vadd.f32 %v3260, %v3268
    %v3277 = vadd.f32 %v3261, %v3269
    %v3278 = vadd.f32 %v3262, %v3270
    %v3279 = vadd.f32 %v3263, %v3271
    %v3280 = vtanh.pop %v3272
    %v3281 = vtanh.pop %v3273
    %v3282 = vtanh.pop %v3274
    %v3283 = vtanh.pop %v3275
    %v3284 = vtanh.pop %v3276
    %v3285 = vtanh.pop %v3277
    %v3286 = vtanh.pop %v3278
    %v3287 = vtanh.pop %v3279
    %v3288 = vmul.f32 %v3126, %v3280
    %v3289 = vmul.f32 %v3141, %v3281
    %v3290 = vmul.f32 %v3156, %v3282
    %v3291 = vmul.f32 %v3171, %v3283
    %v3292 = vmul.f32 %v3186, %v3284
    %v3293 = vmul.f32 %v3201, %v3285
    %v3294 = vmul.f32 %v3216, %v3286
    %v3295 = vmul.f32 %v3231, %v3287
    %v3304 = vrot.slane %v3288, 3
    %v3305 = vrot.slane %v3289, 2
    %v3306 = vsel %vm1117, %v3305, %v3304
    %v3307 = vrot.slane %v3290, 1
    %v3308 = vsel %vm1120, %v3307, %v3306
    %v3309 = vsel %vm1123, %v3291, %v3308
    %v3310 = vrot.slane %v3292, 7
    %v3311 = vsel %vm1126, %v3310, %v3309
    %v3312 = vrot.slane %v3293, 6
    %v3313 = vsel %vm1129, %v3312, %v3311
    %v3314 = vrot.slane %v3294, 5
    %v3315 = vsel %vm1132, %v3314, %v3313
    %v3316 = vrot.slane %v3295, 4
    %v3317 = vsel %vm1135, %v3316, %v3315
    %3319 = vmatpush.msra.mxu0 %v406
    %3320 = vmatpush.msra.mxu0 %v402
    %3321 = vmatpush.msra.mxu0 %v398
    %3322 = vmatpush.msra.mxu0 %v394
    %3323 = vmatpush.msra.mxu0 %v390
    %3324 = vmatpush.msra.mxu0 %v386
    %3325 = vmatpush.msra.mxu0 %v382
    %3326 = vmatpush.msra.mxu0 %v378
    %3327 = vmatpush.msra.mxu0 %v374
    %3328 = vmatpush.msra.mxu0 %v370
    %3329 = vmatpush.msra.mxu0 %v366
    %3330 = vmatpush.msra.mxu0 %v362
    %3331 = vmatpush.msra.mxu0 %v358
    %3332 = vmatpush.msra.mxu0 %v354
    %3333 = vmatpush.msra.mxu0 %v350
    %3334 = vmatpush.msra.mxu0 %v346
    %3335 = vmatmul.f32.gmra.mxu0 %v3317
    %v3336 = vpop.f32.mrf.mxu0
    %v3337 = vadd.f32 0.0, %v3336
    %3338 = vdwg.mxu0
    %3339 = vmatpush.msra.mxu0 %v407
    %3340 = vmatpush.msra.mxu0 %v403
    %3341 = vmatpush.msra.mxu0 %v399
    %3342 = vmatpush.msra.mxu0 %v395
    %3343 = vmatpush.msra.mxu0 %v391
    %3344 = vmatpush.msra.mxu0 %v387
    %3345 = vmatpush.msra.mxu0 %v383
    %3346 = vmatpush.msra.mxu0 %v379
    %3347 = vmatpush.msra.mxu0 %v375
    %3348 = vmatpush.msra.mxu0 %v371
    %3349 = vmatpush.msra.mxu0 %v367
    %3350 = vmatpush.msra.mxu0 %v363
    %3351 = vmatpush.msra.mxu0 %v359
    %3352 = vmatpush.msra.mxu0 %v355
    %3353 = vmatpush.msra.mxu0 %v351
    %3354 = vmatpush.msra.mxu0 %v347
    %3355 = vmatmul.f32.gmra.mxu0 %v3317
    %v3356 = vpop.f32.mrf.mxu0
    %v3357 = vadd.f32 0.0, %v3356
    %3358 = vdwg.mxu0
    %3359 = vmatpush.msra.mxu0 %v408
    %3360 = vmatpush.msra.mxu0 %v404
    %3361 = vmatpush.msra.mxu0 %v400
    %3362 = vmatpush.msra.mxu0 %v396
    %3363 = vmatpush.msra.mxu0 %v392
    %3364 = vmatpush.msra.mxu0 %v388
    %3365 = vmatpush.msra.mxu0 %v384
    %3366 = vmatpush.msra.mxu0 %v380
    %3367 = vmatpush.msra.mxu0 %v376
    %3368 = vmatpush.msra.mxu0 %v372
    %3369 = vmatpush.msra.mxu0 %v368
    %3370 = vmatpush.msra.mxu0 %v364
    %3371 = vmatpush.msra.mxu0 %v360
    %3372 = vmatpush.msra.mxu0 %v356
    %3373 = vmatpush.msra.mxu0 %v352
    %3374 = vmatpush.msra.mxu0 %v348
    %3375 = vmatmul.f32.gmra.mxu0 %v3317
    %v3376 = vpop.f32.mrf.mxu0
    %v3377 = vadd.f32 0.0, %v3376
    %3378 = vdwg.mxu0
    %3379 = vmatpush.msra.mxu0 %v409
    %3380 = vmatpush.msra.mxu0 %v405
    %3381 = vmatpush.msra.mxu0 %v401
    %3382 = vmatpush.msra.mxu0 %v397
    %3383 = vmatpush.msra.mxu0 %v393
    %3384 = vmatpush.msra.mxu0 %v389
    %3385 = vmatpush.msra.mxu0 %v385
    %3386 = vmatpush.msra.mxu0 %v381
    %3387 = vmatpush.msra.mxu0 %v377
    %3388 = vmatpush.msra.mxu0 %v373
    %3389 = vmatpush.msra.mxu0 %v369
    %3390 = vmatpush.msra.mxu0 %v365
    %3391 = vmatpush.msra.mxu0 %v361
    %3392 = vmatpush.msra.mxu0 %v357
    %3393 = vmatpush.msra.mxu0 %v353
    %3394 = vmatpush.msra.mxu0 %v349
    %3395 = vmatmul.f32.gmra.mxu0 %v3317
    %v3396 = vpop.f32.mrf.mxu0
    %v3397 = vadd.f32 0.0, %v3396
    %3398 = vdwg.mxu0
    %v3403 = vrot.slane %v3337, 4
    %v3404 = vrot.slane %v3357, 4
    %v3405 = vrot.slane %v3377, 4
    %v3406 = vrot.slane %v3397, 4
    %v3407 = vrot.slane %v3337, 5
    %v3408 = vrot.slane %v3357, 5
    %v3409 = vrot.slane %v3377, 5
    %v3410 = vrot.slane %v3397, 5
    %v3411 = vrot.slane %v3337, 6
    %v3412 = vrot.slane %v3357, 6
    %v3413 = vrot.slane %v3377, 6
    %v3414 = vrot.slane %v3397, 6
    %v3415 = vrot.slane %v3337, 7
    %v3416 = vrot.slane %v3357, 7
    %v3417 = vrot.slane %v3377, 7
    %v3418 = vrot.slane %v3397, 7
    %v3419 = vrot.slane %v3337, 1
    %v3420 = vrot.slane %v3357, 1
    %v3421 = vrot.slane %v3377, 1
    %v3422 = vrot.slane %v3397, 1
    %v3423 = vrot.slane %v3337, 2
    %v3424 = vrot.slane %v3357, 2
    %v3425 = vrot.slane %v3377, 2
    %v3426 = vrot.slane %v3397, 2
    %v3427 = vrot.slane %v3337, 3
    %v3428 = vrot.slane %v3357, 3
    %v3429 = vrot.slane %v3377, 3
    %v3430 = vrot.slane %v3397, 3
    %v3463 = vadd.f32 %v200, %v3403
    %v3464 = vadd.f32 %v241, %v3404
    %v3465 = vadd.f32 %v282, %v3405
    %v3466 = vadd.f32 %v323, %v3406
    %v3467 = vadd.f32 %v203, %v3407
    %v3468 = vadd.f32 %v244, %v3408
    %v3469 = vadd.f32 %v285, %v3409
    %v3470 = vadd.f32 %v326, %v3410
    %v3471 = vadd.f32 %v206, %v3411
    %v3472 = vadd.f32 %v247, %v3412
    %v3473 = vadd.f32 %v288, %v3413
    %v3474 = vadd.f32 %v329, %v3414
    %v3475 = vadd.f32 %v209, %v3415
    %v3476 = vadd.f32 %v250, %v3416
    %v3477 = vadd.f32 %v291, %v3417
    %v3478 = vadd.f32 %v332, %v3418
    %v3479 = vadd.f32 %v212, %v3337
    %v3480 = vadd.f32 %v253, %v3357
    %v3481 = vadd.f32 %v294, %v3377
    %v3482 = vadd.f32 %v335, %v3397
    %v3483 = vadd.f32 %v215, %v3419
    %v3484 = vadd.f32 %v256, %v3420
    %v3485 = vadd.f32 %v297, %v3421
    %v3486 = vadd.f32 %v338, %v3422
    %v3487 = vadd.f32 %v218, %v3423
    %v3488 = vadd.f32 %v259, %v3424
    %v3489 = vadd.f32 %v300, %v3425
    %v3490 = vadd.f32 %v341, %v3426
    %v3491 = vadd.f32 %v221, %v3427
    %v3492 = vadd.f32 %v262, %v3428
    %v3493 = vadd.f32 %v303, %v3429
    %v3494 = vadd.f32 %v344, %v3430
    %v3495 = vxor.u32 %v3463, 2147483648
    %v3496 = vxor.u32 %v3467, 2147483648
    %v3497 = vxor.u32 %v3471, 2147483648
    %v3498 = vxor.u32 %v3475, 2147483648
    %v3499 = vxor.u32 %v3479, 2147483648
    %v3500 = vxor.u32 %v3483, 2147483648
    %v3501 = vxor.u32 %v3487, 2147483648
    %v3502 = vxor.u32 %v3491, 2147483648
    %v3503 = vmul.f32 %v3495, 1.442695
    %v3504 = vpow.pop %v3503
    %v3505 = vmul.f32 %v3496, 1.442695
    %v3506 = vpow.pop %v3505
    %v3507 = vmul.f32 %v3497, 1.442695
    %v3508 = vpow.pop %v3507
    %v3509 = vmul.f32 %v3498, 1.442695
    %v3510 = vpow.pop %v3509
    %v3511 = vmul.f32 %v3499, 1.442695
    %v3512 = vpow.pop %v3511
    %v3513 = vmul.f32 %v3500, 1.442695
    %v3514 = vpow.pop %v3513
    %v3515 = vmul.f32 %v3501, 1.442695
    %v3516 = vpow.pop %v3515
    %v3517 = vmul.f32 %v3502, 1.442695
    %v3518 = vpow.pop %v3517
    %v3519 = vadd.f32 %v3504, 1.0
    %v3520 = vadd.f32 %v3506, 1.0
    %v3521 = vadd.f32 %v3508, 1.0
    %v3522 = vadd.f32 %v3510, 1.0
    %v3523 = vadd.f32 %v3512, 1.0
    %v3524 = vadd.f32 %v3514, 1.0
    %v3525 = vadd.f32 %v3516, 1.0
    %v3526 = vadd.f32 %v3518, 1.0
    %v3527 = vrcp.pop %v3519
    %v3528 = vmul.f32 %v3519, %v3527
    %v3529 = vsub.f32 1.0, %v3528
    %v3530 = vmul.f32 %v3527, %v3529
    %v3531 = vadd.f32 %v3527, %v3530
    %vm3532 = vweird.f32 %v3519
    %vm3533 = vweird.f32 %v3527
    %vm3534 = vmor %vm3532, %vm3533
    %v3535 = vsel %vm3534, %v3527, %v3531
    %v3536 = vand.u32 2147483647, %v3519
    %vm3537 = vcmp.eq.f32.partialorder %v3536, 8.507059e+37
    %v3538 = vand.u32 %v3519, 2147483648
    %v3539 = vor.u32 1.1754944e-38, %v3538
    %v3540 = vsel %vm3537, %v3539, %v3535
    %v3541 = vmul.f32 1.0, %v3540
    %v3542 = vrcp.pop %v3520
    %v3543 = vmul.f32 %v3520, %v3542
    %v3544 = vsub.f32 1.0, %v3543
    %v3545 = vmul.f32 %v3542, %v3544
    %v3546 = vadd.f32 %v3542, %v3545
    %vm3547 = vweird.f32 %v3520
    %vm3548 = vweird.f32 %v3542
    %vm3549 = vmor %vm3547, %vm3548
    %v3550 = vsel %vm3549, %v3542, %v3546
    %v3551 = vand.u32 2147483647, %v3520
    %vm3552 = vcmp.eq.f32.partialorder %v3551, 8.507059e+37
    %v3553 = vand.u32 %v3520, 2147483648
    %v3554 = vor.u32 1.1754944e-38, %v3553
    %v3555 = vsel %vm3552, %v3554, %v3550
    %v3556 = vmul.f32 1.0, %v3555
    %v3557 = vrcp.pop %v3521
    %v3558 = vmul.f32 %v3521, %v3557
    %v3559 = vsub.f32 1.0, %v3558
    %v3560 = vmul.f32 %v3557, %v3559
    %v3561 = vadd.f32 %v3557, %v3560
    %vm3562 = vweird.f32 %v3521
    %vm3563 = vweird.f32 %v3557
    %vm3564 = vmor %vm3562, %vm3563
    %v3565 = vsel %vm3564, %v3557, %v3561
    %v3566 = vand.u32 2147483647, %v3521
    %vm3567 = vcmp.eq.f32.partialorder %v3566, 8.507059e+37
    %v3568 = vand.u32 %v3521, 2147483648
    %v3569 = vor.u32 1.1754944e-38, %v3568
    %v3570 = vsel %vm3567, %v3569, %v3565
    %v3571 = vmul.f32 1.0, %v3570
    %v3572 = vrcp.pop %v3522
    %v3573 = vmul.f32 %v3522, %v3572
    %v3574 = vsub.f32 1.0, %v3573
    %v3575 = vmul.f32 %v3572, %v3574
    %v3576 = vadd.f32 %v3572, %v3575
    %vm3577 = vweird.f32 %v3522
    %vm3578 = vweird.f32 %v3572
    %vm3579 = vmor %vm3577, %vm3578
    %v3580 = vsel %vm3579, %v3572, %v3576
    %v3581 = vand.u32 2147483647, %v3522
    %vm3582 = vcmp.eq.f32.partialorder %v3581, 8.507059e+37
    %v3583 = vand.u32 %v3522, 2147483648
    %v3584 = vor.u32 1.1754944e-38, %v3583
    %v3585 = vsel %vm3582, %v3584, %v3580
    %v3586 = vmul.f32 1.0, %v3585
    %v3587 = vrcp.pop %v3523
    %v3588 = vmul.f32 %v3523, %v3587
    %v3589 = vsub.f32 1.0, %v3588
    %v3590 = vmul.f32 %v3587, %v3589
    %v3591 = vadd.f32 %v3587, %v3590
    %vm3592 = vweird.f32 %v3523
    %vm3593 = vweird.f32 %v3587
    %vm3594 = vmor %vm3592, %vm3593
    %v3595 = vsel %vm3594, %v3587, %v3591
    %v3596 = vand.u32 2147483647, %v3523
    %vm3597 = vcmp.eq.f32.partialorder %v3596, 8.507059e+37
    %v3598 = vand.u32 %v3523, 2147483648
    %v3599 = vor.u32 1.1754944e-38, %v3598
    %v3600 = vsel %vm3597, %v3599, %v3595
    %v3601 = vmul.f32 1.0, %v3600
    %v3602 = vrcp.pop %v3524
    %v3603 = vmul.f32 %v3524, %v3602
    %v3604 = vsub.f32 1.0, %v3603
    %v3605 = vmul.f32 %v3602, %v3604
    %v3606 = vadd.f32 %v3602, %v3605
    %vm3607 = vweird.f32 %v3524
    %vm3608 = vweird.f32 %v3602
    %vm3609 = vmor %vm3607, %vm3608
    %v3610 = vsel %vm3609, %v3602, %v3606
    %v3611 = vand.u32 2147483647, %v3524
    %vm3612 = vcmp.eq.f32.partialorder %v3611, 8.507059e+37
    %v3613 = vand.u32 %v3524, 2147483648
    %v3614 = vor.u32 1.1754944e-38, %v3613
    %v3615 = vsel %vm3612, %v3614, %v3610
    %v3616 = vmul.f32 1.0, %v3615
    %v3617 = vrcp.pop %v3525
    %v3618 = vmul.f32 %v3525, %v3617
    %v3619 = vsub.f32 1.0, %v3618
    %v3620 = vmul.f32 %v3617, %v3619
    %v3621 = vadd.f32 %v3617, %v3620
    %vm3622 = vweird.f32 %v3525
    %vm3623 = vweird.f32 %v3617
    %vm3624 = vmor %vm3622, %vm3623
    %v3625 = vsel %vm3624, %v3617, %v3621
    %v3626 = vand.u32 2147483647, %v3525
    %vm3627 = vcmp.eq.f32.partialorder %v3626, 8.507059e+37
    %v3628 = vand.u32 %v3525, 2147483648
    %v3629 = vor.u32 1.1754944e-38, %v3628
    %v3630 = vsel %vm3627, %v3629, %v3625
    %v3631 = vmul.f32 1.0, %v3630
    %v3632 = vrcp.pop %v3526
    %v3633 = vmul.f32 %v3526, %v3632
    %v3634 = vsub.f32 1.0, %v3633
    %v3635 = vmul.f32 %v3632, %v3634
    %v3636 = vadd.f32 %v3632, %v3635
    %vm3637 = vweird.f32 %v3526
    %vm3638 = vweird.f32 %v3632
    %vm3639 = vmor %vm3637, %vm3638
    %v3640 = vsel %vm3639, %v3632, %v3636
    %v3641 = vand.u32 2147483647, %v3526
    %vm3642 = vcmp.eq.f32.partialorder %v3641, 8.507059e+37
    %v3643 = vand.u32 %v3526, 2147483648
    %v3644 = vor.u32 1.1754944e-38, %v3643
    %v3645 = vsel %vm3642, %v3644, %v3640
    %v3646 = vmul.f32 1.0, %v3645
    %v3647 = vxor.u32 %v3464, 2147483648
    %v3648 = vxor.u32 %v3468, 2147483648
    %v3649 = vxor.u32 %v3472, 2147483648
    %v3650 = vxor.u32 %v3476, 2147483648
    %v3651 = vxor.u32 %v3480, 2147483648
    %v3652 = vxor.u32 %v3484, 2147483648
    %v3653 = vxor.u32 %v3488, 2147483648
    %v3654 = vxor.u32 %v3492, 2147483648
    %v3655 = vmul.f32 %v3647, 1.442695
    %v3656 = vpow.pop %v3655
    %v3657 = vmul.f32 %v3648, 1.442695
    %v3658 = vpow.pop %v3657
    %v3659 = vmul.f32 %v3649, 1.442695
    %v3660 = vpow.pop %v3659
    %v3661 = vmul.f32 %v3650, 1.442695
    %v3662 = vpow.pop %v3661
    %v3663 = vmul.f32 %v3651, 1.442695
    %v3664 = vpow.pop %v3663
    %v3665 = vmul.f32 %v3652, 1.442695
    %v3666 = vpow.pop %v3665
    %v3667 = vmul.f32 %v3653, 1.442695
    %v3668 = vpow.pop %v3667
    %v3669 = vmul.f32 %v3654, 1.442695
    %v3670 = vpow.pop %v3669
    %v3671 = vadd.f32 %v3656, 1.0
    %v3672 = vadd.f32 %v3658, 1.0
    %v3673 = vadd.f32 %v3660, 1.0
    %v3674 = vadd.f32 %v3662, 1.0
    %v3675 = vadd.f32 %v3664, 1.0
    %v3676 = vadd.f32 %v3666, 1.0
    %v3677 = vadd.f32 %v3668, 1.0
    %v3678 = vadd.f32 %v3670, 1.0
    %v3679 = vrcp.pop %v3671
    %v3680 = vmul.f32 %v3671, %v3679
    %v3681 = vsub.f32 1.0, %v3680
    %v3682 = vmul.f32 %v3679, %v3681
    %v3683 = vadd.f32 %v3679, %v3682
    %vm3684 = vweird.f32 %v3671
    %vm3685 = vweird.f32 %v3679
    %vm3686 = vmor %vm3684, %vm3685
    %v3687 = vsel %vm3686, %v3679, %v3683
    %v3688 = vand.u32 2147483647, %v3671
    %vm3689 = vcmp.eq.f32.partialorder %v3688, 8.507059e+37
    %v3690 = vand.u32 %v3671, 2147483648
    %v3691 = vor.u32 1.1754944e-38, %v3690
    %v3692 = vsel %vm3689, %v3691, %v3687
    %v3693 = vmul.f32 1.0, %v3692
    %v3694 = vrcp.pop %v3672
    %v3695 = vmul.f32 %v3672, %v3694
    %v3696 = vsub.f32 1.0, %v3695
    %v3697 = vmul.f32 %v3694, %v3696
    %v3698 = vadd.f32 %v3694, %v3697
    %vm3699 = vweird.f32 %v3672
    %vm3700 = vweird.f32 %v3694
    %vm3701 = vmor %vm3699, %vm3700
    %v3702 = vsel %vm3701, %v3694, %v3698
    %v3703 = vand.u32 2147483647, %v3672
    %vm3704 = vcmp.eq.f32.partialorder %v3703, 8.507059e+37
    %v3705 = vand.u32 %v3672, 2147483648
    %v3706 = vor.u32 1.1754944e-38, %v3705
    %v3707 = vsel %vm3704, %v3706, %v3702
    %v3708 = vmul.f32 1.0, %v3707
    %v3709 = vrcp.pop %v3673
    %v3710 = vmul.f32 %v3673, %v3709
    %v3711 = vsub.f32 1.0, %v3710
    %v3712 = vmul.f32 %v3709, %v3711
    %v3713 = vadd.f32 %v3709, %v3712
    %vm3714 = vweird.f32 %v3673
    %vm3715 = vweird.f32 %v3709
    %vm3716 = vmor %vm3714, %vm3715
    %v3717 = vsel %vm3716, %v3709, %v3713
    %v3718 = vand.u32 2147483647, %v3673
    %vm3719 = vcmp.eq.f32.partialorder %v3718, 8.507059e+37
    %v3720 = vand.u32 %v3673, 2147483648
    %v3721 = vor.u32 1.1754944e-38, %v3720
    %v3722 = vsel %vm3719, %v3721, %v3717
    %v3723 = vmul.f32 1.0, %v3722
    %v3724 = vrcp.pop %v3674
    %v3725 = vmul.f32 %v3674, %v3724
    %v3726 = vsub.f32 1.0, %v3725
    %v3727 = vmul.f32 %v3724, %v3726
    %v3728 = vadd.f32 %v3724, %v3727
    %vm3729 = vweird.f32 %v3674
    %vm3730 = vweird.f32 %v3724
    %vm3731 = vmor %vm3729, %vm3730
    %v3732 = vsel %vm3731, %v3724, %v3728
    %v3733 = vand.u32 2147483647, %v3674
    %vm3734 = vcmp.eq.f32.partialorder %v3733, 8.507059e+37
    %v3735 = vand.u32 %v3674, 2147483648
    %v3736 = vor.u32 1.1754944e-38, %v3735
    %v3737 = vsel %vm3734, %v3736, %v3732
    %v3738 = vmul.f32 1.0, %v3737
    %v3739 = vrcp.pop %v3675
    %v3740 = vmul.f32 %v3675, %v3739
    %v3741 = vsub.f32 1.0, %v3740
    %v3742 = vmul.f32 %v3739, %v3741
    %v3743 = vadd.f32 %v3739, %v3742
    %vm3744 = vweird.f32 %v3675
    %vm3745 = vweird.f32 %v3739
    %vm3746 = vmor %vm3744, %vm3745
    %v3747 = vsel %vm3746, %v3739, %v3743
    %v3748 = vand.u32 2147483647, %v3675
    %vm3749 = vcmp.eq.f32.partialorder %v3748, 8.507059e+37
    %v3750 = vand.u32 %v3675, 2147483648
    %v3751 = vor.u32 1.1754944e-38, %v3750
    %v3752 = vsel %vm3749, %v3751, %v3747
    %v3753 = vmul.f32 1.0, %v3752
    %v3754 = vrcp.pop %v3676
    %v3755 = vmul.f32 %v3676, %v3754
    %v3756 = vsub.f32 1.0, %v3755
    %v3757 = vmul.f32 %v3754, %v3756
    %v3758 = vadd.f32 %v3754, %v3757
    %vm3759 = vweird.f32 %v3676
    %vm3760 = vweird.f32 %v3754
    %vm3761 = vmor %vm3759, %vm3760
    %v3762 = vsel %vm3761, %v3754, %v3758
    %v3763 = vand.u32 2147483647, %v3676
    %vm3764 = vcmp.eq.f32.partialorder %v3763, 8.507059e+37
    %v3765 = vand.u32 %v3676, 2147483648
    %v3766 = vor.u32 1.1754944e-38, %v3765
    %v3767 = vsel %vm3764, %v3766, %v3762
    %v3768 = vmul.f32 1.0, %v3767
    %v3769 = vrcp.pop %v3677
    %v3770 = vmul.f32 %v3677, %v3769
    %v3771 = vsub.f32 1.0, %v3770
    %v3772 = vmul.f32 %v3769, %v3771
    %v3773 = vadd.f32 %v3769, %v3772
    %vm3774 = vweird.f32 %v3677
    %vm3775 = vweird.f32 %v3769
    %vm3776 = vmor %vm3774, %vm3775
    %v3777 = vsel %vm3776, %v3769, %v3773
    %v3778 = vand.u32 2147483647, %v3677
    %vm3779 = vcmp.eq.f32.partialorder %v3778, 8.507059e+37
    %v3780 = vand.u32 %v3677, 2147483648
    %v3781 = vor.u32 1.1754944e-38, %v3780
    %v3782 = vsel %vm3779, %v3781, %v3777
    %v3783 = vmul.f32 1.0, %v3782
    %v3784 = vrcp.pop %v3678
    %v3785 = vmul.f32 %v3678, %v3784
    %v3786 = vsub.f32 1.0, %v3785
    %v3787 = vmul.f32 %v3784, %v3786
    %v3788 = vadd.f32 %v3784, %v3787
    %vm3789 = vweird.f32 %v3678
    %vm3790 = vweird.f32 %v3784
    %vm3791 = vmor %vm3789, %vm3790
    %v3792 = vsel %vm3791, %v3784, %v3788
    %v3793 = vand.u32 2147483647, %v3678
    %vm3794 = vcmp.eq.f32.partialorder %v3793, 8.507059e+37
    %v3795 = vand.u32 %v3678, 2147483648
    %v3796 = vor.u32 1.1754944e-38, %v3795
    %v3797 = vsel %vm3794, %v3796, %v3792
    %v3798 = vmul.f32 1.0, %v3797
    %v3799 = vtanh.pop %v3465
    %v3800 = vtanh.pop %v3469
    %v3801 = vtanh.pop %v3473
    %v3802 = vtanh.pop %v3477
    %v3803 = vtanh.pop %v3481
    %v3804 = vtanh.pop %v3485
    %v3805 = vtanh.pop %v3489
    %v3806 = vtanh.pop %v3493
    %v3807 = vxor.u32 %v3466, 2147483648
    %v3808 = vxor.u32 %v3470, 2147483648
    %v3809 = vxor.u32 %v3474, 2147483648
    %v3810 = vxor.u32 %v3478, 2147483648
    %v3811 = vxor.u32 %v3482, 2147483648
    %v3812 = vxor.u32 %v3486, 2147483648
    %v3813 = vxor.u32 %v3490, 2147483648
    %v3814 = vxor.u32 %v3494, 2147483648
    %v3815 = vmul.f32 %v3807, 1.442695
    %v3816 = vpow.pop %v3815
    %v3817 = vmul.f32 %v3808, 1.442695
    %v3818 = vpow.pop %v3817
    %v3819 = vmul.f32 %v3809, 1.442695
    %v3820 = vpow.pop %v3819
    %v3821 = vmul.f32 %v3810, 1.442695
    %v3822 = vpow.pop %v3821
    %v3823 = vmul.f32 %v3811, 1.442695
    %v3824 = vpow.pop %v3823
    %v3825 = vmul.f32 %v3812, 1.442695
    %v3826 = vpow.pop %v3825
    %v3827 = vmul.f32 %v3813, 1.442695
    %v3828 = vpow.pop %v3827
    %v3829 = vmul.f32 %v3814, 1.442695
    %v3830 = vpow.pop %v3829
    %v3831 = vadd.f32 %v3816, 1.0
    %v3832 = vadd.f32 %v3818, 1.0
    %v3833 = vadd.f32 %v3820, 1.0
    %v3834 = vadd.f32 %v3822, 1.0
    %v3835 = vadd.f32 %v3824, 1.0
    %v3836 = vadd.f32 %v3826, 1.0
    %v3837 = vadd.f32 %v3828, 1.0
    %v3838 = vadd.f32 %v3830, 1.0
    %v3839 = vrcp.pop %v3831
    %v3840 = vmul.f32 %v3831, %v3839
    %v3841 = vsub.f32 1.0, %v3840
    %v3842 = vmul.f32 %v3839, %v3841
    %v3843 = vadd.f32 %v3839, %v3842
    %vm3844 = vweird.f32 %v3831
    %vm3845 = vweird.f32 %v3839
    %vm3846 = vmor %vm3844, %vm3845
    %v3847 = vsel %vm3846, %v3839, %v3843
    %v3848 = vand.u32 2147483647, %v3831
    %vm3849 = vcmp.eq.f32.partialorder %v3848, 8.507059e+37
    %v3850 = vand.u32 %v3831, 2147483648
    %v3851 = vor.u32 1.1754944e-38, %v3850
    %v3852 = vsel %vm3849, %v3851, %v3847
    %v3853 = vmul.f32 1.0, %v3852
    %v3854 = vrcp.pop %v3832
    %v3855 = vmul.f32 %v3832, %v3854
    %v3856 = vsub.f32 1.0, %v3855
    %v3857 = vmul.f32 %v3854, %v3856
    %v3858 = vadd.f32 %v3854, %v3857
    %vm3859 = vweird.f32 %v3832
    %vm3860 = vweird.f32 %v3854
    %vm3861 = vmor %vm3859, %vm3860
    %v3862 = vsel %vm3861, %v3854, %v3858
    %v3863 = vand.u32 2147483647, %v3832
    %vm3864 = vcmp.eq.f32.partialorder %v3863, 8.507059e+37
    %v3865 = vand.u32 %v3832, 2147483648
    %v3866 = vor.u32 1.1754944e-38, %v3865
    %v3867 = vsel %vm3864, %v3866, %v3862
    %v3868 = vmul.f32 1.0, %v3867
    %v3869 = vrcp.pop %v3833
    %v3870 = vmul.f32 %v3833, %v3869
    %v3871 = vsub.f32 1.0, %v3870
    %v3872 = vmul.f32 %v3869, %v3871
    %v3873 = vadd.f32 %v3869, %v3872
    %vm3874 = vweird.f32 %v3833
    %vm3875 = vweird.f32 %v3869
    %vm3876 = vmor %vm3874, %vm3875
    %v3877 = vsel %vm3876, %v3869, %v3873
    %v3878 = vand.u32 2147483647, %v3833
    %vm3879 = vcmp.eq.f32.partialorder %v3878, 8.507059e+37
    %v3880 = vand.u32 %v3833, 2147483648
    %v3881 = vor.u32 1.1754944e-38, %v3880
    %v3882 = vsel %vm3879, %v3881, %v3877
    %v3883 = vmul.f32 1.0, %v3882
    %v3884 = vrcp.pop %v3834
    %v3885 = vmul.f32 %v3834, %v3884
    %v3886 = vsub.f32 1.0, %v3885
    %v3887 = vmul.f32 %v3884, %v3886
    %v3888 = vadd.f32 %v3884, %v3887
    %vm3889 = vweird.f32 %v3834
    %vm3890 = vweird.f32 %v3884
    %vm3891 = vmor %vm3889, %vm3890
    %v3892 = vsel %vm3891, %v3884, %v3888
    %v3893 = vand.u32 2147483647, %v3834
    %vm3894 = vcmp.eq.f32.partialorder %v3893, 8.507059e+37
    %v3895 = vand.u32 %v3834, 2147483648
    %v3896 = vor.u32 1.1754944e-38, %v3895
    %v3897 = vsel %vm3894, %v3896, %v3892
    %v3898 = vmul.f32 1.0, %v3897
    %v3899 = vrcp.pop %v3835
    %v3900 = vmul.f32 %v3835, %v3899
    %v3901 = vsub.f32 1.0, %v3900
    %v3902 = vmul.f32 %v3899, %v3901
    %v3903 = vadd.f32 %v3899, %v3902
    %vm3904 = vweird.f32 %v3835
    %vm3905 = vweird.f32 %v3899
    %vm3906 = vmor %vm3904, %vm3905
    %v3907 = vsel %vm3906, %v3899, %v3903
    %v3908 = vand.u32 2147483647, %v3835
    %vm3909 = vcmp.eq.f32.partialorder %v3908, 8.507059e+37
    %v3910 = vand.u32 %v3835, 2147483648
    %v3911 = vor.u32 1.1754944e-38, %v3910
    %v3912 = vsel %vm3909, %v3911, %v3907
    %v3913 = vmul.f32 1.0, %v3912
    %v3914 = vrcp.pop %v3836
    %v3915 = vmul.f32 %v3836, %v3914
    %v3916 = vsub.f32 1.0, %v3915
    %v3917 = vmul.f32 %v3914, %v3916
    %v3918 = vadd.f32 %v3914, %v3917
    %vm3919 = vweird.f32 %v3836
    %vm3920 = vweird.f32 %v3914
    %vm3921 = vmor %vm3919, %vm3920
    %v3922 = vsel %vm3921, %v3914, %v3918
    %v3923 = vand.u32 2147483647, %v3836
    %vm3924 = vcmp.eq.f32.partialorder %v3923, 8.507059e+37
    %v3925 = vand.u32 %v3836, 2147483648
    %v3926 = vor.u32 1.1754944e-38, %v3925
    %v3927 = vsel %vm3924, %v3926, %v3922
    %v3928 = vmul.f32 1.0, %v3927
    %v3929 = vrcp.pop %v3837
    %v3930 = vmul.f32 %v3837, %v3929
    %v3931 = vsub.f32 1.0, %v3930
    %v3932 = vmul.f32 %v3929, %v3931
    %v3933 = vadd.f32 %v3929, %v3932
    %vm3934 = vweird.f32 %v3837
    %vm3935 = vweird.f32 %v3929
    %vm3936 = vmor %vm3934, %vm3935
    %v3937 = vsel %vm3936, %v3929, %v3933
    %v3938 = vand.u32 2147483647, %v3837
    %vm3939 = vcmp.eq.f32.partialorder %v3938, 8.507059e+37
    %v3940 = vand.u32 %v3837, 2147483648
    %v3941 = vor.u32 1.1754944e-38, %v3940
    %v3942 = vsel %vm3939, %v3941, %v3937
    %v3943 = vmul.f32 1.0, %v3942
    %v3944 = vrcp.pop %v3838
    %v3945 = vmul.f32 %v3838, %v3944
    %v3946 = vsub.f32 1.0, %v3945
    %v3947 = vmul.f32 %v3944, %v3946
    %v3948 = vadd.f32 %v3944, %v3947
    %vm3949 = vweird.f32 %v3838
    %vm3950 = vweird.f32 %v3944
    %vm3951 = vmor %vm3949, %vm3950
    %v3952 = vsel %vm3951, %v3944, %v3948
    %v3953 = vand.u32 2147483647, %v3838
    %vm3954 = vcmp.eq.f32.partialorder %v3953, 8.507059e+37
    %v3955 = vand.u32 %v3838, 2147483648
    %v3956 = vor.u32 1.1754944e-38, %v3955
    %v3957 = vsel %vm3954, %v3956, %v3952
    %v3958 = vmul.f32 1.0, %v3957
    %v3967 = vrot.slane %v3272, 7
    %v3968 = vrot.slane %v3273, 7
    %v3969 = vrot.slane %v3274, 7
    %v3970 = vrot.slane %v3275, 7
    %v3971 = vrot.slane %v3276, 7
    %v3972 = vrot.slane %v3277, 7
    %v3973 = vrot.slane %v3278, 7
    %v3974 = vrot.slane %v3279, 7
    %v3983 = vmul.f32 %v3693, %v3967
    %v3984 = vmul.f32 %v3708, %v3968
    %v3985 = vmul.f32 %v3723, %v3969
    %v3986 = vmul.f32 %v3738, %v3970
    %v3987 = vmul.f32 %v3753, %v3971
    %v3988 = vmul.f32 %v3768, %v3972
    %v3989 = vmul.f32 %v3783, %v3973
    %v3990 = vmul.f32 %v3798, %v3974
    %v3991 = vmul.f32 %v3541, %v3799
    %v3992 = vmul.f32 %v3556, %v3800
    %v3993 = vmul.f32 %v3571, %v3801
    %v3994 = vmul.f32 %v3586, %v3802
    %v3995 = vmul.f32 %v3601, %v3803
    %v3996 = vmul.f32 %v3616, %v3804
    %v3997 = vmul.f32 %v3631, %v3805
    %v3998 = vmul.f32 %v3646, %v3806
    %v3999 = vadd.f32 %v3983, %v3991
    %v4000 = vadd.f32 %v3984, %v3992
    %v4001 = vadd.f32 %v3985, %v3993
    %v4002 = vadd.f32 %v3986, %v3994
    %v4003 = vadd.f32 %v3987, %v3995
    %v4004 = vadd.f32 %v3988, %v3996
    %v4005 = vadd.f32 %v3989, %v3997
    %v4006 = vadd.f32 %v3990, %v3998
    %v4007 = vtanh.pop %v3999
    %v4008 = vtanh.pop %v4000
    %v4009 = vtanh.pop %v4001
    %v4010 = vtanh.pop %v4002
    %v4011 = vtanh.pop %v4003
    %v4012 = vtanh.pop %v4004
    %v4013 = vtanh.pop %v4005
    %v4014 = vtanh.pop %v4006
    %v4015 = vmul.f32 %v3853, %v4007
    %v4016 = vmul.f32 %v3868, %v4008
    %v4017 = vmul.f32 %v3883, %v4009
    %v4018 = vmul.f32 %v3898, %v4010
    %v4019 = vmul.f32 %v3913, %v4011
    %v4020 = vmul.f32 %v3928, %v4012
    %v4021 = vmul.f32 %v3943, %v4013
    %v4022 = vmul.f32 %v3958, %v4014
    %v4031 = vrot.slane %v4015, 4
    %v4032 = vrot.slane %v4016, 3
    %v4033 = vsel %vm1117, %v4032, %v4031
    %v4034 = vrot.slane %v4017, 2
    %v4035 = vsel %vm1120, %v4034, %v4033
    %v4036 = vrot.slane %v4018, 1
    %v4037 = vsel %vm1123, %v4036, %v4035
    %v4038 = vsel %vm1126, %v4019, %v4037
    %v4039 = vrot.slane %v4020, 7
    %v4040 = vsel %vm1129, %v4039, %v4038
    %v4041 = vrot.slane %v4021, 6
    %v4042 = vsel %vm1132, %v4041, %v4040
    %v4043 = vrot.slane %v4022, 5
    %v4044 = vsel %vm1135, %v4043, %v4042
    %4046 = vmatpush.msra.mxu0 %v406
    %4047 = vmatpush.msra.mxu0 %v402
    %4048 = vmatpush.msra.mxu0 %v398
    %4049 = vmatpush.msra.mxu0 %v394
    %4050 = vmatpush.msra.mxu0 %v390
    %4051 = vmatpush.msra.mxu0 %v386
    %4052 = vmatpush.msra.mxu0 %v382
    %4053 = vmatpush.msra.mxu0 %v378
    %4054 = vmatpush.msra.mxu0 %v374
    %4055 = vmatpush.msra.mxu0 %v370
    %4056 = vmatpush.msra.mxu0 %v366
    %4057 = vmatpush.msra.mxu0 %v362
    %4058 = vmatpush.msra.mxu0 %v358
    %4059 = vmatpush.msra.mxu0 %v354
    %4060 = vmatpush.msra.mxu0 %v350
    %4061 = vmatpush.msra.mxu0 %v346
    %4062 = vmatmul.f32.gmra.mxu0 %v4044
    %v4063 = vpop.f32.mrf.mxu0
    %v4064 = vadd.f32 0.0, %v4063
    %4065 = vdwg.mxu0
    %4066 = vmatpush.msra.mxu0 %v407
    %4067 = vmatpush.msra.mxu0 %v403
    %4068 = vmatpush.msra.mxu0 %v399
    %4069 = vmatpush.msra.mxu0 %v395
    %4070 = vmatpush.msra.mxu0 %v391
    %4071 = vmatpush.msra.mxu0 %v387
    %4072 = vmatpush.msra.mxu0 %v383
    %4073 = vmatpush.msra.mxu0 %v379
    %4074 = vmatpush.msra.mxu0 %v375
    %4075 = vmatpush.msra.mxu0 %v371
    %4076 = vmatpush.msra.mxu0 %v367
    %4077 = vmatpush.msra.mxu0 %v363
    %4078 = vmatpush.msra.mxu0 %v359
    %4079 = vmatpush.msra.mxu0 %v355
    %4080 = vmatpush.msra.mxu0 %v351
    %4081 = vmatpush.msra.mxu0 %v347
    %4082 = vmatmul.f32.gmra.mxu0 %v4044
    %v4083 = vpop.f32.mrf.mxu0
    %v4084 = vadd.f32 0.0, %v4083
    %4085 = vdwg.mxu0
    %4086 = vmatpush.msra.mxu0 %v408
    %4087 = vmatpush.msra.mxu0 %v404
    %4088 = vmatpush.msra.mxu0 %v400
    %4089 = vmatpush.msra.mxu0 %v396
    %4090 = vmatpush.msra.mxu0 %v392
    %4091 = vmatpush.msra.mxu0 %v388
    %4092 = vmatpush.msra.mxu0 %v384
    %4093 = vmatpush.msra.mxu0 %v380
    %4094 = vmatpush.msra.mxu0 %v376
    %4095 = vmatpush.msra.mxu0 %v372
    %4096 = vmatpush.msra.mxu0 %v368
    %4097 = vmatpush.msra.mxu0 %v364
    %4098 = vmatpush.msra.mxu0 %v360
    %4099 = vmatpush.msra.mxu0 %v356
    %4100 = vmatpush.msra.mxu0 %v352
    %4101 = vmatpush.msra.mxu0 %v348
    %4102 = vmatmul.f32.gmra.mxu0 %v4044
    %v4103 = vpop.f32.mrf.mxu0
    %v4104 = vadd.f32 0.0, %v4103
    %4105 = vdwg.mxu0
    %4106 = vmatpush.msra.mxu0 %v409
    %4107 = vmatpush.msra.mxu0 %v405
    %4108 = vmatpush.msra.mxu0 %v401
    %4109 = vmatpush.msra.mxu0 %v397
    %4110 = vmatpush.msra.mxu0 %v393
    %4111 = vmatpush.msra.mxu0 %v389
    %4112 = vmatpush.msra.mxu0 %v385
    %4113 = vmatpush.msra.mxu0 %v381
    %4114 = vmatpush.msra.mxu0 %v377
    %4115 = vmatpush.msra.mxu0 %v373
    %4116 = vmatpush.msra.mxu0 %v369
    %4117 = vmatpush.msra.mxu0 %v365
    %4118 = vmatpush.msra.mxu0 %v361
    %4119 = vmatpush.msra.mxu0 %v357
    %4120 = vmatpush.msra.mxu0 %v353
    %4121 = vmatpush.msra.mxu0 %v349
    %4122 = vmatmul.f32.gmra.mxu0 %v4044
    %v4123 = vpop.f32.mrf.mxu0
    %v4124 = vadd.f32 0.0, %v4123
    %4125 = vdwg.mxu0
    %v4130 = vrot.slane %v4064, 3
    %v4131 = vrot.slane %v4084, 3
    %v4132 = vrot.slane %v4104, 3
    %v4133 = vrot.slane %v4124, 3
    %v4134 = vrot.slane %v4064, 4
    %v4135 = vrot.slane %v4084, 4
    %v4136 = vrot.slane %v4104, 4
    %v4137 = vrot.slane %v4124, 4
    %v4138 = vrot.slane %v4064, 5
    %v4139 = vrot.slane %v4084, 5
    %v4140 = vrot.slane %v4104, 5
    %v4141 = vrot.slane %v4124, 5
    %v4142 = vrot.slane %v4064, 6
    %v4143 = vrot.slane %v4084, 6
    %v4144 = vrot.slane %v4104, 6
    %v4145 = vrot.slane %v4124, 6
    %v4146 = vrot.slane %v4064, 7
    %v4147 = vrot.slane %v4084, 7
    %v4148 = vrot.slane %v4104, 7
    %v4149 = vrot.slane %v4124, 7
    %v4150 = vrot.slane %v4064, 1
    %v4151 = vrot.slane %v4084, 1
    %v4152 = vrot.slane %v4104, 1
    %v4153 = vrot.slane %v4124, 1
    %v4154 = vrot.slane %v4064, 2
    %v4155 = vrot.slane %v4084, 2
    %v4156 = vrot.slane %v4104, 2
    %v4157 = vrot.slane %v4124, 2
    %v4190 = vadd.f32 %v200, %v4130
    %v4191 = vadd.f32 %v241, %v4131
    %v4192 = vadd.f32 %v282, %v4132
    %v4193 = vadd.f32 %v323, %v4133
    %v4194 = vadd.f32 %v203, %v4134
    %v4195 = vadd.f32 %v244, %v4135
    %v4196 = vadd.f32 %v285, %v4136
    %v4197 = vadd.f32 %v326, %v4137
    %v4198 = vadd.f32 %v206, %v4138
    %v4199 = vadd.f32 %v247, %v4139
    %v4200 = vadd.f32 %v288, %v4140
    %v4201 = vadd.f32 %v329, %v4141
    %v4202 = vadd.f32 %v209, %v4142
    %v4203 = vadd.f32 %v250, %v4143
    %v4204 = vadd.f32 %v291, %v4144
    %v4205 = vadd.f32 %v332, %v4145
    %v4206 = vadd.f32 %v212, %v4146
    %v4207 = vadd.f32 %v253, %v4147
    %v4208 = vadd.f32 %v294, %v4148
    %v4209 = vadd.f32 %v335, %v4149
    %v4210 = vadd.f32 %v215, %v4064
    %v4211 = vadd.f32 %v256, %v4084
    %v4212 = vadd.f32 %v297, %v4104
    %v4213 = vadd.f32 %v338, %v4124
    %v4214 = vadd.f32 %v218, %v4150
    %v4215 = vadd.f32 %v259, %v4151
    %v4216 = vadd.f32 %v300, %v4152
    %v4217 = vadd.f32 %v341, %v4153
    %v4218 = vadd.f32 %v221, %v4154
    %v4219 = vadd.f32 %v262, %v4155
    %v4220 = vadd.f32 %v303, %v4156
    %v4221 = vadd.f32 %v344, %v4157
    %v4222 = vxor.u32 %v4190, 2147483648
    %v4223 = vxor.u32 %v4194, 2147483648
    %v4224 = vxor.u32 %v4198, 2147483648
    %v4225 = vxor.u32 %v4202, 2147483648
    %v4226 = vxor.u32 %v4206, 2147483648
    %v4227 = vxor.u32 %v4210, 2147483648
    %v4228 = vxor.u32 %v4214, 2147483648
    %v4229 = vxor.u32 %v4218, 2147483648
    %v4230 = vmul.f32 %v4222, 1.442695
    %v4231 = vpow.pop %v4230
    %v4232 = vmul.f32 %v4223, 1.442695
    %v4233 = vpow.pop %v4232
    %v4234 = vmul.f32 %v4224, 1.442695
    %v4235 = vpow.pop %v4234
    %v4236 = vmul.f32 %v4225, 1.442695
    %v4237 = vpow.pop %v4236
    %v4238 = vmul.f32 %v4226, 1.442695
    %v4239 = vpow.pop %v4238
    %v4240 = vmul.f32 %v4227, 1.442695
    %v4241 = vpow.pop %v4240
    %v4242 = vmul.f32 %v4228, 1.442695
    %v4243 = vpow.pop %v4242
    %v4244 = vmul.f32 %v4229, 1.442695
    %v4245 = vpow.pop %v4244
    %v4246 = vadd.f32 %v4231, 1.0
    %v4247 = vadd.f32 %v4233, 1.0
    %v4248 = vadd.f32 %v4235, 1.0
    %v4249 = vadd.f32 %v4237, 1.0
    %v4250 = vadd.f32 %v4239, 1.0
    %v4251 = vadd.f32 %v4241, 1.0
    %v4252 = vadd.f32 %v4243, 1.0
    %v4253 = vadd.f32 %v4245, 1.0
    %v4254 = vrcp.pop %v4246
    %v4255 = vmul.f32 %v4246, %v4254
    %v4256 = vsub.f32 1.0, %v4255
    %v4257 = vmul.f32 %v4254, %v4256
    %v4258 = vadd.f32 %v4254, %v4257
    %vm4259 = vweird.f32 %v4246
    %vm4260 = vweird.f32 %v4254
    %vm4261 = vmor %vm4259, %vm4260
    %v4262 = vsel %vm4261, %v4254, %v4258
    %v4263 = vand.u32 2147483647, %v4246
    %vm4264 = vcmp.eq.f32.partialorder %v4263, 8.507059e+37
    %v4265 = vand.u32 %v4246, 2147483648
    %v4266 = vor.u32 1.1754944e-38, %v4265
    %v4267 = vsel %vm4264, %v4266, %v4262
    %v4268 = vmul.f32 1.0, %v4267
    %v4269 = vrcp.pop %v4247
    %v4270 = vmul.f32 %v4247, %v4269
    %v4271 = vsub.f32 1.0, %v4270
    %v4272 = vmul.f32 %v4269, %v4271
    %v4273 = vadd.f32 %v4269, %v4272
    %vm4274 = vweird.f32 %v4247
    %vm4275 = vweird.f32 %v4269
    %vm4276 = vmor %vm4274, %vm4275
    %v4277 = vsel %vm4276, %v4269, %v4273
    %v4278 = vand.u32 2147483647, %v4247
    %vm4279 = vcmp.eq.f32.partialorder %v4278, 8.507059e+37
    %v4280 = vand.u32 %v4247, 2147483648
    %v4281 = vor.u32 1.1754944e-38, %v4280
    %v4282 = vsel %vm4279, %v4281, %v4277
    %v4283 = vmul.f32 1.0, %v4282
    %v4284 = vrcp.pop %v4248
    %v4285 = vmul.f32 %v4248, %v4284
    %v4286 = vsub.f32 1.0, %v4285
    %v4287 = vmul.f32 %v4284, %v4286
    %v4288 = vadd.f32 %v4284, %v4287
    %vm4289 = vweird.f32 %v4248
    %vm4290 = vweird.f32 %v4284
    %vm4291 = vmor %vm4289, %vm4290
    %v4292 = vsel %vm4291, %v4284, %v4288
    %v4293 = vand.u32 2147483647, %v4248
    %vm4294 = vcmp.eq.f32.partialorder %v4293, 8.507059e+37
    %v4295 = vand.u32 %v4248, 2147483648
    %v4296 = vor.u32 1.1754944e-38, %v4295
    %v4297 = vsel %vm4294, %v4296, %v4292
    %v4298 = vmul.f32 1.0, %v4297
    %v4299 = vrcp.pop %v4249
    %v4300 = vmul.f32 %v4249, %v4299
    %v4301 = vsub.f32 1.0, %v4300
    %v4302 = vmul.f32 %v4299, %v4301
    %v4303 = vadd.f32 %v4299, %v4302
    %vm4304 = vweird.f32 %v4249
    %vm4305 = vweird.f32 %v4299
    %vm4306 = vmor %vm4304, %vm4305
    %v4307 = vsel %vm4306, %v4299, %v4303
    %v4308 = vand.u32 2147483647, %v4249
    %vm4309 = vcmp.eq.f32.partialorder %v4308, 8.507059e+37
    %v4310 = vand.u32 %v4249, 2147483648
    %v4311 = vor.u32 1.1754944e-38, %v4310
    %v4312 = vsel %vm4309, %v4311, %v4307
    %v4313 = vmul.f32 1.0, %v4312
    %v4314 = vrcp.pop %v4250
    %v4315 = vmul.f32 %v4250, %v4314
    %v4316 = vsub.f32 1.0, %v4315
    %v4317 = vmul.f32 %v4314, %v4316
    %v4318 = vadd.f32 %v4314, %v4317
    %vm4319 = vweird.f32 %v4250
    %vm4320 = vweird.f32 %v4314
    %vm4321 = vmor %vm4319, %vm4320
    %v4322 = vsel %vm4321, %v4314, %v4318
    %v4323 = vand.u32 2147483647, %v4250
    %vm4324 = vcmp.eq.f32.partialorder %v4323, 8.507059e+37
    %v4325 = vand.u32 %v4250, 2147483648
    %v4326 = vor.u32 1.1754944e-38, %v4325
    %v4327 = vsel %vm4324, %v4326, %v4322
    %v4328 = vmul.f32 1.0, %v4327
    %v4329 = vrcp.pop %v4251
    %v4330 = vmul.f32 %v4251, %v4329
    %v4331 = vsub.f32 1.0, %v4330
    %v4332 = vmul.f32 %v4329, %v4331
    %v4333 = vadd.f32 %v4329, %v4332
    %vm4334 = vweird.f32 %v4251
    %vm4335 = vweird.f32 %v4329
    %vm4336 = vmor %vm4334, %vm4335
    %v4337 = vsel %vm4336, %v4329, %v4333
    %v4338 = vand.u32 2147483647, %v4251
    %vm4339 = vcmp.eq.f32.partialorder %v4338, 8.507059e+37
    %v4340 = vand.u32 %v4251, 2147483648
    %v4341 = vor.u32 1.1754944e-38, %v4340
    %v4342 = vsel %vm4339, %v4341, %v4337
    %v4343 = vmul.f32 1.0, %v4342
    %v4344 = vrcp.pop %v4252
    %v4345 = vmul.f32 %v4252, %v4344
    %v4346 = vsub.f32 1.0, %v4345
    %v4347 = vmul.f32 %v4344, %v4346
    %v4348 = vadd.f32 %v4344, %v4347
    %vm4349 = vweird.f32 %v4252
    %vm4350 = vweird.f32 %v4344
    %vm4351 = vmor %vm4349, %vm4350
    %v4352 = vsel %vm4351, %v4344, %v4348
    %v4353 = vand.u32 2147483647, %v4252
    %vm4354 = vcmp.eq.f32.partialorder %v4353, 8.507059e+37
    %v4355 = vand.u32 %v4252, 2147483648
    %v4356 = vor.u32 1.1754944e-38, %v4355
    %v4357 = vsel %vm4354, %v4356, %v4352
    %v4358 = vmul.f32 1.0, %v4357
    %v4359 = vrcp.pop %v4253
    %v4360 = vmul.f32 %v4253, %v4359
    %v4361 = vsub.f32 1.0, %v4360
    %v4362 = vmul.f32 %v4359, %v4361
    %v4363 = vadd.f32 %v4359, %v4362
    %vm4364 = vweird.f32 %v4253
    %vm4365 = vweird.f32 %v4359
    %vm4366 = vmor %vm4364, %vm4365
    %v4367 = vsel %vm4366, %v4359, %v4363
    %v4368 = vand.u32 2147483647, %v4253
    %vm4369 = vcmp.eq.f32.partialorder %v4368, 8.507059e+37
    %v4370 = vand.u32 %v4253, 2147483648
    %v4371 = vor.u32 1.1754944e-38, %v4370
    %v4372 = vsel %vm4369, %v4371, %v4367
    %v4373 = vmul.f32 1.0, %v4372
    %v4374 = vxor.u32 %v4191, 2147483648
    %v4375 = vxor.u32 %v4195, 2147483648
    %v4376 = vxor.u32 %v4199, 2147483648
    %v4377 = vxor.u32 %v4203, 2147483648
    %v4378 = vxor.u32 %v4207, 2147483648
    %v4379 = vxor.u32 %v4211, 2147483648
    %v4380 = vxor.u32 %v4215, 2147483648
    %v4381 = vxor.u32 %v4219, 2147483648
    %v4382 = vmul.f32 %v4374, 1.442695
    %v4383 = vpow.pop %v4382
    %v4384 = vmul.f32 %v4375, 1.442695
    %v4385 = vpow.pop %v4384
    %v4386 = vmul.f32 %v4376, 1.442695
    %v4387 = vpow.pop %v4386
    %v4388 = vmul.f32 %v4377, 1.442695
    %v4389 = vpow.pop %v4388
    %v4390 = vmul.f32 %v4378, 1.442695
    %v4391 = vpow.pop %v4390
    %v4392 = vmul.f32 %v4379, 1.442695
    %v4393 = vpow.pop %v4392
    %v4394 = vmul.f32 %v4380, 1.442695
    %v4395 = vpow.pop %v4394
    %v4396 = vmul.f32 %v4381, 1.442695
    %v4397 = vpow.pop %v4396
    %v4398 = vadd.f32 %v4383, 1.0
    %v4399 = vadd.f32 %v4385, 1.0
    %v4400 = vadd.f32 %v4387, 1.0
    %v4401 = vadd.f32 %v4389, 1.0
    %v4402 = vadd.f32 %v4391, 1.0
    %v4403 = vadd.f32 %v4393, 1.0
    %v4404 = vadd.f32 %v4395, 1.0
    %v4405 = vadd.f32 %v4397, 1.0
    %v4406 = vrcp.pop %v4398
    %v4407 = vmul.f32 %v4398, %v4406
    %v4408 = vsub.f32 1.0, %v4407
    %v4409 = vmul.f32 %v4406, %v4408
    %v4410 = vadd.f32 %v4406, %v4409
    %vm4411 = vweird.f32 %v4398
    %vm4412 = vweird.f32 %v4406
    %vm4413 = vmor %vm4411, %vm4412
    %v4414 = vsel %vm4413, %v4406, %v4410
    %v4415 = vand.u32 2147483647, %v4398
    %vm4416 = vcmp.eq.f32.partialorder %v4415, 8.507059e+37
    %v4417 = vand.u32 %v4398, 2147483648
    %v4418 = vor.u32 1.1754944e-38, %v4417
    %v4419 = vsel %vm4416, %v4418, %v4414
    %v4420 = vmul.f32 1.0, %v4419
    %v4421 = vrcp.pop %v4399
    %v4422 = vmul.f32 %v4399, %v4421
    %v4423 = vsub.f32 1.0, %v4422
    %v4424 = vmul.f32 %v4421, %v4423
    %v4425 = vadd.f32 %v4421, %v4424
    %vm4426 = vweird.f32 %v4399
    %vm4427 = vweird.f32 %v4421
    %vm4428 = vmor %vm4426, %vm4427
    %v4429 = vsel %vm4428, %v4421, %v4425
    %v4430 = vand.u32 2147483647, %v4399
    %vm4431 = vcmp.eq.f32.partialorder %v4430, 8.507059e+37
    %v4432 = vand.u32 %v4399, 2147483648
    %v4433 = vor.u32 1.1754944e-38, %v4432
    %v4434 = vsel %vm4431, %v4433, %v4429
    %v4435 = vmul.f32 1.0, %v4434
    %v4436 = vrcp.pop %v4400
    %v4437 = vmul.f32 %v4400, %v4436
    %v4438 = vsub.f32 1.0, %v4437
    %v4439 = vmul.f32 %v4436, %v4438
    %v4440 = vadd.f32 %v4436, %v4439
    %vm4441 = vweird.f32 %v4400
    %vm4442 = vweird.f32 %v4436
    %vm4443 = vmor %vm4441, %vm4442
    %v4444 = vsel %vm4443, %v4436, %v4440
    %v4445 = vand.u32 2147483647, %v4400
    %vm4446 = vcmp.eq.f32.partialorder %v4445, 8.507059e+37
    %v4447 = vand.u32 %v4400, 2147483648
    %v4448 = vor.u32 1.1754944e-38, %v4447
    %v4449 = vsel %vm4446, %v4448, %v4444
    %v4450 = vmul.f32 1.0, %v4449
    %v4451 = vrcp.pop %v4401
    %v4452 = vmul.f32 %v4401, %v4451
    %v4453 = vsub.f32 1.0, %v4452
    %v4454 = vmul.f32 %v4451, %v4453
    %v4455 = vadd.f32 %v4451, %v4454
    %vm4456 = vweird.f32 %v4401
    %vm4457 = vweird.f32 %v4451
    %vm4458 = vmor %vm4456, %vm4457
    %v4459 = vsel %vm4458, %v4451, %v4455
    %v4460 = vand.u32 2147483647, %v4401
    %vm4461 = vcmp.eq.f32.partialorder %v4460, 8.507059e+37
    %v4462 = vand.u32 %v4401, 2147483648
    %v4463 = vor.u32 1.1754944e-38, %v4462
    %v4464 = vsel %vm4461, %v4463, %v4459
    %v4465 = vmul.f32 1.0, %v4464
    %v4466 = vrcp.pop %v4402
    %v4467 = vmul.f32 %v4402, %v4466
    %v4468 = vsub.f32 1.0, %v4467
    %v4469 = vmul.f32 %v4466, %v4468
    %v4470 = vadd.f32 %v4466, %v4469
    %vm4471 = vweird.f32 %v4402
    %vm4472 = vweird.f32 %v4466
    %vm4473 = vmor %vm4471, %vm4472
    %v4474 = vsel %vm4473, %v4466, %v4470
    %v4475 = vand.u32 2147483647, %v4402
    %vm4476 = vcmp.eq.f32.partialorder %v4475, 8.507059e+37
    %v4477 = vand.u32 %v4402, 2147483648
    %v4478 = vor.u32 1.1754944e-38, %v4477
    %v4479 = vsel %vm4476, %v4478, %v4474
    %v4480 = vmul.f32 1.0, %v4479
    %v4481 = vrcp.pop %v4403
    %v4482 = vmul.f32 %v4403, %v4481
    %v4483 = vsub.f32 1.0, %v4482
    %v4484 = vmul.f32 %v4481, %v4483
    %v4485 = vadd.f32 %v4481, %v4484
    %vm4486 = vweird.f32 %v4403
    %vm4487 = vweird.f32 %v4481
    %vm4488 = vmor %vm4486, %vm4487
    %v4489 = vsel %vm4488, %v4481, %v4485
    %v4490 = vand.u32 2147483647, %v4403
    %vm4491 = vcmp.eq.f32.partialorder %v4490, 8.507059e+37
    %v4492 = vand.u32 %v4403, 2147483648
    %v4493 = vor.u32 1.1754944e-38, %v4492
    %v4494 = vsel %vm4491, %v4493, %v4489
    %v4495 = vmul.f32 1.0, %v4494
    %v4496 = vrcp.pop %v4404
    %v4497 = vmul.f32 %v4404, %v4496
    %v4498 = vsub.f32 1.0, %v4497
    %v4499 = vmul.f32 %v4496, %v4498
    %v4500 = vadd.f32 %v4496, %v4499
    %vm4501 = vweird.f32 %v4404
    %vm4502 = vweird.f32 %v4496
    %vm4503 = vmor %vm4501, %vm4502
    %v4504 = vsel %vm4503, %v4496, %v4500
    %v4505 = vand.u32 2147483647, %v4404
    %vm4506 = vcmp.eq.f32.partialorder %v4505, 8.507059e+37
    %v4507 = vand.u32 %v4404, 2147483648
    %v4508 = vor.u32 1.1754944e-38, %v4507
    %v4509 = vsel %vm4506, %v4508, %v4504
    %v4510 = vmul.f32 1.0, %v4509
    %v4511 = vrcp.pop %v4405
    %v4512 = vmul.f32 %v4405, %v4511
    %v4513 = vsub.f32 1.0, %v4512
    %v4514 = vmul.f32 %v4511, %v4513
    %v4515 = vadd.f32 %v4511, %v4514
    %vm4516 = vweird.f32 %v4405
    %vm4517 = vweird.f32 %v4511
    %vm4518 = vmor %vm4516, %vm4517
    %v4519 = vsel %vm4518, %v4511, %v4515
    %v4520 = vand.u32 2147483647, %v4405
    %vm4521 = vcmp.eq.f32.partialorder %v4520, 8.507059e+37
    %v4522 = vand.u32 %v4405, 2147483648
    %v4523 = vor.u32 1.1754944e-38, %v4522
    %v4524 = vsel %vm4521, %v4523, %v4519
    %v4525 = vmul.f32 1.0, %v4524
    %v4526 = vtanh.pop %v4192
    %v4527 = vtanh.pop %v4196
    %v4528 = vtanh.pop %v4200
    %v4529 = vtanh.pop %v4204
    %v4530 = vtanh.pop %v4208
    %v4531 = vtanh.pop %v4212
    %v4532 = vtanh.pop %v4216
    %v4533 = vtanh.pop %v4220
    %v4534 = vxor.u32 %v4193, 2147483648
    %v4535 = vxor.u32 %v4197, 2147483648
    %v4536 = vxor.u32 %v4201, 2147483648
    %v4537 = vxor.u32 %v4205, 2147483648
    %v4538 = vxor.u32 %v4209, 2147483648
    %v4539 = vxor.u32 %v4213, 2147483648
    %v4540 = vxor.u32 %v4217, 2147483648
    %v4541 = vxor.u32 %v4221, 2147483648
    %v4542 = vmul.f32 %v4534, 1.442695
    %v4543 = vpow.pop %v4542
    %v4544 = vmul.f32 %v4535, 1.442695
    %v4545 = vpow.pop %v4544
    %v4546 = vmul.f32 %v4536, 1.442695
    %v4547 = vpow.pop %v4546
    %v4548 = vmul.f32 %v4537, 1.442695
    %v4549 = vpow.pop %v4548
    %v4550 = vmul.f32 %v4538, 1.442695
    %v4551 = vpow.pop %v4550
    %v4552 = vmul.f32 %v4539, 1.442695
    %v4553 = vpow.pop %v4552
    %v4554 = vmul.f32 %v4540, 1.442695
    %v4555 = vpow.pop %v4554
    %v4556 = vmul.f32 %v4541, 1.442695
    %v4557 = vpow.pop %v4556
    %v4558 = vadd.f32 %v4543, 1.0
    %v4559 = vadd.f32 %v4545, 1.0
    %v4560 = vadd.f32 %v4547, 1.0
    %v4561 = vadd.f32 %v4549, 1.0
    %v4562 = vadd.f32 %v4551, 1.0
    %v4563 = vadd.f32 %v4553, 1.0
    %v4564 = vadd.f32 %v4555, 1.0
    %v4565 = vadd.f32 %v4557, 1.0
    %v4566 = vrcp.pop %v4558
    %v4567 = vmul.f32 %v4558, %v4566
    %v4568 = vsub.f32 1.0, %v4567
    %v4569 = vmul.f32 %v4566, %v4568
    %v4570 = vadd.f32 %v4566, %v4569
    %vm4571 = vweird.f32 %v4558
    %vm4572 = vweird.f32 %v4566
    %vm4573 = vmor %vm4571, %vm4572
    %v4574 = vsel %vm4573, %v4566, %v4570
    %v4575 = vand.u32 2147483647, %v4558
    %vm4576 = vcmp.eq.f32.partialorder %v4575, 8.507059e+37
    %v4577 = vand.u32 %v4558, 2147483648
    %v4578 = vor.u32 1.1754944e-38, %v4577
    %v4579 = vsel %vm4576, %v4578, %v4574
    %v4580 = vmul.f32 1.0, %v4579
    %v4581 = vrcp.pop %v4559
    %v4582 = vmul.f32 %v4559, %v4581
    %v4583 = vsub.f32 1.0, %v4582
    %v4584 = vmul.f32 %v4581, %v4583
    %v4585 = vadd.f32 %v4581, %v4584
    %vm4586 = vweird.f32 %v4559
    %vm4587 = vweird.f32 %v4581
    %vm4588 = vmor %vm4586, %vm4587
    %v4589 = vsel %vm4588, %v4581, %v4585
    %v4590 = vand.u32 2147483647, %v4559
    %vm4591 = vcmp.eq.f32.partialorder %v4590, 8.507059e+37
    %v4592 = vand.u32 %v4559, 2147483648
    %v4593 = vor.u32 1.1754944e-38, %v4592
    %v4594 = vsel %vm4591, %v4593, %v4589
    %v4595 = vmul.f32 1.0, %v4594
    %v4596 = vrcp.pop %v4560
    %v4597 = vmul.f32 %v4560, %v4596
    %v4598 = vsub.f32 1.0, %v4597
    %v4599 = vmul.f32 %v4596, %v4598
    %v4600 = vadd.f32 %v4596, %v4599
    %vm4601 = vweird.f32 %v4560
    %vm4602 = vweird.f32 %v4596
    %vm4603 = vmor %vm4601, %vm4602
    %v4604 = vsel %vm4603, %v4596, %v4600
    %v4605 = vand.u32 2147483647, %v4560
    %vm4606 = vcmp.eq.f32.partialorder %v4605, 8.507059e+37
    %v4607 = vand.u32 %v4560, 2147483648
    %v4608 = vor.u32 1.1754944e-38, %v4607
    %v4609 = vsel %vm4606, %v4608, %v4604
    %v4610 = vmul.f32 1.0, %v4609
    %v4611 = vrcp.pop %v4561
    %v4612 = vmul.f32 %v4561, %v4611
    %v4613 = vsub.f32 1.0, %v4612
    %v4614 = vmul.f32 %v4611, %v4613
    %v4615 = vadd.f32 %v4611, %v4614
    %vm4616 = vweird.f32 %v4561
    %vm4617 = vweird.f32 %v4611
    %vm4618 = vmor %vm4616, %vm4617
    %v4619 = vsel %vm4618, %v4611, %v4615
    %v4620 = vand.u32 2147483647, %v4561
    %vm4621 = vcmp.eq.f32.partialorder %v4620, 8.507059e+37
    %v4622 = vand.u32 %v4561, 2147483648
    %v4623 = vor.u32 1.1754944e-38, %v4622
    %v4624 = vsel %vm4621, %v4623, %v4619
    %v4625 = vmul.f32 1.0, %v4624
    %v4626 = vrcp.pop %v4562
    %v4627 = vmul.f32 %v4562, %v4626
    %v4628 = vsub.f32 1.0, %v4627
    %v4629 = vmul.f32 %v4626, %v4628
    %v4630 = vadd.f32 %v4626, %v4629
    %vm4631 = vweird.f32 %v4562
    %vm4632 = vweird.f32 %v4626
    %vm4633 = vmor %vm4631, %vm4632
    %v4634 = vsel %vm4633, %v4626, %v4630
    %v4635 = vand.u32 2147483647, %v4562
    %vm4636 = vcmp.eq.f32.partialorder %v4635, 8.507059e+37
    %v4637 = vand.u32 %v4562, 2147483648
    %v4638 = vor.u32 1.1754944e-38, %v4637
    %v4639 = vsel %vm4636, %v4638, %v4634
    %v4640 = vmul.f32 1.0, %v4639
    %v4641 = vrcp.pop %v4563
    %v4642 = vmul.f32 %v4563, %v4641
    %v4643 = vsub.f32 1.0, %v4642
    %v4644 = vmul.f32 %v4641, %v4643
    %v4645 = vadd.f32 %v4641, %v4644
    %vm4646 = vweird.f32 %v4563
    %vm4647 = vweird.f32 %v4641
    %vm4648 = vmor %vm4646, %vm4647
    %v4649 = vsel %vm4648, %v4641, %v4645
    %v4650 = vand.u32 2147483647, %v4563
    %vm4651 = vcmp.eq.f32.partialorder %v4650, 8.507059e+37
    %v4652 = vand.u32 %v4563, 2147483648
    %v4653 = vor.u32 1.1754944e-38, %v4652
    %v4654 = vsel %vm4651, %v4653, %v4649
    %v4655 = vmul.f32 1.0, %v4654
    %v4656 = vrcp.pop %v4564
    %v4657 = vmul.f32 %v4564, %v4656
    %v4658 = vsub.f32 1.0, %v4657
    %v4659 = vmul.f32 %v4656, %v4658
    %v4660 = vadd.f32 %v4656, %v4659
    %vm4661 = vweird.f32 %v4564
    %vm4662 = vweird.f32 %v4656
    %vm4663 = vmor %vm4661, %vm4662
    %v4664 = vsel %vm4663, %v4656, %v4660
    %v4665 = vand.u32 2147483647, %v4564
    %vm4666 = vcmp.eq.f32.partialorder %v4665, 8.507059e+37
    %v4667 = vand.u32 %v4564, 2147483648
    %v4668 = vor.u32 1.1754944e-38, %v4667
    %v4669 = vsel %vm4666, %v4668, %v4664
    %v4670 = vmul.f32 1.0, %v4669
    %v4671 = vrcp.pop %v4565
    %v4672 = vmul.f32 %v4565, %v4671
    %v4673 = vsub.f32 1.0, %v4672
    %v4674 = vmul.f32 %v4671, %v4673
    %v4675 = vadd.f32 %v4671, %v4674
    %vm4676 = vweird.f32 %v4565
    %vm4677 = vweird.f32 %v4671
    %vm4678 = vmor %vm4676, %vm4677
    %v4679 = vsel %vm4678, %v4671, %v4675
    %v4680 = vand.u32 2147483647, %v4565
    %vm4681 = vcmp.eq.f32.partialorder %v4680, 8.507059e+37
    %v4682 = vand.u32 %v4565, 2147483648
    %v4683 = vor.u32 1.1754944e-38, %v4682
    %v4684 = vsel %vm4681, %v4683, %v4679
    %v4685 = vmul.f32 1.0, %v4684
    %v4694 = vrot.slane %v3999, 7
    %v4695 = vrot.slane %v4000, 7
    %v4696 = vrot.slane %v4001, 7
    %v4697 = vrot.slane %v4002, 7
    %v4698 = vrot.slane %v4003, 7
    %v4699 = vrot.slane %v4004, 7
    %v4700 = vrot.slane %v4005, 7
    %v4701 = vrot.slane %v4006, 7
    %v4710 = vmul.f32 %v4420, %v4694
    %v4711 = vmul.f32 %v4435, %v4695
    %v4712 = vmul.f32 %v4450, %v4696
    %v4713 = vmul.f32 %v4465, %v4697
    %v4714 = vmul.f32 %v4480, %v4698
    %v4715 = vmul.f32 %v4495, %v4699
    %v4716 = vmul.f32 %v4510, %v4700
    %v4717 = vmul.f32 %v4525, %v4701
    %v4718 = vmul.f32 %v4268, %v4526
    %v4719 = vmul.f32 %v4283, %v4527
    %v4720 = vmul.f32 %v4298, %v4528
    %v4721 = vmul.f32 %v4313, %v4529
    %v4722 = vmul.f32 %v4328, %v4530
    %v4723 = vmul.f32 %v4343, %v4531
    %v4724 = vmul.f32 %v4358, %v4532
    %v4725 = vmul.f32 %v4373, %v4533
    %v4726 = vadd.f32 %v4710, %v4718
    %v4727 = vadd.f32 %v4711, %v4719
    %v4728 = vadd.f32 %v4712, %v4720
    %v4729 = vadd.f32 %v4713, %v4721
    %v4730 = vadd.f32 %v4714, %v4722
    %v4731 = vadd.f32 %v4715, %v4723
    %v4732 = vadd.f32 %v4716, %v4724
    %v4733 = vadd.f32 %v4717, %v4725
    %v4734 = vtanh.pop %v4726
    %v4735 = vtanh.pop %v4727
    %v4736 = vtanh.pop %v4728
    %v4737 = vtanh.pop %v4729
    %v4738 = vtanh.pop %v4730
    %v4739 = vtanh.pop %v4731
    %v4740 = vtanh.pop %v4732
    %v4741 = vtanh.pop %v4733
    %v4742 = vmul.f32 %v4580, %v4734
    %v4743 = vmul.f32 %v4595, %v4735
    %v4744 = vmul.f32 %v4610, %v4736
    %v4745 = vmul.f32 %v4625, %v4737
    %v4746 = vmul.f32 %v4640, %v4738
    %v4747 = vmul.f32 %v4655, %v4739
    %v4748 = vmul.f32 %v4670, %v4740
    %v4749 = vmul.f32 %v4685, %v4741
    %v4758 = vrot.slane %v4742, 5
    %v4759 = vrot.slane %v4743, 4
    %v4760 = vsel %vm1117, %v4759, %v4758
    %v4761 = vrot.slane %v4744, 3
    %v4762 = vsel %vm1120, %v4761, %v4760
    %v4763 = vrot.slane %v4745, 2
    %v4764 = vsel %vm1123, %v4763, %v4762
    %v4765 = vrot.slane %v4746, 1
    %v4766 = vsel %vm1126, %v4765, %v4764
    %v4767 = vsel %vm1129, %v4747, %v4766
    %v4768 = vrot.slane %v4748, 7
    %v4769 = vsel %vm1132, %v4768, %v4767
    %v4770 = vrot.slane %v4749, 6
    %v4771 = vsel %vm1135, %v4770, %v4769
    %4773 = vmatpush.msra.mxu0 %v406
    %4774 = vmatpush.msra.mxu0 %v402
    %4775 = vmatpush.msra.mxu0 %v398
    %4776 = vmatpush.msra.mxu0 %v394
    %4777 = vmatpush.msra.mxu0 %v390
    %4778 = vmatpush.msra.mxu0 %v386
    %4779 = vmatpush.msra.mxu0 %v382
    %4780 = vmatpush.msra.mxu0 %v378
    %4781 = vmatpush.msra.mxu0 %v374
    %4782 = vmatpush.msra.mxu0 %v370
    %4783 = vmatpush.msra.mxu0 %v366
    %4784 = vmatpush.msra.mxu0 %v362
    %4785 = vmatpush.msra.mxu0 %v358
    %4786 = vmatpush.msra.mxu0 %v354
    %4787 = vmatpush.msra.mxu0 %v350
    %4788 = vmatpush.msra.mxu0 %v346
    %4789 = vmatmul.f32.gmra.mxu0 %v4771
    %v4790 = vpop.f32.mrf.mxu0
    %v4791 = vadd.f32 0.0, %v4790
    %4792 = vdwg.mxu0
    %4793 = vmatpush.msra.mxu0 %v407
    %4794 = vmatpush.msra.mxu0 %v403
    %4795 = vmatpush.msra.mxu0 %v399
    %4796 = vmatpush.msra.mxu0 %v395
    %4797 = vmatpush.msra.mxu0 %v391
    %4798 = vmatpush.msra.mxu0 %v387
    %4799 = vmatpush.msra.mxu0 %v383
    %4800 = vmatpush.msra.mxu0 %v379
    %4801 = vmatpush.msra.mxu0 %v375
    %4802 = vmatpush.msra.mxu0 %v371
    %4803 = vmatpush.msra.mxu0 %v367
    %4804 = vmatpush.msra.mxu0 %v363
    %4805 = vmatpush.msra.mxu0 %v359
    %4806 = vmatpush.msra.mxu0 %v355
    %4807 = vmatpush.msra.mxu0 %v351
    %4808 = vmatpush.msra.mxu0 %v347
    %4809 = vmatmul.f32.gmra.mxu0 %v4771
    %v4810 = vpop.f32.mrf.mxu0
    %v4811 = vadd.f32 0.0, %v4810
    %4812 = vdwg.mxu0
    %4813 = vmatpush.msra.mxu0 %v408
    %4814 = vmatpush.msra.mxu0 %v404
    %4815 = vmatpush.msra.mxu0 %v400
    %4816 = vmatpush.msra.mxu0 %v396
    %4817 = vmatpush.msra.mxu0 %v392
    %4818 = vmatpush.msra.mxu0 %v388
    %4819 = vmatpush.msra.mxu0 %v384
    %4820 = vmatpush.msra.mxu0 %v380
    %4821 = vmatpush.msra.mxu0 %v376
    %4822 = vmatpush.msra.mxu0 %v372
    %4823 = vmatpush.msra.mxu0 %v368
    %4824 = vmatpush.msra.mxu0 %v364
    %4825 = vmatpush.msra.mxu0 %v360
    %4826 = vmatpush.msra.mxu0 %v356
    %4827 = vmatpush.msra.mxu0 %v352
    %4828 = vmatpush.msra.mxu0 %v348
    %4829 = vmatmul.f32.gmra.mxu0 %v4771
    %v4830 = vpop.f32.mrf.mxu0
    %v4831 = vadd.f32 0.0, %v4830
    %4832 = vdwg.mxu0
    %4833 = vmatpush.msra.mxu0 %v409
    %4834 = vmatpush.msra.mxu0 %v405
    %4835 = vmatpush.msra.mxu0 %v401
    %4836 = vmatpush.msra.mxu0 %v397
    %4837 = vmatpush.msra.mxu0 %v393
    %4838 = vmatpush.msra.mxu0 %v389
    %4839 = vmatpush.msra.mxu0 %v385
    %4840 = vmatpush.msra.mxu0 %v381
    %4841 = vmatpush.msra.mxu0 %v377
    %4842 = vmatpush.msra.mxu0 %v373
    %4843 = vmatpush.msra.mxu0 %v369
    %4844 = vmatpush.msra.mxu0 %v365
    %4845 = vmatpush.msra.mxu0 %v361
    %4846 = vmatpush.msra.mxu0 %v357
    %4847 = vmatpush.msra.mxu0 %v353
    %4848 = vmatpush.msra.mxu0 %v349
    %4849 = vmatmul.f32.gmra.mxu0 %v4771
    %v4850 = vpop.f32.mrf.mxu0
    %v4851 = vadd.f32 0.0, %v4850
    %4852 = vdwg.mxu0
    %v4857 = vrot.slane %v4791, 2
    %v4858 = vrot.slane %v4811, 2
    %v4859 = vrot.slane %v4831, 2
    %v4860 = vrot.slane %v4851, 2
    %v4861 = vrot.slane %v4791, 3
    %v4862 = vrot.slane %v4811, 3
    %v4863 = vrot.slane %v4831, 3
    %v4864 = vrot.slane %v4851, 3
    %v4865 = vrot.slane %v4791, 4
    %v4866 = vrot.slane %v4811, 4
    %v4867 = vrot.slane %v4831, 4
    %v4868 = vrot.slane %v4851, 4
    %v4869 = vrot.slane %v4791, 5
    %v4870 = vrot.slane %v4811, 5
    %v4871 = vrot.slane %v4831, 5
    %v4872 = vrot.slane %v4851, 5
    %v4873 = vrot.slane %v4791, 6
    %v4874 = vrot.slane %v4811, 6
    %v4875 = vrot.slane %v4831, 6
    %v4876 = vrot.slane %v4851, 6
    %v4877 = vrot.slane %v4791, 7
    %v4878 = vrot.slane %v4811, 7
    %v4879 = vrot.slane %v4831, 7
    %v4880 = vrot.slane %v4851, 7
    %v4881 = vrot.slane %v4791, 1
    %v4882 = vrot.slane %v4811, 1
    %v4883 = vrot.slane %v4831, 1
    %v4884 = vrot.slane %v4851, 1
    %v4917 = vadd.f32 %v200, %v4857
    %v4918 = vadd.f32 %v241, %v4858
    %v4919 = vadd.f32 %v282, %v4859
    %v4920 = vadd.f32 %v323, %v4860
    %v4921 = vadd.f32 %v203, %v4861
    %v4922 = vadd.f32 %v244, %v4862
    %v4923 = vadd.f32 %v285, %v4863
    %v4924 = vadd.f32 %v326, %v4864
    %v4925 = vadd.f32 %v206, %v4865
    %v4926 = vadd.f32 %v247, %v4866
    %v4927 = vadd.f32 %v288, %v4867
    %v4928 = vadd.f32 %v329, %v4868
    %v4929 = vadd.f32 %v209, %v4869
    %v4930 = vadd.f32 %v250, %v4870
    %v4931 = vadd.f32 %v291, %v4871
    %v4932 = vadd.f32 %v332, %v4872
    %v4933 = vadd.f32 %v212, %v4873
    %v4934 = vadd.f32 %v253, %v4874
    %v4935 = vadd.f32 %v294, %v4875
    %v4936 = vadd.f32 %v335, %v4876
    %v4937 = vadd.f32 %v215, %v4877
    %v4938 = vadd.f32 %v256, %v4878
    %v4939 = vadd.f32 %v297, %v4879
    %v4940 = vadd.f32 %v338, %v4880
    %v4941 = vadd.f32 %v218, %v4791
    %v4942 = vadd.f32 %v259, %v4811
    %v4943 = vadd.f32 %v300, %v4831
    %v4944 = vadd.f32 %v341, %v4851
    %v4945 = vadd.f32 %v221, %v4881
    %v4946 = vadd.f32 %v262, %v4882
    %v4947 = vadd.f32 %v303, %v4883
    %v4948 = vadd.f32 %v344, %v4884
    %v4949 = vxor.u32 %v4917, 2147483648
    %v4950 = vxor.u32 %v4921, 2147483648
    %v4951 = vxor.u32 %v4925, 2147483648
    %v4952 = vxor.u32 %v4929, 2147483648
    %v4953 = vxor.u32 %v4933, 2147483648
    %v4954 = vxor.u32 %v4937, 2147483648
    %v4955 = vxor.u32 %v4941, 2147483648
    %v4956 = vxor.u32 %v4945, 2147483648
    %v4957 = vmul.f32 %v4949, 1.442695
    %v4958 = vpow.pop %v4957
    %v4959 = vmul.f32 %v4950, 1.442695
    %v4960 = vpow.pop %v4959
    %v4961 = vmul.f32 %v4951, 1.442695
    %v4962 = vpow.pop %v4961
    %v4963 = vmul.f32 %v4952, 1.442695
    %v4964 = vpow.pop %v4963
    %v4965 = vmul.f32 %v4953, 1.442695
    %v4966 = vpow.pop %v4965
    %v4967 = vmul.f32 %v4954, 1.442695
    %v4968 = vpow.pop %v4967
    %v4969 = vmul.f32 %v4955, 1.442695
    %v4970 = vpow.pop %v4969
    %v4971 = vmul.f32 %v4956, 1.442695
    %v4972 = vpow.pop %v4971
    %v4973 = vadd.f32 %v4958, 1.0
    %v4974 = vadd.f32 %v4960, 1.0
    %v4975 = vadd.f32 %v4962, 1.0
    %v4976 = vadd.f32 %v4964, 1.0
    %v4977 = vadd.f32 %v4966, 1.0
    %v4978 = vadd.f32 %v4968, 1.0
    %v4979 = vadd.f32 %v4970, 1.0
    %v4980 = vadd.f32 %v4972, 1.0
    %v4981 = vrcp.pop %v4973
    %v4982 = vmul.f32 %v4973, %v4981
    %v4983 = vsub.f32 1.0, %v4982
    %v4984 = vmul.f32 %v4981, %v4983
    %v4985 = vadd.f32 %v4981, %v4984
    %vm4986 = vweird.f32 %v4973
    %vm4987 = vweird.f32 %v4981
    %vm4988 = vmor %vm4986, %vm4987
    %v4989 = vsel %vm4988, %v4981, %v4985
    %v4990 = vand.u32 2147483647, %v4973
    %vm4991 = vcmp.eq.f32.partialorder %v4990, 8.507059e+37
    %v4992 = vand.u32 %v4973, 2147483648
    %v4993 = vor.u32 1.1754944e-38, %v4992
    %v4994 = vsel %vm4991, %v4993, %v4989
    %v4995 = vmul.f32 1.0, %v4994
    %v4996 = vrcp.pop %v4974
    %v4997 = vmul.f32 %v4974, %v4996
    %v4998 = vsub.f32 1.0, %v4997
    %v4999 = vmul.f32 %v4996, %v4998
    %v5000 = vadd.f32 %v4996, %v4999
    %vm5001 = vweird.f32 %v4974
    %vm5002 = vweird.f32 %v4996
    %vm5003 = vmor %vm5001, %vm5002
    %v5004 = vsel %vm5003, %v4996, %v5000
    %v5005 = vand.u32 2147483647, %v4974
    %vm5006 = vcmp.eq.f32.partialorder %v5005, 8.507059e+37
    %v5007 = vand.u32 %v4974, 2147483648
    %v5008 = vor.u32 1.1754944e-38, %v5007
    %v5009 = vsel %vm5006, %v5008, %v5004
    %v5010 = vmul.f32 1.0, %v5009
    %v5011 = vrcp.pop %v4975
    %v5012 = vmul.f32 %v4975, %v5011
    %v5013 = vsub.f32 1.0, %v5012
    %v5014 = vmul.f32 %v5011, %v5013
    %v5015 = vadd.f32 %v5011, %v5014
    %vm5016 = vweird.f32 %v4975
    %vm5017 = vweird.f32 %v5011
    %vm5018 = vmor %vm5016, %vm5017
    %v5019 = vsel %vm5018, %v5011, %v5015
    %v5020 = vand.u32 2147483647, %v4975
    %vm5021 = vcmp.eq.f32.partialorder %v5020, 8.507059e+37
    %v5022 = vand.u32 %v4975, 2147483648
    %v5023 = vor.u32 1.1754944e-38, %v5022
    %v5024 = vsel %vm5021, %v5023, %v5019
    %v5025 = vmul.f32 1.0, %v5024
    %v5026 = vrcp.pop %v4976
    %v5027 = vmul.f32 %v4976, %v5026
    %v5028 = vsub.f32 1.0, %v5027
    %v5029 = vmul.f32 %v5026, %v5028
    %v5030 = vadd.f32 %v5026, %v5029
    %vm5031 = vweird.f32 %v4976
    %vm5032 = vweird.f32 %v5026
    %vm5033 = vmor %vm5031, %vm5032
    %v5034 = vsel %vm5033, %v5026, %v5030
    %v5035 = vand.u32 2147483647, %v4976
    %vm5036 = vcmp.eq.f32.partialorder %v5035, 8.507059e+37
    %v5037 = vand.u32 %v4976, 2147483648
    %v5038 = vor.u32 1.1754944e-38, %v5037
    %v5039 = vsel %vm5036, %v5038, %v5034
    %v5040 = vmul.f32 1.0, %v5039
    %v5041 = vrcp.pop %v4977
    %v5042 = vmul.f32 %v4977, %v5041
    %v5043 = vsub.f32 1.0, %v5042
    %v5044 = vmul.f32 %v5041, %v5043
    %v5045 = vadd.f32 %v5041, %v5044
    %vm5046 = vweird.f32 %v4977
    %vm5047 = vweird.f32 %v5041
    %vm5048 = vmor %vm5046, %vm5047
    %v5049 = vsel %vm5048, %v5041, %v5045
    %v5050 = vand.u32 2147483647, %v4977
    %vm5051 = vcmp.eq.f32.partialorder %v5050, 8.507059e+37
    %v5052 = vand.u32 %v4977, 2147483648
    %v5053 = vor.u32 1.1754944e-38, %v5052
    %v5054 = vsel %vm5051, %v5053, %v5049
    %v5055 = vmul.f32 1.0, %v5054
    %v5056 = vrcp.pop %v4978
    %v5057 = vmul.f32 %v4978, %v5056
    %v5058 = vsub.f32 1.0, %v5057
    %v5059 = vmul.f32 %v5056, %v5058
    %v5060 = vadd.f32 %v5056, %v5059
    %vm5061 = vweird.f32 %v4978
    %vm5062 = vweird.f32 %v5056
    %vm5063 = vmor %vm5061, %vm5062
    %v5064 = vsel %vm5063, %v5056, %v5060
    %v5065 = vand.u32 2147483647, %v4978
    %vm5066 = vcmp.eq.f32.partialorder %v5065, 8.507059e+37
    %v5067 = vand.u32 %v4978, 2147483648
    %v5068 = vor.u32 1.1754944e-38, %v5067
    %v5069 = vsel %vm5066, %v5068, %v5064
    %v5070 = vmul.f32 1.0, %v5069
    %v5071 = vrcp.pop %v4979
    %v5072 = vmul.f32 %v4979, %v5071
    %v5073 = vsub.f32 1.0, %v5072
    %v5074 = vmul.f32 %v5071, %v5073
    %v5075 = vadd.f32 %v5071, %v5074
    %vm5076 = vweird.f32 %v4979
    %vm5077 = vweird.f32 %v5071
    %vm5078 = vmor %vm5076, %vm5077
    %v5079 = vsel %vm5078, %v5071, %v5075
    %v5080 = vand.u32 2147483647, %v4979
    %vm5081 = vcmp.eq.f32.partialorder %v5080, 8.507059e+37
    %v5082 = vand.u32 %v4979, 2147483648
    %v5083 = vor.u32 1.1754944e-38, %v5082
    %v5084 = vsel %vm5081, %v5083, %v5079
    %v5085 = vmul.f32 1.0, %v5084
    %v5086 = vrcp.pop %v4980
    %v5087 = vmul.f32 %v4980, %v5086
    %v5088 = vsub.f32 1.0, %v5087
    %v5089 = vmul.f32 %v5086, %v5088
    %v5090 = vadd.f32 %v5086, %v5089
    %vm5091 = vweird.f32 %v4980
    %vm5092 = vweird.f32 %v5086
    %vm5093 = vmor %vm5091, %vm5092
    %v5094 = vsel %vm5093, %v5086, %v5090
    %v5095 = vand.u32 2147483647, %v4980
    %vm5096 = vcmp.eq.f32.partialorder %v5095, 8.507059e+37
    %v5097 = vand.u32 %v4980, 2147483648
    %v5098 = vor.u32 1.1754944e-38, %v5097
    %v5099 = vsel %vm5096, %v5098, %v5094
    %v5100 = vmul.f32 1.0, %v5099
    %v5101 = vxor.u32 %v4918, 2147483648
    %v5102 = vxor.u32 %v4922, 2147483648
    %v5103 = vxor.u32 %v4926, 2147483648
    %v5104 = vxor.u32 %v4930, 2147483648
    %v5105 = vxor.u32 %v4934, 2147483648
    %v5106 = vxor.u32 %v4938, 2147483648
    %v5107 = vxor.u32 %v4942, 2147483648
    %v5108 = vxor.u32 %v4946, 2147483648
    %v5109 = vmul.f32 %v5101, 1.442695
    %v5110 = vpow.pop %v5109
    %v5111 = vmul.f32 %v5102, 1.442695
    %v5112 = vpow.pop %v5111
    %v5113 = vmul.f32 %v5103, 1.442695
    %v5114 = vpow.pop %v5113
    %v5115 = vmul.f32 %v5104, 1.442695
    %v5116 = vpow.pop %v5115
    %v5117 = vmul.f32 %v5105, 1.442695
    %v5118 = vpow.pop %v5117
    %v5119 = vmul.f32 %v5106, 1.442695
    %v5120 = vpow.pop %v5119
    %v5121 = vmul.f32 %v5107, 1.442695
    %v5122 = vpow.pop %v5121
    %v5123 = vmul.f32 %v5108, 1.442695
    %v5124 = vpow.pop %v5123
    %v5125 = vadd.f32 %v5110, 1.0
    %v5126 = vadd.f32 %v5112, 1.0
    %v5127 = vadd.f32 %v5114, 1.0
    %v5128 = vadd.f32 %v5116, 1.0
    %v5129 = vadd.f32 %v5118, 1.0
    %v5130 = vadd.f32 %v5120, 1.0
    %v5131 = vadd.f32 %v5122, 1.0
    %v5132 = vadd.f32 %v5124, 1.0
    %v5133 = vrcp.pop %v5125
    %v5134 = vmul.f32 %v5125, %v5133
    %v5135 = vsub.f32 1.0, %v5134
    %v5136 = vmul.f32 %v5133, %v5135
    %v5137 = vadd.f32 %v5133, %v5136
    %vm5138 = vweird.f32 %v5125
    %vm5139 = vweird.f32 %v5133
    %vm5140 = vmor %vm5138, %vm5139
    %v5141 = vsel %vm5140, %v5133, %v5137
    %v5142 = vand.u32 2147483647, %v5125
    %vm5143 = vcmp.eq.f32.partialorder %v5142, 8.507059e+37
    %v5144 = vand.u32 %v5125, 2147483648
    %v5145 = vor.u32 1.1754944e-38, %v5144
    %v5146 = vsel %vm5143, %v5145, %v5141
    %v5147 = vmul.f32 1.0, %v5146
    %v5148 = vrcp.pop %v5126
    %v5149 = vmul.f32 %v5126, %v5148
    %v5150 = vsub.f32 1.0, %v5149
    %v5151 = vmul.f32 %v5148, %v5150
    %v5152 = vadd.f32 %v5148, %v5151
    %vm5153 = vweird.f32 %v5126
    %vm5154 = vweird.f32 %v5148
    %vm5155 = vmor %vm5153, %vm5154
    %v5156 = vsel %vm5155, %v5148, %v5152
    %v5157 = vand.u32 2147483647, %v5126
    %vm5158 = vcmp.eq.f32.partialorder %v5157, 8.507059e+37
    %v5159 = vand.u32 %v5126, 2147483648
    %v5160 = vor.u32 1.1754944e-38, %v5159
    %v5161 = vsel %vm5158, %v5160, %v5156
    %v5162 = vmul.f32 1.0, %v5161
    %v5163 = vrcp.pop %v5127
    %v5164 = vmul.f32 %v5127, %v5163
    %v5165 = vsub.f32 1.0, %v5164
    %v5166 = vmul.f32 %v5163, %v5165
    %v5167 = vadd.f32 %v5163, %v5166
    %vm5168 = vweird.f32 %v5127
    %vm5169 = vweird.f32 %v5163
    %vm5170 = vmor %vm5168, %vm5169
    %v5171 = vsel %vm5170, %v5163, %v5167
    %v5172 = vand.u32 2147483647, %v5127
    %vm5173 = vcmp.eq.f32.partialorder %v5172, 8.507059e+37
    %v5174 = vand.u32 %v5127, 2147483648
    %v5175 = vor.u32 1.1754944e-38, %v5174
    %v5176 = vsel %vm5173, %v5175, %v5171
    %v5177 = vmul.f32 1.0, %v5176
    %v5178 = vrcp.pop %v5128
    %v5179 = vmul.f32 %v5128, %v5178
    %v5180 = vsub.f32 1.0, %v5179
    %v5181 = vmul.f32 %v5178, %v5180
    %v5182 = vadd.f32 %v5178, %v5181
    %vm5183 = vweird.f32 %v5128
    %vm5184 = vweird.f32 %v5178
    %vm5185 = vmor %vm5183, %vm5184
    %v5186 = vsel %vm5185, %v5178, %v5182
    %v5187 = vand.u32 2147483647, %v5128
    %vm5188 = vcmp.eq.f32.partialorder %v5187, 8.507059e+37
    %v5189 = vand.u32 %v5128, 2147483648
    %v5190 = vor.u32 1.1754944e-38, %v5189
    %v5191 = vsel %vm5188, %v5190, %v5186
    %v5192 = vmul.f32 1.0, %v5191
    %v5193 = vrcp.pop %v5129
    %v5194 = vmul.f32 %v5129, %v5193
    %v5195 = vsub.f32 1.0, %v5194
    %v5196 = vmul.f32 %v5193, %v5195
    %v5197 = vadd.f32 %v5193, %v5196
    %vm5198 = vweird.f32 %v5129
    %vm5199 = vweird.f32 %v5193
    %vm5200 = vmor %vm5198, %vm5199
    %v5201 = vsel %vm5200, %v5193, %v5197
    %v5202 = vand.u32 2147483647, %v5129
    %vm5203 = vcmp.eq.f32.partialorder %v5202, 8.507059e+37
    %v5204 = vand.u32 %v5129, 2147483648
    %v5205 = vor.u32 1.1754944e-38, %v5204
    %v5206 = vsel %vm5203, %v5205, %v5201
    %v5207 = vmul.f32 1.0, %v5206
    %v5208 = vrcp.pop %v5130
    %v5209 = vmul.f32 %v5130, %v5208
    %v5210 = vsub.f32 1.0, %v5209
    %v5211 = vmul.f32 %v5208, %v5210
    %v5212 = vadd.f32 %v5208, %v5211
    %vm5213 = vweird.f32 %v5130
    %vm5214 = vweird.f32 %v5208
    %vm5215 = vmor %vm5213, %vm5214
    %v5216 = vsel %vm5215, %v5208, %v5212
    %v5217 = vand.u32 2147483647, %v5130
    %vm5218 = vcmp.eq.f32.partialorder %v5217, 8.507059e+37
    %v5219 = vand.u32 %v5130, 2147483648
    %v5220 = vor.u32 1.1754944e-38, %v5219
    %v5221 = vsel %vm5218, %v5220, %v5216
    %v5222 = vmul.f32 1.0, %v5221
    %v5223 = vrcp.pop %v5131
    %v5224 = vmul.f32 %v5131, %v5223
    %v5225 = vsub.f32 1.0, %v5224
    %v5226 = vmul.f32 %v5223, %v5225
    %v5227 = vadd.f32 %v5223, %v5226
    %vm5228 = vweird.f32 %v5131
    %vm5229 = vweird.f32 %v5223
    %vm5230 = vmor %vm5228, %vm5229
    %v5231 = vsel %vm5230, %v5223, %v5227
    %v5232 = vand.u32 2147483647, %v5131
    %vm5233 = vcmp.eq.f32.partialorder %v5232, 8.507059e+37
    %v5234 = vand.u32 %v5131, 2147483648
    %v5235 = vor.u32 1.1754944e-38, %v5234
    %v5236 = vsel %vm5233, %v5235, %v5231
    %v5237 = vmul.f32 1.0, %v5236
    %v5238 = vrcp.pop %v5132
    %v5239 = vmul.f32 %v5132, %v5238
    %v5240 = vsub.f32 1.0, %v5239
    %v5241 = vmul.f32 %v5238, %v5240
    %v5242 = vadd.f32 %v5238, %v5241
    %vm5243 = vweird.f32 %v5132
    %vm5244 = vweird.f32 %v5238
    %vm5245 = vmor %vm5243, %vm5244
    %v5246 = vsel %vm5245, %v5238, %v5242
    %v5247 = vand.u32 2147483647, %v5132
    %vm5248 = vcmp.eq.f32.partialorder %v5247, 8.507059e+37
    %v5249 = vand.u32 %v5132, 2147483648
    %v5250 = vor.u32 1.1754944e-38, %v5249
    %v5251 = vsel %vm5248, %v5250, %v5246
    %v5252 = vmul.f32 1.0, %v5251
    %v5253 = vtanh.pop %v4919
    %v5254 = vtanh.pop %v4923
    %v5255 = vtanh.pop %v4927
    %v5256 = vtanh.pop %v4931
    %v5257 = vtanh.pop %v4935
    %v5258 = vtanh.pop %v4939
    %v5259 = vtanh.pop %v4943
    %v5260 = vtanh.pop %v4947
    %v5261 = vxor.u32 %v4920, 2147483648
    %v5262 = vxor.u32 %v4924, 2147483648
    %v5263 = vxor.u32 %v4928, 2147483648
    %v5264 = vxor.u32 %v4932, 2147483648
    %v5265 = vxor.u32 %v4936, 2147483648
    %v5266 = vxor.u32 %v4940, 2147483648
    %v5267 = vxor.u32 %v4944, 2147483648
    %v5268 = vxor.u32 %v4948, 2147483648
    %v5269 = vmul.f32 %v5261, 1.442695
    %v5270 = vpow.pop %v5269
    %v5271 = vmul.f32 %v5262, 1.442695
    %v5272 = vpow.pop %v5271
    %v5273 = vmul.f32 %v5263, 1.442695
    %v5274 = vpow.pop %v5273
    %v5275 = vmul.f32 %v5264, 1.442695
    %v5276 = vpow.pop %v5275
    %v5277 = vmul.f32 %v5265, 1.442695
    %v5278 = vpow.pop %v5277
    %v5279 = vmul.f32 %v5266, 1.442695
    %v5280 = vpow.pop %v5279
    %v5281 = vmul.f32 %v5267, 1.442695
    %v5282 = vpow.pop %v5281
    %v5283 = vmul.f32 %v5268, 1.442695
    %v5284 = vpow.pop %v5283
    %v5285 = vadd.f32 %v5270, 1.0
    %v5286 = vadd.f32 %v5272, 1.0
    %v5287 = vadd.f32 %v5274, 1.0
    %v5288 = vadd.f32 %v5276, 1.0
    %v5289 = vadd.f32 %v5278, 1.0
    %v5290 = vadd.f32 %v5280, 1.0
    %v5291 = vadd.f32 %v5282, 1.0
    %v5292 = vadd.f32 %v5284, 1.0
    %v5293 = vrcp.pop %v5285
    %v5294 = vmul.f32 %v5285, %v5293
    %v5295 = vsub.f32 1.0, %v5294
    %v5296 = vmul.f32 %v5293, %v5295
    %v5297 = vadd.f32 %v5293, %v5296
    %vm5298 = vweird.f32 %v5285
    %vm5299 = vweird.f32 %v5293
    %vm5300 = vmor %vm5298, %vm5299
    %v5301 = vsel %vm5300, %v5293, %v5297
    %v5302 = vand.u32 2147483647, %v5285
    %vm5303 = vcmp.eq.f32.partialorder %v5302, 8.507059e+37
    %v5304 = vand.u32 %v5285, 2147483648
    %v5305 = vor.u32 1.1754944e-38, %v5304
    %v5306 = vsel %vm5303, %v5305, %v5301
    %v5307 = vmul.f32 1.0, %v5306
    %v5308 = vrcp.pop %v5286
    %v5309 = vmul.f32 %v5286, %v5308
    %v5310 = vsub.f32 1.0, %v5309
    %v5311 = vmul.f32 %v5308, %v5310
    %v5312 = vadd.f32 %v5308, %v5311
    %vm5313 = vweird.f32 %v5286
    %vm5314 = vweird.f32 %v5308
    %vm5315 = vmor %vm5313, %vm5314
    %v5316 = vsel %vm5315, %v5308, %v5312
    %v5317 = vand.u32 2147483647, %v5286
    %vm5318 = vcmp.eq.f32.partialorder %v5317, 8.507059e+37
    %v5319 = vand.u32 %v5286, 2147483648
    %v5320 = vor.u32 1.1754944e-38, %v5319
    %v5321 = vsel %vm5318, %v5320, %v5316
    %v5322 = vmul.f32 1.0, %v5321
    %v5323 = vrcp.pop %v5287
    %v5324 = vmul.f32 %v5287, %v5323
    %v5325 = vsub.f32 1.0, %v5324
    %v5326 = vmul.f32 %v5323, %v5325
    %v5327 = vadd.f32 %v5323, %v5326
    %vm5328 = vweird.f32 %v5287
    %vm5329 = vweird.f32 %v5323
    %vm5330 = vmor %vm5328, %vm5329
    %v5331 = vsel %vm5330, %v5323, %v5327
    %v5332 = vand.u32 2147483647, %v5287
    %vm5333 = vcmp.eq.f32.partialorder %v5332, 8.507059e+37
    %v5334 = vand.u32 %v5287, 2147483648
    %v5335 = vor.u32 1.1754944e-38, %v5334
    %v5336 = vsel %vm5333, %v5335, %v5331
    %v5337 = vmul.f32 1.0, %v5336
    %v5338 = vrcp.pop %v5288
    %v5339 = vmul.f32 %v5288, %v5338
    %v5340 = vsub.f32 1.0, %v5339
    %v5341 = vmul.f32 %v5338, %v5340
    %v5342 = vadd.f32 %v5338, %v5341
    %vm5343 = vweird.f32 %v5288
    %vm5344 = vweird.f32 %v5338
    %vm5345 = vmor %vm5343, %vm5344
    %v5346 = vsel %vm5345, %v5338, %v5342
    %v5347 = vand.u32 2147483647, %v5288
    %vm5348 = vcmp.eq.f32.partialorder %v5347, 8.507059e+37
    %v5349 = vand.u32 %v5288, 2147483648
    %v5350 = vor.u32 1.1754944e-38, %v5349
    %v5351 = vsel %vm5348, %v5350, %v5346
    %v5352 = vmul.f32 1.0, %v5351
    %v5353 = vrcp.pop %v5289
    %v5354 = vmul.f32 %v5289, %v5353
    %v5355 = vsub.f32 1.0, %v5354
    %v5356 = vmul.f32 %v5353, %v5355
    %v5357 = vadd.f32 %v5353, %v5356
    %vm5358 = vweird.f32 %v5289
    %vm5359 = vweird.f32 %v5353
    %vm5360 = vmor %vm5358, %vm5359
    %v5361 = vsel %vm5360, %v5353, %v5357
    %v5362 = vand.u32 2147483647, %v5289
    %vm5363 = vcmp.eq.f32.partialorder %v5362, 8.507059e+37
    %v5364 = vand.u32 %v5289, 2147483648
    %v5365 = vor.u32 1.1754944e-38, %v5364
    %v5366 = vsel %vm5363, %v5365, %v5361
    %v5367 = vmul.f32 1.0, %v5366
    %v5368 = vrcp.pop %v5290
    %v5369 = vmul.f32 %v5290, %v5368
    %v5370 = vsub.f32 1.0, %v5369
    %v5371 = vmul.f32 %v5368, %v5370
    %v5372 = vadd.f32 %v5368, %v5371
    %vm5373 = vweird.f32 %v5290
    %vm5374 = vweird.f32 %v5368
    %vm5375 = vmor %vm5373, %vm5374
    %v5376 = vsel %vm5375, %v5368, %v5372
    %v5377 = vand.u32 2147483647, %v5290
    %vm5378 = vcmp.eq.f32.partialorder %v5377, 8.507059e+37
    %v5379 = vand.u32 %v5290, 2147483648
    %v5380 = vor.u32 1.1754944e-38, %v5379
    %v5381 = vsel %vm5378, %v5380, %v5376
    %v5382 = vmul.f32 1.0, %v5381
    %v5383 = vrcp.pop %v5291
    %v5384 = vmul.f32 %v5291, %v5383
    %v5385 = vsub.f32 1.0, %v5384
    %v5386 = vmul.f32 %v5383, %v5385
    %v5387 = vadd.f32 %v5383, %v5386
    %vm5388 = vweird.f32 %v5291
    %vm5389 = vweird.f32 %v5383
    %vm5390 = vmor %vm5388, %vm5389
    %v5391 = vsel %vm5390, %v5383, %v5387
    %v5392 = vand.u32 2147483647, %v5291
    %vm5393 = vcmp.eq.f32.partialorder %v5392, 8.507059e+37
    %v5394 = vand.u32 %v5291, 2147483648
    %v5395 = vor.u32 1.1754944e-38, %v5394
    %v5396 = vsel %vm5393, %v5395, %v5391
    %v5397 = vmul.f32 1.0, %v5396
    %v5398 = vrcp.pop %v5292
    %v5399 = vmul.f32 %v5292, %v5398
    %v5400 = vsub.f32 1.0, %v5399
    %v5401 = vmul.f32 %v5398, %v5400
    %v5402 = vadd.f32 %v5398, %v5401
    %vm5403 = vweird.f32 %v5292
    %vm5404 = vweird.f32 %v5398
    %vm5405 = vmor %vm5403, %vm5404
    %v5406 = vsel %vm5405, %v5398, %v5402
    %v5407 = vand.u32 2147483647, %v5292
    %vm5408 = vcmp.eq.f32.partialorder %v5407, 8.507059e+37
    %v5409 = vand.u32 %v5292, 2147483648
    %v5410 = vor.u32 1.1754944e-38, %v5409
    %v5411 = vsel %vm5408, %v5410, %v5406
    %v5412 = vmul.f32 1.0, %v5411
    %v5421 = vrot.slane %v4726, 7
    %v5422 = vrot.slane %v4727, 7
    %v5423 = vrot.slane %v4728, 7
    %v5424 = vrot.slane %v4729, 7
    %v5425 = vrot.slane %v4730, 7
    %v5426 = vrot.slane %v4731, 7
    %v5427 = vrot.slane %v4732, 7
    %v5428 = vrot.slane %v4733, 7
    %v5437 = vmul.f32 %v5147, %v5421
    %v5438 = vmul.f32 %v5162, %v5422
    %v5439 = vmul.f32 %v5177, %v5423
    %v5440 = vmul.f32 %v5192, %v5424
    %v5441 = vmul.f32 %v5207, %v5425
    %v5442 = vmul.f32 %v5222, %v5426
    %v5443 = vmul.f32 %v5237, %v5427
    %v5444 = vmul.f32 %v5252, %v5428
    %v5445 = vmul.f32 %v4995, %v5253
    %v5446 = vmul.f32 %v5010, %v5254
    %v5447 = vmul.f32 %v5025, %v5255
    %v5448 = vmul.f32 %v5040, %v5256
    %v5449 = vmul.f32 %v5055, %v5257
    %v5450 = vmul.f32 %v5070, %v5258
    %v5451 = vmul.f32 %v5085, %v5259
    %v5452 = vmul.f32 %v5100, %v5260
    %v5453 = vadd.f32 %v5437, %v5445
    %v5454 = vadd.f32 %v5438, %v5446
    %v5455 = vadd.f32 %v5439, %v5447
    %v5456 = vadd.f32 %v5440, %v5448
    %v5457 = vadd.f32 %v5441, %v5449
    %v5458 = vadd.f32 %v5442, %v5450
    %v5459 = vadd.f32 %v5443, %v5451
    %v5460 = vadd.f32 %v5444, %v5452
    %v5461 = vtanh.pop %v5453
    %v5462 = vtanh.pop %v5454
    %v5463 = vtanh.pop %v5455
    %v5464 = vtanh.pop %v5456
    %v5465 = vtanh.pop %v5457
    %v5466 = vtanh.pop %v5458
    %v5467 = vtanh.pop %v5459
    %v5468 = vtanh.pop %v5460
    %v5469 = vmul.f32 %v5307, %v5461
    %v5470 = vmul.f32 %v5322, %v5462
    %v5471 = vmul.f32 %v5337, %v5463
    %v5472 = vmul.f32 %v5352, %v5464
    %v5473 = vmul.f32 %v5367, %v5465
    %v5474 = vmul.f32 %v5382, %v5466
    %v5475 = vmul.f32 %v5397, %v5467
    %v5476 = vmul.f32 %v5412, %v5468
    %v5485 = vrot.slane %v5469, 6
    %v5486 = vrot.slane %v5470, 5
    %v5487 = vsel %vm1117, %v5486, %v5485
    %v5488 = vrot.slane %v5471, 4
    %v5489 = vsel %vm1120, %v5488, %v5487
    %v5490 = vrot.slane %v5472, 3
    %v5491 = vsel %vm1123, %v5490, %v5489
    %v5492 = vrot.slane %v5473, 2
    %v5493 = vsel %vm1126, %v5492, %v5491
    %v5494 = vrot.slane %v5474, 1
    %v5495 = vsel %vm1129, %v5494, %v5493
    %v5496 = vsel %vm1132, %v5475, %v5495
    %v5497 = vrot.slane %v5476, 7
    %v5498 = vsel %vm1135, %v5497, %v5496
    %5500 = vmatpush.msra.mxu0 %v406
    %5501 = vmatpush.msra.mxu0 %v402
    %5502 = vmatpush.msra.mxu0 %v398
    %5503 = vmatpush.msra.mxu0 %v394
    %5504 = vmatpush.msra.mxu0 %v390
    %5505 = vmatpush.msra.mxu0 %v386
    %5506 = vmatpush.msra.mxu0 %v382
    %5507 = vmatpush.msra.mxu0 %v378
    %5508 = vmatpush.msra.mxu0 %v374
    %5509 = vmatpush.msra.mxu0 %v370
    %5510 = vmatpush.msra.mxu0 %v366
    %5511 = vmatpush.msra.mxu0 %v362
    %5512 = vmatpush.msra.mxu0 %v358
    %5513 = vmatpush.msra.mxu0 %v354
    %5514 = vmatpush.msra.mxu0 %v350
    %5515 = vmatpush.msra.mxu0 %v346
    %5516 = vmatmul.f32.gmra.mxu0 %v5498
    %v5517 = vpop.f32.mrf.mxu0
    %v5518 = vadd.f32 0.0, %v5517
    %5519 = vdwg.mxu0
    %5520 = vmatpush.msra.mxu0 %v407
    %5521 = vmatpush.msra.mxu0 %v403
    %5522 = vmatpush.msra.mxu0 %v399
    %5523 = vmatpush.msra.mxu0 %v395
    %5524 = vmatpush.msra.mxu0 %v391
    %5525 = vmatpush.msra.mxu0 %v387
    %5526 = vmatpush.msra.mxu0 %v383
    %5527 = vmatpush.msra.mxu0 %v379
    %5528 = vmatpush.msra.mxu0 %v375
    %5529 = vmatpush.msra.mxu0 %v371
    %5530 = vmatpush.msra.mxu0 %v367
    %5531 = vmatpush.msra.mxu0 %v363
    %5532 = vmatpush.msra.mxu0 %v359
    %5533 = vmatpush.msra.mxu0 %v355
    %5534 = vmatpush.msra.mxu0 %v351
    %5535 = vmatpush.msra.mxu0 %v347
    %5536 = vmatmul.f32.gmra.mxu0 %v5498
    %v5537 = vpop.f32.mrf.mxu0
    %v5538 = vadd.f32 0.0, %v5537
    %5539 = vdwg.mxu0
    %5540 = vmatpush.msra.mxu0 %v408
    %5541 = vmatpush.msra.mxu0 %v404
    %5542 = vmatpush.msra.mxu0 %v400
    %5543 = vmatpush.msra.mxu0 %v396
    %5544 = vmatpush.msra.mxu0 %v392
    %5545 = vmatpush.msra.mxu0 %v388
    %5546 = vmatpush.msra.mxu0 %v384
    %5547 = vmatpush.msra.mxu0 %v380
    %5548 = vmatpush.msra.mxu0 %v376
    %5549 = vmatpush.msra.mxu0 %v372
    %5550 = vmatpush.msra.mxu0 %v368
    %5551 = vmatpush.msra.mxu0 %v364
    %5552 = vmatpush.msra.mxu0 %v360
    %5553 = vmatpush.msra.mxu0 %v356
    %5554 = vmatpush.msra.mxu0 %v352
    %5555 = vmatpush.msra.mxu0 %v348
    %5556 = vmatmul.f32.gmra.mxu0 %v5498
    %v5557 = vpop.f32.mrf.mxu0
    %v5558 = vadd.f32 0.0, %v5557
    %5559 = vdwg.mxu0
    %5560 = vmatpush.msra.mxu0 %v409
    %5561 = vmatpush.msra.mxu0 %v405
    %5562 = vmatpush.msra.mxu0 %v401
    %5563 = vmatpush.msra.mxu0 %v397
    %5564 = vmatpush.msra.mxu0 %v393
    %5565 = vmatpush.msra.mxu0 %v389
    %5566 = vmatpush.msra.mxu0 %v385
    %5567 = vmatpush.msra.mxu0 %v381
    %5568 = vmatpush.msra.mxu0 %v377
    %5569 = vmatpush.msra.mxu0 %v373
    %5570 = vmatpush.msra.mxu0 %v369
    %5571 = vmatpush.msra.mxu0 %v365
    %5572 = vmatpush.msra.mxu0 %v361
    %5573 = vmatpush.msra.mxu0 %v357
    %5574 = vmatpush.msra.mxu0 %v353
    %5575 = vmatpush.msra.mxu0 %v349
    %5576 = vmatmul.f32.gmra.mxu0 %v5498
    %v5577 = vpop.f32.mrf.mxu0
    %v5578 = vadd.f32 0.0, %v5577
    %5579 = vdwg.mxu0
    %v5584 = vrot.slane %v5518, 1
    %v5585 = vrot.slane %v5538, 1
    %v5586 = vrot.slane %v5558, 1
    %v5587 = vrot.slane %v5578, 1
    %v5588 = vrot.slane %v5518, 2
    %v5589 = vrot.slane %v5538, 2
    %v5590 = vrot.slane %v5558, 2
    %v5591 = vrot.slane %v5578, 2
    %v5592 = vrot.slane %v5518, 3
    %v5593 = vrot.slane %v5538, 3
    %v5594 = vrot.slane %v5558, 3
    %v5595 = vrot.slane %v5578, 3
    %v5596 = vrot.slane %v5518, 4
    %v5597 = vrot.slane %v5538, 4
    %v5598 = vrot.slane %v5558, 4
    %v5599 = vrot.slane %v5578, 4
    %v5600 = vrot.slane %v5518, 5
    %v5601 = vrot.slane %v5538, 5
    %v5602 = vrot.slane %v5558, 5
    %v5603 = vrot.slane %v5578, 5
    %v5604 = vrot.slane %v5518, 6
    %v5605 = vrot.slane %v5538, 6
    %v5606 = vrot.slane %v5558, 6
    %v5607 = vrot.slane %v5578, 6
    %v5608 = vrot.slane %v5518, 7
    %v5609 = vrot.slane %v5538, 7
    %v5610 = vrot.slane %v5558, 7
    %v5611 = vrot.slane %v5578, 7
    %v5644 = vadd.f32 %v200, %v5584
    %v5645 = vadd.f32 %v241, %v5585
    %v5646 = vadd.f32 %v282, %v5586
    %v5647 = vadd.f32 %v323, %v5587
    %v5648 = vadd.f32 %v203, %v5588
    %v5649 = vadd.f32 %v244, %v5589
    %v5650 = vadd.f32 %v285, %v5590
    %v5651 = vadd.f32 %v326, %v5591
    %v5652 = vadd.f32 %v206, %v5592
    %v5653 = vadd.f32 %v247, %v5593
    %v5654 = vadd.f32 %v288, %v5594
    %v5655 = vadd.f32 %v329, %v5595
    %v5656 = vadd.f32 %v209, %v5596
    %v5657 = vadd.f32 %v250, %v5597
    %v5658 = vadd.f32 %v291, %v5598
    %v5659 = vadd.f32 %v332, %v5599
    %v5660 = vadd.f32 %v212, %v5600
    %v5661 = vadd.f32 %v253, %v5601
    %v5662 = vadd.f32 %v294, %v5602
    %v5663 = vadd.f32 %v335, %v5603
    %v5664 = vadd.f32 %v215, %v5604
    %v5665 = vadd.f32 %v256, %v5605
    %v5666 = vadd.f32 %v297, %v5606
    %v5667 = vadd.f32 %v338, %v5607
    %v5668 = vadd.f32 %v218, %v5608
    %v5669 = vadd.f32 %v259, %v5609
    %v5670 = vadd.f32 %v300, %v5610
    %v5671 = vadd.f32 %v341, %v5611
    %v5672 = vadd.f32 %v221, %v5518
    %v5673 = vadd.f32 %v262, %v5538
    %v5674 = vadd.f32 %v303, %v5558
    %v5675 = vadd.f32 %v344, %v5578
    %v5676 = vxor.u32 %v5644, 2147483648
    %v5677 = vxor.u32 %v5648, 2147483648
    %v5678 = vxor.u32 %v5652, 2147483648
    %v5679 = vxor.u32 %v5656, 2147483648
    %v5680 = vxor.u32 %v5660, 2147483648
    %v5681 = vxor.u32 %v5664, 2147483648
    %v5682 = vxor.u32 %v5668, 2147483648
    %v5683 = vxor.u32 %v5672, 2147483648
    %v5684 = vmul.f32 %v5676, 1.442695
    %v5685 = vpow.pop %v5684
    %v5686 = vmul.f32 %v5677, 1.442695
    %v5687 = vpow.pop %v5686
    %v5688 = vmul.f32 %v5678, 1.442695
    %v5689 = vpow.pop %v5688
    %v5690 = vmul.f32 %v5679, 1.442695
    %v5691 = vpow.pop %v5690
    %v5692 = vmul.f32 %v5680, 1.442695
    %v5693 = vpow.pop %v5692
    %v5694 = vmul.f32 %v5681, 1.442695
    %v5695 = vpow.pop %v5694
    %v5696 = vmul.f32 %v5682, 1.442695
    %v5697 = vpow.pop %v5696
    %v5698 = vmul.f32 %v5683, 1.442695
    %v5699 = vpow.pop %v5698
    %v5700 = vadd.f32 %v5685, 1.0
    %v5701 = vadd.f32 %v5687, 1.0
    %v5702 = vadd.f32 %v5689, 1.0
    %v5703 = vadd.f32 %v5691, 1.0
    %v5704 = vadd.f32 %v5693, 1.0
    %v5705 = vadd.f32 %v5695, 1.0
    %v5706 = vadd.f32 %v5697, 1.0
    %v5707 = vadd.f32 %v5699, 1.0
    %v5708 = vrcp.pop %v5700
    %v5709 = vmul.f32 %v5700, %v5708
    %v5710 = vsub.f32 1.0, %v5709
    %v5711 = vmul.f32 %v5708, %v5710
    %v5712 = vadd.f32 %v5708, %v5711
    %vm5713 = vweird.f32 %v5700
    %vm5714 = vweird.f32 %v5708
    %vm5715 = vmor %vm5713, %vm5714
    %v5716 = vsel %vm5715, %v5708, %v5712
    %v5717 = vand.u32 2147483647, %v5700
    %vm5718 = vcmp.eq.f32.partialorder %v5717, 8.507059e+37
    %v5719 = vand.u32 %v5700, 2147483648
    %v5720 = vor.u32 1.1754944e-38, %v5719
    %v5721 = vsel %vm5718, %v5720, %v5716
    %v5722 = vmul.f32 1.0, %v5721
    %v5723 = vrcp.pop %v5701
    %v5724 = vmul.f32 %v5701, %v5723
    %v5725 = vsub.f32 1.0, %v5724
    %v5726 = vmul.f32 %v5723, %v5725
    %v5727 = vadd.f32 %v5723, %v5726
    %vm5728 = vweird.f32 %v5701
    %vm5729 = vweird.f32 %v5723
    %vm5730 = vmor %vm5728, %vm5729
    %v5731 = vsel %vm5730, %v5723, %v5727
    %v5732 = vand.u32 2147483647, %v5701
    %vm5733 = vcmp.eq.f32.partialorder %v5732, 8.507059e+37
    %v5734 = vand.u32 %v5701, 2147483648
    %v5735 = vor.u32 1.1754944e-38, %v5734
    %v5736 = vsel %vm5733, %v5735, %v5731
    %v5737 = vmul.f32 1.0, %v5736
    %v5738 = vrcp.pop %v5702
    %v5739 = vmul.f32 %v5702, %v5738
    %v5740 = vsub.f32 1.0, %v5739
    %v5741 = vmul.f32 %v5738, %v5740
    %v5742 = vadd.f32 %v5738, %v5741
    %vm5743 = vweird.f32 %v5702
    %vm5744 = vweird.f32 %v5738
    %vm5745 = vmor %vm5743, %vm5744
    %v5746 = vsel %vm5745, %v5738, %v5742
    %v5747 = vand.u32 2147483647, %v5702
    %vm5748 = vcmp.eq.f32.partialorder %v5747, 8.507059e+37
    %v5749 = vand.u32 %v5702, 2147483648
    %v5750 = vor.u32 1.1754944e-38, %v5749
    %v5751 = vsel %vm5748, %v5750, %v5746
    %v5752 = vmul.f32 1.0, %v5751
    %v5753 = vrcp.pop %v5703
    %v5754 = vmul.f32 %v5703, %v5753
    %v5755 = vsub.f32 1.0, %v5754
    %v5756 = vmul.f32 %v5753, %v5755
    %v5757 = vadd.f32 %v5753, %v5756
    %vm5758 = vweird.f32 %v5703
    %vm5759 = vweird.f32 %v5753
    %vm5760 = vmor %vm5758, %vm5759
    %v5761 = vsel %vm5760, %v5753, %v5757
    %v5762 = vand.u32 2147483647, %v5703
    %vm5763 = vcmp.eq.f32.partialorder %v5762, 8.507059e+37
    %v5764 = vand.u32 %v5703, 2147483648
    %v5765 = vor.u32 1.1754944e-38, %v5764
    %v5766 = vsel %vm5763, %v5765, %v5761
    %v5767 = vmul.f32 1.0, %v5766
    %v5768 = vrcp.pop %v5704
    %v5769 = vmul.f32 %v5704, %v5768
    %v5770 = vsub.f32 1.0, %v5769
    %v5771 = vmul.f32 %v5768, %v5770
    %v5772 = vadd.f32 %v5768, %v5771
    %vm5773 = vweird.f32 %v5704
    %vm5774 = vweird.f32 %v5768
    %vm5775 = vmor %vm5773, %vm5774
    %v5776 = vsel %vm5775, %v5768, %v5772
    %v5777 = vand.u32 2147483647, %v5704
    %vm5778 = vcmp.eq.f32.partialorder %v5777, 8.507059e+37
    %v5779 = vand.u32 %v5704, 2147483648
    %v5780 = vor.u32 1.1754944e-38, %v5779
    %v5781 = vsel %vm5778, %v5780, %v5776
    %v5782 = vmul.f32 1.0, %v5781
    %v5783 = vrcp.pop %v5705
    %v5784 = vmul.f32 %v5705, %v5783
    %v5785 = vsub.f32 1.0, %v5784
    %v5786 = vmul.f32 %v5783, %v5785
    %v5787 = vadd.f32 %v5783, %v5786
    %vm5788 = vweird.f32 %v5705
    %vm5789 = vweird.f32 %v5783
    %vm5790 = vmor %vm5788, %vm5789
    %v5791 = vsel %vm5790, %v5783, %v5787
    %v5792 = vand.u32 2147483647, %v5705
    %vm5793 = vcmp.eq.f32.partialorder %v5792, 8.507059e+37
    %v5794 = vand.u32 %v5705, 2147483648
    %v5795 = vor.u32 1.1754944e-38, %v5794
    %v5796 = vsel %vm5793, %v5795, %v5791
    %v5797 = vmul.f32 1.0, %v5796
    %v5798 = vrcp.pop %v5706
    %v5799 = vmul.f32 %v5706, %v5798
    %v5800 = vsub.f32 1.0, %v5799
    %v5801 = vmul.f32 %v5798, %v5800
    %v5802 = vadd.f32 %v5798, %v5801
    %vm5803 = vweird.f32 %v5706
    %vm5804 = vweird.f32 %v5798
    %vm5805 = vmor %vm5803, %vm5804
    %v5806 = vsel %vm5805, %v5798, %v5802
    %v5807 = vand.u32 2147483647, %v5706
    %vm5808 = vcmp.eq.f32.partialorder %v5807, 8.507059e+37
    %v5809 = vand.u32 %v5706, 2147483648
    %v5810 = vor.u32 1.1754944e-38, %v5809
    %v5811 = vsel %vm5808, %v5810, %v5806
    %v5812 = vmul.f32 1.0, %v5811
    %v5813 = vrcp.pop %v5707
    %v5814 = vmul.f32 %v5707, %v5813
    %v5815 = vsub.f32 1.0, %v5814
    %v5816 = vmul.f32 %v5813, %v5815
    %v5817 = vadd.f32 %v5813, %v5816
    %vm5818 = vweird.f32 %v5707
    %vm5819 = vweird.f32 %v5813
    %vm5820 = vmor %vm5818, %vm5819
    %v5821 = vsel %vm5820, %v5813, %v5817
    %v5822 = vand.u32 2147483647, %v5707
    %vm5823 = vcmp.eq.f32.partialorder %v5822, 8.507059e+37
    %v5824 = vand.u32 %v5707, 2147483648
    %v5825 = vor.u32 1.1754944e-38, %v5824
    %v5826 = vsel %vm5823, %v5825, %v5821
    %v5827 = vmul.f32 1.0, %v5826
    %v5828 = vxor.u32 %v5645, 2147483648
    %v5829 = vxor.u32 %v5649, 2147483648
    %v5830 = vxor.u32 %v5653, 2147483648
    %v5831 = vxor.u32 %v5657, 2147483648
    %v5832 = vxor.u32 %v5661, 2147483648
    %v5833 = vxor.u32 %v5665, 2147483648
    %v5834 = vxor.u32 %v5669, 2147483648
    %v5835 = vxor.u32 %v5673, 2147483648
    %v5836 = vmul.f32 %v5828, 1.442695
    %v5837 = vpow.pop %v5836
    %v5838 = vmul.f32 %v5829, 1.442695
    %v5839 = vpow.pop %v5838
    %v5840 = vmul.f32 %v5830, 1.442695
    %v5841 = vpow.pop %v5840
    %v5842 = vmul.f32 %v5831, 1.442695
    %v5843 = vpow.pop %v5842
    %v5844 = vmul.f32 %v5832, 1.442695
    %v5845 = vpow.pop %v5844
    %v5846 = vmul.f32 %v5833, 1.442695
    %v5847 = vpow.pop %v5846
    %v5848 = vmul.f32 %v5834, 1.442695
    %v5849 = vpow.pop %v5848
    %v5850 = vmul.f32 %v5835, 1.442695
    %v5851 = vpow.pop %v5850
    %v5852 = vadd.f32 %v5837, 1.0
    %v5853 = vadd.f32 %v5839, 1.0
    %v5854 = vadd.f32 %v5841, 1.0
    %v5855 = vadd.f32 %v5843, 1.0
    %v5856 = vadd.f32 %v5845, 1.0
    %v5857 = vadd.f32 %v5847, 1.0
    %v5858 = vadd.f32 %v5849, 1.0
    %v5859 = vadd.f32 %v5851, 1.0
    %v5860 = vrcp.pop %v5852
    %v5861 = vmul.f32 %v5852, %v5860
    %v5862 = vsub.f32 1.0, %v5861
    %v5863 = vmul.f32 %v5860, %v5862
    %v5864 = vadd.f32 %v5860, %v5863
    %vm5865 = vweird.f32 %v5852
    %vm5866 = vweird.f32 %v5860
    %vm5867 = vmor %vm5865, %vm5866
    %v5868 = vsel %vm5867, %v5860, %v5864
    %v5869 = vand.u32 2147483647, %v5852
    %vm5870 = vcmp.eq.f32.partialorder %v5869, 8.507059e+37
    %v5871 = vand.u32 %v5852, 2147483648
    %v5872 = vor.u32 1.1754944e-38, %v5871
    %v5873 = vsel %vm5870, %v5872, %v5868
    %v5874 = vmul.f32 1.0, %v5873
    %v5875 = vrcp.pop %v5853
    %v5876 = vmul.f32 %v5853, %v5875
    %v5877 = vsub.f32 1.0, %v5876
    %v5878 = vmul.f32 %v5875, %v5877
    %v5879 = vadd.f32 %v5875, %v5878
    %vm5880 = vweird.f32 %v5853
    %vm5881 = vweird.f32 %v5875
    %vm5882 = vmor %vm5880, %vm5881
    %v5883 = vsel %vm5882, %v5875, %v5879
    %v5884 = vand.u32 2147483647, %v5853
    %vm5885 = vcmp.eq.f32.partialorder %v5884, 8.507059e+37
    %v5886 = vand.u32 %v5853, 2147483648
    %v5887 = vor.u32 1.1754944e-38, %v5886
    %v5888 = vsel %vm5885, %v5887, %v5883
    %v5889 = vmul.f32 1.0, %v5888
    %v5890 = vrcp.pop %v5854
    %v5891 = vmul.f32 %v5854, %v5890
    %v5892 = vsub.f32 1.0, %v5891
    %v5893 = vmul.f32 %v5890, %v5892
    %v5894 = vadd.f32 %v5890, %v5893
    %vm5895 = vweird.f32 %v5854
    %vm5896 = vweird.f32 %v5890
    %vm5897 = vmor %vm5895, %vm5896
    %v5898 = vsel %vm5897, %v5890, %v5894
    %v5899 = vand.u32 2147483647, %v5854
    %vm5900 = vcmp.eq.f32.partialorder %v5899, 8.507059e+37
    %v5901 = vand.u32 %v5854, 2147483648
    %v5902 = vor.u32 1.1754944e-38, %v5901
    %v5903 = vsel %vm5900, %v5902, %v5898
    %v5904 = vmul.f32 1.0, %v5903
    %v5905 = vrcp.pop %v5855
    %v5906 = vmul.f32 %v5855, %v5905
    %v5907 = vsub.f32 1.0, %v5906
    %v5908 = vmul.f32 %v5905, %v5907
    %v5909 = vadd.f32 %v5905, %v5908
    %vm5910 = vweird.f32 %v5855
    %vm5911 = vweird.f32 %v5905
    %vm5912 = vmor %vm5910, %vm5911
    %v5913 = vsel %vm5912, %v5905, %v5909
    %v5914 = vand.u32 2147483647, %v5855
    %vm5915 = vcmp.eq.f32.partialorder %v5914, 8.507059e+37
    %v5916 = vand.u32 %v5855, 2147483648
    %v5917 = vor.u32 1.1754944e-38, %v5916
    %v5918 = vsel %vm5915, %v5917, %v5913
    %v5919 = vmul.f32 1.0, %v5918
    %v5920 = vrcp.pop %v5856
    %v5921 = vmul.f32 %v5856, %v5920
    %v5922 = vsub.f32 1.0, %v5921
    %v5923 = vmul.f32 %v5920, %v5922
    %v5924 = vadd.f32 %v5920, %v5923
    %vm5925 = vweird.f32 %v5856
    %vm5926 = vweird.f32 %v5920
    %vm5927 = vmor %vm5925, %vm5926
    %v5928 = vsel %vm5927, %v5920, %v5924
    %v5929 = vand.u32 2147483647, %v5856
    %vm5930 = vcmp.eq.f32.partialorder %v5929, 8.507059e+37
    %v5931 = vand.u32 %v5856, 2147483648
    %v5932 = vor.u32 1.1754944e-38, %v5931
    %v5933 = vsel %vm5930, %v5932, %v5928
    %v5934 = vmul.f32 1.0, %v5933
    %v5935 = vrcp.pop %v5857
    %v5936 = vmul.f32 %v5857, %v5935
    %v5937 = vsub.f32 1.0, %v5936
    %v5938 = vmul.f32 %v5935, %v5937
    %v5939 = vadd.f32 %v5935, %v5938
    %vm5940 = vweird.f32 %v5857
    %vm5941 = vweird.f32 %v5935
    %vm5942 = vmor %vm5940, %vm5941
    %v5943 = vsel %vm5942, %v5935, %v5939
    %v5944 = vand.u32 2147483647, %v5857
    %vm5945 = vcmp.eq.f32.partialorder %v5944, 8.507059e+37
    %v5946 = vand.u32 %v5857, 2147483648
    %v5947 = vor.u32 1.1754944e-38, %v5946
    %v5948 = vsel %vm5945, %v5947, %v5943
    %v5949 = vmul.f32 1.0, %v5948
    %v5950 = vrcp.pop %v5858
    %v5951 = vmul.f32 %v5858, %v5950
    %v5952 = vsub.f32 1.0, %v5951
    %v5953 = vmul.f32 %v5950, %v5952
    %v5954 = vadd.f32 %v5950, %v5953
    %vm5955 = vweird.f32 %v5858
    %vm5956 = vweird.f32 %v5950
    %vm5957 = vmor %vm5955, %vm5956
    %v5958 = vsel %vm5957, %v5950, %v5954
    %v5959 = vand.u32 2147483647, %v5858
    %vm5960 = vcmp.eq.f32.partialorder %v5959, 8.507059e+37
    %v5961 = vand.u32 %v5858, 2147483648
    %v5962 = vor.u32 1.1754944e-38, %v5961
    %v5963 = vsel %vm5960, %v5962, %v5958
    %v5964 = vmul.f32 1.0, %v5963
    %v5965 = vrcp.pop %v5859
    %v5966 = vmul.f32 %v5859, %v5965
    %v5967 = vsub.f32 1.0, %v5966
    %v5968 = vmul.f32 %v5965, %v5967
    %v5969 = vadd.f32 %v5965, %v5968
    %vm5970 = vweird.f32 %v5859
    %vm5971 = vweird.f32 %v5965
    %vm5972 = vmor %vm5970, %vm5971
    %v5973 = vsel %vm5972, %v5965, %v5969
    %v5974 = vand.u32 2147483647, %v5859
    %vm5975 = vcmp.eq.f32.partialorder %v5974, 8.507059e+37
    %v5976 = vand.u32 %v5859, 2147483648
    %v5977 = vor.u32 1.1754944e-38, %v5976
    %v5978 = vsel %vm5975, %v5977, %v5973
    %v5979 = vmul.f32 1.0, %v5978
    %v5980 = vtanh.pop %v5646
    %v5981 = vtanh.pop %v5650
    %v5982 = vtanh.pop %v5654
    %v5983 = vtanh.pop %v5658
    %v5984 = vtanh.pop %v5662
    %v5985 = vtanh.pop %v5666
    %v5986 = vtanh.pop %v5670
    %v5987 = vtanh.pop %v5674
    %v5988 = vxor.u32 %v5647, 2147483648
    %v5989 = vxor.u32 %v5651, 2147483648
    %v5990 = vxor.u32 %v5655, 2147483648
    %v5991 = vxor.u32 %v5659, 2147483648
    %v5992 = vxor.u32 %v5663, 2147483648
    %v5993 = vxor.u32 %v5667, 2147483648
    %v5994 = vxor.u32 %v5671, 2147483648
    %v5995 = vxor.u32 %v5675, 2147483648
    %v5996 = vmul.f32 %v5988, 1.442695
    %v5997 = vpow.pop %v5996
    %v5998 = vmul.f32 %v5989, 1.442695
    %v5999 = vpow.pop %v5998
    %v6000 = vmul.f32 %v5990, 1.442695
    %v6001 = vpow.pop %v6000
    %v6002 = vmul.f32 %v5991, 1.442695
    %v6003 = vpow.pop %v6002
    %v6004 = vmul.f32 %v5992, 1.442695
    %v6005 = vpow.pop %v6004
    %v6006 = vmul.f32 %v5993, 1.442695
    %v6007 = vpow.pop %v6006
    %v6008 = vmul.f32 %v5994, 1.442695
    %v6009 = vpow.pop %v6008
    %v6010 = vmul.f32 %v5995, 1.442695
    %v6011 = vpow.pop %v6010
    %v6012 = vadd.f32 %v5997, 1.0
    %v6013 = vadd.f32 %v5999, 1.0
    %v6014 = vadd.f32 %v6001, 1.0
    %v6015 = vadd.f32 %v6003, 1.0
    %v6016 = vadd.f32 %v6005, 1.0
    %v6017 = vadd.f32 %v6007, 1.0
    %v6018 = vadd.f32 %v6009, 1.0
    %v6019 = vadd.f32 %v6011, 1.0
    %v6020 = vrcp.pop %v6012
    %v6021 = vmul.f32 %v6012, %v6020
    %v6022 = vsub.f32 1.0, %v6021
    %v6023 = vmul.f32 %v6020, %v6022
    %v6024 = vadd.f32 %v6020, %v6023
    %vm6025 = vweird.f32 %v6012
    %vm6026 = vweird.f32 %v6020
    %vm6027 = vmor %vm6025, %vm6026
    %v6028 = vsel %vm6027, %v6020, %v6024
    %v6029 = vand.u32 2147483647, %v6012
    %vm6030 = vcmp.eq.f32.partialorder %v6029, 8.507059e+37
    %v6031 = vand.u32 %v6012, 2147483648
    %v6032 = vor.u32 1.1754944e-38, %v6031
    %v6033 = vsel %vm6030, %v6032, %v6028
    %v6034 = vmul.f32 1.0, %v6033
    %v6035 = vrcp.pop %v6013
    %v6036 = vmul.f32 %v6013, %v6035
    %v6037 = vsub.f32 1.0, %v6036
    %v6038 = vmul.f32 %v6035, %v6037
    %v6039 = vadd.f32 %v6035, %v6038
    %vm6040 = vweird.f32 %v6013
    %vm6041 = vweird.f32 %v6035
    %vm6042 = vmor %vm6040, %vm6041
    %v6043 = vsel %vm6042, %v6035, %v6039
    %v6044 = vand.u32 2147483647, %v6013
    %vm6045 = vcmp.eq.f32.partialorder %v6044, 8.507059e+37
    %v6046 = vand.u32 %v6013, 2147483648
    %v6047 = vor.u32 1.1754944e-38, %v6046
    %v6048 = vsel %vm6045, %v6047, %v6043
    %v6049 = vmul.f32 1.0, %v6048
    %v6050 = vrcp.pop %v6014
    %v6051 = vmul.f32 %v6014, %v6050
    %v6052 = vsub.f32 1.0, %v6051
    %v6053 = vmul.f32 %v6050, %v6052
    %v6054 = vadd.f32 %v6050, %v6053
    %vm6055 = vweird.f32 %v6014
    %vm6056 = vweird.f32 %v6050
    %vm6057 = vmor %vm6055, %vm6056
    %v6058 = vsel %vm6057, %v6050, %v6054
    %v6059 = vand.u32 2147483647, %v6014
    %vm6060 = vcmp.eq.f32.partialorder %v6059, 8.507059e+37
    %v6061 = vand.u32 %v6014, 2147483648
    %v6062 = vor.u32 1.1754944e-38, %v6061
    %v6063 = vsel %vm6060, %v6062, %v6058
    %v6064 = vmul.f32 1.0, %v6063
    %v6065 = vrcp.pop %v6015
    %v6066 = vmul.f32 %v6015, %v6065
    %v6067 = vsub.f32 1.0, %v6066
    %v6068 = vmul.f32 %v6065, %v6067
    %v6069 = vadd.f32 %v6065, %v6068
    %vm6070 = vweird.f32 %v6015
    %vm6071 = vweird.f32 %v6065
    %vm6072 = vmor %vm6070, %vm6071
    %v6073 = vsel %vm6072, %v6065, %v6069
    %v6074 = vand.u32 2147483647, %v6015
    %vm6075 = vcmp.eq.f32.partialorder %v6074, 8.507059e+37
    %v6076 = vand.u32 %v6015, 2147483648
    %v6077 = vor.u32 1.1754944e-38, %v6076
    %v6078 = vsel %vm6075, %v6077, %v6073
    %v6079 = vmul.f32 1.0, %v6078
    %v6080 = vrcp.pop %v6016
    %v6081 = vmul.f32 %v6016, %v6080
    %v6082 = vsub.f32 1.0, %v6081
    %v6083 = vmul.f32 %v6080, %v6082
    %v6084 = vadd.f32 %v6080, %v6083
    %vm6085 = vweird.f32 %v6016
    %vm6086 = vweird.f32 %v6080
    %vm6087 = vmor %vm6085, %vm6086
    %v6088 = vsel %vm6087, %v6080, %v6084
    %v6089 = vand.u32 2147483647, %v6016
    %vm6090 = vcmp.eq.f32.partialorder %v6089, 8.507059e+37
    %v6091 = vand.u32 %v6016, 2147483648
    %v6092 = vor.u32 1.1754944e-38, %v6091
    %v6093 = vsel %vm6090, %v6092, %v6088
    %v6094 = vmul.f32 1.0, %v6093
    %v6095 = vrcp.pop %v6017
    %v6096 = vmul.f32 %v6017, %v6095
    %v6097 = vsub.f32 1.0, %v6096
    %v6098 = vmul.f32 %v6095, %v6097
    %v6099 = vadd.f32 %v6095, %v6098
    %vm6100 = vweird.f32 %v6017
    %vm6101 = vweird.f32 %v6095
    %vm6102 = vmor %vm6100, %vm6101
    %v6103 = vsel %vm6102, %v6095, %v6099
    %v6104 = vand.u32 2147483647, %v6017
    %vm6105 = vcmp.eq.f32.partialorder %v6104, 8.507059e+37
    %v6106 = vand.u32 %v6017, 2147483648
    %v6107 = vor.u32 1.1754944e-38, %v6106
    %v6108 = vsel %vm6105, %v6107, %v6103
    %v6109 = vmul.f32 1.0, %v6108
    %v6110 = vrcp.pop %v6018
    %v6111 = vmul.f32 %v6018, %v6110
    %v6112 = vsub.f32 1.0, %v6111
    %v6113 = vmul.f32 %v6110, %v6112
    %v6114 = vadd.f32 %v6110, %v6113
    %vm6115 = vweird.f32 %v6018
    %vm6116 = vweird.f32 %v6110
    %vm6117 = vmor %vm6115, %vm6116
    %v6118 = vsel %vm6117, %v6110, %v6114
    %v6119 = vand.u32 2147483647, %v6018
    %vm6120 = vcmp.eq.f32.partialorder %v6119, 8.507059e+37
    %v6121 = vand.u32 %v6018, 2147483648
    %v6122 = vor.u32 1.1754944e-38, %v6121
    %v6123 = vsel %vm6120, %v6122, %v6118
    %v6124 = vmul.f32 1.0, %v6123
    %v6125 = vrcp.pop %v6019
    %v6126 = vmul.f32 %v6019, %v6125
    %v6127 = vsub.f32 1.0, %v6126
    %v6128 = vmul.f32 %v6125, %v6127
    %v6129 = vadd.f32 %v6125, %v6128
    %vm6130 = vweird.f32 %v6019
    %vm6131 = vweird.f32 %v6125
    %vm6132 = vmor %vm6130, %vm6131
    %v6133 = vsel %vm6132, %v6125, %v6129
    %v6134 = vand.u32 2147483647, %v6019
    %vm6135 = vcmp.eq.f32.partialorder %v6134, 8.507059e+37
    %v6136 = vand.u32 %v6019, 2147483648
    %v6137 = vor.u32 1.1754944e-38, %v6136
    %v6138 = vsel %vm6135, %v6137, %v6133
    %v6139 = vmul.f32 1.0, %v6138
    %v6148 = vrot.slane %v5453, 7
    %v6149 = vrot.slane %v5454, 7
    %v6150 = vrot.slane %v5455, 7
    %v6151 = vrot.slane %v5456, 7
    %v6152 = vrot.slane %v5457, 7
    %v6153 = vrot.slane %v5458, 7
    %v6154 = vrot.slane %v5459, 7
    %v6155 = vrot.slane %v5460, 7
    %v6164 = vmul.f32 %v5874, %v6148
    %v6165 = vmul.f32 %v5889, %v6149
    %v6166 = vmul.f32 %v5904, %v6150
    %v6167 = vmul.f32 %v5919, %v6151
    %v6168 = vmul.f32 %v5934, %v6152
    %v6169 = vmul.f32 %v5949, %v6153
    %v6170 = vmul.f32 %v5964, %v6154
    %v6171 = vmul.f32 %v5979, %v6155
    %v6172 = vmul.f32 %v5722, %v5980
    %v6173 = vmul.f32 %v5737, %v5981
    %v6174 = vmul.f32 %v5752, %v5982
    %v6175 = vmul.f32 %v5767, %v5983
    %v6176 = vmul.f32 %v5782, %v5984
    %v6177 = vmul.f32 %v5797, %v5985
    %v6178 = vmul.f32 %v5812, %v5986
    %v6179 = vmul.f32 %v5827, %v5987
    %v6180 = vadd.f32 %v6164, %v6172
    %v6181 = vadd.f32 %v6165, %v6173
    %v6182 = vadd.f32 %v6166, %v6174
    %v6183 = vadd.f32 %v6167, %v6175
    %v6184 = vadd.f32 %v6168, %v6176
    %v6185 = vadd.f32 %v6169, %v6177
    %v6186 = vadd.f32 %v6170, %v6178
    %v6187 = vadd.f32 %v6171, %v6179
    %v6188 = vtanh.pop %v6180
    %v6189 = vtanh.pop %v6181
    %v6190 = vtanh.pop %v6182
    %v6191 = vtanh.pop %v6183
    %v6192 = vtanh.pop %v6184
    %v6193 = vtanh.pop %v6185
    %v6194 = vtanh.pop %v6186
    %v6195 = vtanh.pop %v6187
    %v6196 = vmul.f32 %v6034, %v6188
    %v6197 = vmul.f32 %v6049, %v6189
    %v6198 = vmul.f32 %v6064, %v6190
    %v6199 = vmul.f32 %v6079, %v6191
    %v6200 = vmul.f32 %v6094, %v6192
    %v6201 = vmul.f32 %v6109, %v6193
    %v6202 = vmul.f32 %v6124, %v6194
    %v6203 = vmul.f32 %v6139, %v6195
    %v6212 = vrot.slane %v6197, 7
    %v6213 = vrot.slane %v6198, 6
    %v6214 = vsel %vm1117, %v6213, %v6212
    %v6215 = vrot.slane %v6199, 5
    %v6216 = vsel %vm1120, %v6215, %v6214
    %v6217 = vrot.slane %v6200, 4
    %v6218 = vsel %vm1123, %v6217, %v6216
    %v6219 = vrot.slane %v6201, 3
    %v6220 = vsel %vm1126, %v6219, %v6218
    %v6221 = vrot.slane %v6202, 2
    %v6222 = vsel %vm1129, %v6221, %v6220
    %v6223 = vrot.slane %v6203, 1
    %v6224 = vsel %vm1132, %v6223, %v6222
    %6227 = vst [vmem:[#allocation2 - $0x7] sm:$0x80] %v6196
    %6228 = vst [vmem:[#allocation2 + $0x1] sm:$0x7f] %v6224
    %v6237 = vrot.slane %v6181, 7
    %v6238 = vrot.slane %v6182, 6
    %v6239 = vsel %vm1117, %v6238, %v6237
    %v6240 = vrot.slane %v6183, 5
    %v6241 = vsel %vm1120, %v6240, %v6239
    %v6242 = vrot.slane %v6184, 4
    %v6243 = vsel %vm1123, %v6242, %v6241
    %v6244 = vrot.slane %v6185, 3
    %v6245 = vsel %vm1126, %v6244, %v6243
    %v6246 = vrot.slane %v6186, 2
    %v6247 = vsel %vm1129, %v6246, %v6245
    %v6248 = vrot.slane %v6187, 1
    %v6249 = vsel %vm1132, %v6248, %v6247
    %6252 = vst [vmem:[#allocation3 - $0x7] sm:$0x80] %v6180
    %6253 = vst [vmem:[#allocation3 + $0x1] sm:$0x7f] %v6249
    // Predicated region
    $region62: #{tpu_custom_call.1} parent=1 // pred_check
      %p6254 = pneg %p125
    $region63: #{tpu_custom_call.1} parent=1 // pred_check_branch
      %6256 = sbr.rel (%p6254) target = $region65
    $region64: #{tpu_custom_call.1} parent=1 // pred_region
      %v6257 = vld [vmem:[#allocation12] sm:$0xff]
      %v6258 = vld [vmem:[#allocation12 + $0x8] sm:$0xff]
      %v6259 = vld [vmem:[#allocation12 + $0x10] sm:$0xff]
      %v6260 = vld [vmem:[#allocation12 + $0x18] sm:$0xff]
      %v6261 = vld [vmem:[#allocation12 + $0x20] sm:$0xff]
      %v6262 = vld [vmem:[#allocation12 + $0x28] sm:$0xff]
      %v6263 = vld [vmem:[#allocation12 + $0x30] sm:$0xff]
      %v6264 = vld [vmem:[#allocation12 + $0x38] sm:$0xff]
      %v6265 = vld [vmem:[#allocation12 + $0x40] sm:$0xff]
      %v6266 = vld [vmem:[#allocation12 + $0x48] sm:$0xff]
      %v6267 = vld [vmem:[#allocation12 + $0x50] sm:$0xff]
      %v6268 = vld [vmem:[#allocation12 + $0x58] sm:$0xff]
      %v6269 = vld [vmem:[#allocation12 + $0x60] sm:$0xff]
      %v6270 = vld [vmem:[#allocation12 + $0x68] sm:$0xff]
      %v6271 = vld [vmem:[#allocation12 + $0x70] sm:$0xff]
      %v6272 = vld [vmem:[#allocation12 + $0x78] sm:$0xff]
      %v6273 = vld [vmem:[%s5] sm:$0x1]
      %v6275 = vperm.slane %v6273, 0
      %v6277 = vrot.slane %v6196, 7
      %v6278 = vrot.slane %v6197, 6
      %v6279 = vsel %vm1117, %v6278, %v6277
      %v6280 = vrot.slane %v6198, 5
      %v6281 = vsel %vm1120, %v6280, %v6279
      %v6282 = vrot.slane %v6199, 4
      %v6283 = vsel %vm1123, %v6282, %v6281
      %v6284 = vrot.slane %v6200, 3
      %v6285 = vsel %vm1126, %v6284, %v6283
      %v6286 = vrot.slane %v6201, 2
      %v6287 = vsel %vm1129, %v6286, %v6285
      %v6288 = vrot.slane %v6202, 1
      %v6289 = vsel %vm1132, %v6288, %v6287
      %v6290 = vsel %vm1135, %v6203, %v6289
      %6292 = vmatpush.msra.mxu0 %v6272
      %6293 = vmatpush.msra.mxu0 %v6271
      %6294 = vmatpush.msra.mxu0 %v6270
      %6295 = vmatpush.msra.mxu0 %v6269
      %6296 = vmatpush.msra.mxu0 %v6268
      %6297 = vmatpush.msra.mxu0 %v6267
      %6298 = vmatpush.msra.mxu0 %v6266
      %6299 = vmatpush.msra.mxu0 %v6265
      %6300 = vmatpush.msra.mxu0 %v6264
      %6301 = vmatpush.msra.mxu0 %v6263
      %6302 = vmatpush.msra.mxu0 %v6262
      %6303 = vmatpush.msra.mxu0 %v6261
      %6304 = vmatpush.msra.mxu0 %v6260
      %6305 = vmatpush.msra.mxu0 %v6259
      %6306 = vmatpush.msra.mxu0 %v6258
      %6307 = vmatpush.msra.mxu0 %v6257
      %6308 = vmatmul.f32.gmra.mxu0 %v6290
      %v6309 = vpop.f32.mrf.mxu0
      %v6310 = vadd.f32 %v6275, %v6309
      %6311 = vdwg.mxu0
      %6312 = vst [vmem:[#allocation16] sm:$0xff] %v6310
      %v6313 = vld [vmem:[#allocation13] sm:$0xff]
      %v6314 = vld [vmem:[#allocation13 + $0x8] sm:$0xff]
      %v6315 = vld [vmem:[#allocation13 + $0x10] sm:$0xff]
      %v6316 = vld [vmem:[#allocation13 + $0x18] sm:$0xff]
      %v6317 = vld [vmem:[#allocation13 + $0x20] sm:$0xff]
      %v6318 = vld [vmem:[#allocation13 + $0x28] sm:$0xff]
      %v6319 = vld [vmem:[#allocation13 + $0x30] sm:$0xff]
      %v6320 = vld [vmem:[#allocation13 + $0x38] sm:$0xff]
      %v6321 = vld [vmem:[#allocation13 + $0x40] sm:$0xff]
      %v6322 = vld [vmem:[#allocation13 + $0x48] sm:$0xff]
      %v6323 = vld [vmem:[#allocation13 + $0x50] sm:$0xff]
      %v6324 = vld [vmem:[#allocation13 + $0x58] sm:$0xff]
      %v6325 = vld [vmem:[#allocation13 + $0x60] sm:$0xff]
      %v6326 = vld [vmem:[#allocation13 + $0x68] sm:$0xff]
      %v6327 = vld [vmem:[#allocation13 + $0x70] sm:$0xff]
      %v6328 = vld [vmem:[#allocation13 + $0x78] sm:$0xff]
      %v6329 = vld [vmem:[%s7] sm:$0x1]
      %v6331 = vperm.slane %v6329, 0
      %6333 = vmatpush.msra.mxu0 %v6328
      %6334 = vmatpush.msra.mxu0 %v6327
      %6335 = vmatpush.msra.mxu0 %v6326
      %6336 = vmatpush.msra.mxu0 %v6325
      %6337 = vmatpush.msra.mxu0 %v6324
      %6338 = vmatpush.msra.mxu0 %v6323
      %6339 = vmatpush.msra.mxu0 %v6322
      %6340 = vmatpush.msra.mxu0 %v6321
      %6341 = vmatpush.msra.mxu0 %v6320
      %6342 = vmatpush.msra.mxu0 %v6319
      %6343 = vmatpush.msra.mxu0 %v6318
      %6344 = vmatpush.msra.mxu0 %v6317
      %6345 = vmatpush.msra.mxu0 %v6316
      %6346 = vmatpush.msra.mxu0 %v6315
      %6347 = vmatpush.msra.mxu0 %v6314
      %6348 = vmatpush.msra.mxu0 %v6313
      %6349 = vmatmul.f32.gmra.mxu0 %v6310
      %v6350 = vpop.f32.mrf.mxu0
      %v6351 = vadd.f32 %v6331, %v6350
      %6352 = vdwg.mxu0
      %6353 = vst [vmem:[#allocation15] sm:$0xff] %v6351
    $region65: #{tpu_custom_call.1} parent=1 // pred_fallthru
      _
    // Predicated region
    $region66: #{tpu_custom_call.1} parent=1 // pred_check
      _
    $region67: #{tpu_custom_call.1} parent=1 // pred_check_branch
      %6355 = sbr.rel (0) target = $region69
    $region68: #{tpu_custom_call.1} parent=1 // pred_region
      %6357 = vsyncadd [#allocation6], 0
      %s6359 = sshll.u32 [#allocation15], 4
      %s6360 = int_to_ptr.vmem [resolvable:$true] %s6359
      %s6361 = sshll.u32 %s8, 4
      %s6362 = int_to_ptr.hbm [resolvable:$true] %s6361
      %6364 = dma.vmem_to_hbm [thread:$0]  %s6360, 128, %s6362, [#allocation6]
    $region69: #{tpu_custom_call.1} parent=1 // pred_fallthru
      _
    // Predicated region
    $region70: #{tpu_custom_call.1} parent=1 // pred_check
      _
    $region71: #{tpu_custom_call.1} parent=1 // pred_check_branch
      %6366 = sbr.rel (0) target = $region73
    $region72: #{tpu_custom_call.1} parent=1 // pred_region
      %6368 = vsyncadd [#allocation17], 0
      %s6370 = sshll.u32 [#allocation16], 4
      %s6371 = int_to_ptr.vmem [resolvable:$true] %s6370
      %s6372 = sshll.u32 %s9, 4
      %s6373 = int_to_ptr.hbm [resolvable:$true] %s6372
      %6375 = dma.vmem_to_hbm [thread:$0]  %s6371, 128, %s6373, [#allocation17]
    $region73: #{tpu_custom_call.1} parent=1 // pred_fallthru
      _
    // Predicated region
    $region74: #{tpu_custom_call.1} parent=1 // pred_check
      _
    $region75: #{tpu_custom_call.1} parent=1 // pred_check_branch
      %6377 = sbr.rel (0) target = $region77
    $region76: #{tpu_custom_call.1} parent=1 // pred_region
      %6379 = dma.done [#allocation6], 128
    $region77: #{tpu_custom_call.1} parent=1 // pred_fallthru
      _
    // Predicated region
    $region78: #{tpu_custom_call.1} parent=1 // pred_check
      _
    $region79: #{tpu_custom_call.1} parent=1 // pred_check_branch
      %6381 = sbr.rel (0) target = $region81
    $region80: #{tpu_custom_call.1} parent=1 // pred_region
      %6383 = dma.done [#allocation17], 128
    $region81: #{tpu_custom_call.1} parent=1 // pred_fallthru
      _
    %6384 = vsyncpa [#allocation5], 1
    %6385 = vsyncpa [#allocation8], 1
    %6386 = vsyncpa [#allocation11], 1
    %6387 = vsyncpa [#allocation14], 1
    %6388 = vsyncpa [#allocation6], 1
    %6389 = vsyncpa [#allocation17], 1

</llo_original>
